<compile_context>
chip_gen: v7x
topology: tpu7x:2x2x1
jax: 0.10.0
libtpu: 0.0.40
codegen_flags: <defaults>
</compile_context>

<pallas_src>
import numpy as np
import jax
import jax.numpy as jnp
from jax import lax
from jax.experimental import pallas as pl
from jax.experimental.pallas import tpu as pltpu

HI = jax.lax.Precision.HIGHEST


# ----------------------------------------------------------------------------
# LTI state-space matrices (continuous -> ZOH discretization), as in the module
# ----------------------------------------------------------------------------
def _expm_np(M):
    """float64 matrix exponential via scaling-and-squaring + Taylor series."""
    norm = np.linalg.norm(M, 1)
    s = 0 if norm <= 0 else max(0, int(np.ceil(np.log2(norm))) + 1)
    Ms = M / (2.0 ** s)
    n = M.shape[0]
    E = np.eye(n, dtype=np.float64)
    term = np.eye(n, dtype=np.float64)
    for k in range(1, 40):
        term = term @ Ms / k
        E = E + term
    for _ in range(s):
        E = E @ E
    return E


def state_space_matrices(memory_size, theta):
    """Discretized (ZOH, dt=1) A, B matrices of the LMU cell."""
    Q = np.arange(memory_size, dtype=np.float64).reshape(-1, 1)
    R = (2 * Q + 1) / theta
    i, j = np.meshgrid(Q, Q, indexing='ij')
    A = R * np.where(i < j, -1, (-1.0) ** (i - j + 1))
    B = R * (-1.0) ** Q
    n = memory_size
    M = np.zeros((n + 1, n + 1), dtype=np.float64)
    M[:n, :n] = A
    M[:n, n:] = B
    EM = _expm_np(M)                                  # dt = 1.0
    Ad = EM[:n, :n].astype(np.float32)
    Bd = EM[:n, n:].astype(np.float32)                # (memory, 1)
    return Ad, Bd


# ----------------------------------------------------------------------------
# Pallas kernel (built as a closure over the static shape/config parameters)
# ----------------------------------------------------------------------------
def _make_lmu_kernel(seq_len, t_chunk, hidden_size, width, unroll, pad):
    """One grid step = (batch block, time chunk).  Single fused dot per step."""

    def lmu_kernel(xf_ref,                  # (Tc, Bb, width)   x-term, precomputed
                   Wf_ref,                  # (width, width)    fused recurrence weight
                   fcW_ref, fcb_ref,        # (width, out) (1, out)  head (m rows zero)
                   out_ref,                 # (Tc, Bb, hidden)  per-step hidden
                   head_ref,                # (Bb, out)         final head
                   sfin_ref,                # (Bb, width)       final [h, m] state
                   s_sc):                   # VMEM scratch (Bb, width): chunk carry
        c = pl.program_id(1)                # time-chunk index (sequential axis)

        @pl.when(c == 0)
        def _init():                        # zero state at sequence start
            s_sc[...] = jnp.zeros_like(s_sc)

        # Tiny weights: load once per chunk, reuse across the unrolled loop.
        Wf = Wf_ref[...]
        # Lane mask selecting the h columns (tanh-squashed half of the state).
        is_h = lax.broadcasted_iota(jnp.int32, (1, width), 1) < hidden_size
        base = c * t_chunk

        def step(t, s):
            # ONE fused MXU dot produces both the pre-tanh h and the new m.
            z = xf_ref[t] + jnp.dot(s, Wf, preferred_element_type=jnp.float32,
                                    precision=HI)
            s_new = jnp.where(is_h, jnp.tanh(z), z)
            if pad:
                # Freeze the state on padded timesteps (statically compiled out
                # when seq_len is a multiple of t_chunk).
                s_new = jnp.where(base + t < seq_len, s_new, s)
            out_ref[t] = s_new[:, :hidden_size]     # off the serial chain
            return s_new

        s_last = lax.fori_loop(0, t_chunk, step, s_sc[...], unroll=unroll)
        s_sc[...] = s_last

        # Final head / final state: only on the last chunk.
        @pl.when(c == pl.num_programs(1) - 1)
        def _finish():
            sfin_ref[...] = s_last
            # fc weight is zero-padded over the m rows, so no h slice is needed.
            ht = (jnp.dot(s_last, fcW_ref[...], preferred_element_type=jnp.float32,
                          precision=HI)
                  + fcb_ref[...])                    # (Bb, out)
            xyz = jax.nn.sigmoid(ht[:, 0:3])
            r = jnp.tanh(ht[:, 3:])
            nrm = jnp.sqrt(jnp.sum(r * r, axis=1, keepdims=True))
            r = r / jnp.maximum(nrm, 1e-12)          # F.normalize(p=2, eps=1e-12)
            head_ref[...] = jnp.concatenate([xyz, r], axis=1)

    return lmu_kernel


def lmu_forward(x, params, t_chunk_cap=None):
    """x: [batch, seq, input] float32.  Returns (output, (state_head, m_T))."""
    Bsz, seq_len, input_size = x.shape
    hidden_size = params["W_h"].shape[0]
    memory_size = params["A"].shape[0]
    output_size = params["fc_W"].shape[0]
    width = hidden_size + memory_size
    f32 = jnp.float32

    # ---- algebraically fused weights (wrapper-side, full f32) ---------------
    A_T = jnp.asarray(params["A"].T, f32)                   # (mem, mem)
    B_row = jnp.asarray(params["B"], f32).reshape(1, memory_size)   # B^T
    Wm_T = jnp.asarray(params["W_m"].T, f32)                 # (mem, hid)
    Wh_T = jnp.asarray(params["W_h"].T, f32)                 # (hid, hid)
    Wx_T = jnp.asarray(params["W_x"].T, f32)                 # (in, hid)
    e_x = jnp.asarray(params["e_x"], f32).reshape(input_size, 1)
    e_h = jnp.asarray(params["e_h"], f32).reshape(hidden_size, 1)
    e_m = jnp.asarray(params["e_m"], f32).reshape(memory_size, 1)

    BW = jnp.dot(B_row, Wm_T, precision=HI)                  # B^T W_m^T  (1, hid)
    AW = jnp.dot(A_T, Wm_T, precision=HI)                    # A^T W_m^T  (mem, hid)
    # Rank-1 outer products via broadcast-mul (exact in f32, no MXU rounding).
    W_fused = jnp.concatenate([
        jnp.concatenate([Wh_T + e_h * BW, e_h * B_row], axis=1),      # h rows
        jnp.concatenate([AW + e_m * BW, A_T + e_m * B_row], axis=1),  # m rows
    ], axis=0)                                               # (width, width)
    Wx_fused = jnp.concatenate([Wx_T + e_x * BW, e_x * B_row], axis=1)  # (in, width)
    fcW_pad = jnp.concatenate(
        [jnp.asarray(params["fc_W"].T, f32),
         jnp.zeros((memory_size, output_size), f32)], axis=0)          # (width, out)
    fcb = jnp.asarray(params["fc_b"], f32).reshape(1, output_size)

    # ---- hoisted state-independent x-term: ONE batched matmul ---------------
    # (einsum also produces the time-major layout directly: no separate transpose)
    x_fused = jnp.einsum("bsi,iw->sbw", x.astype(f32), Wx_fused,
                         precision=HI)                        # (seq, B, width)

    # ---- batch blocking (v7x second TensorCore when batch is large enough) --
    b_block = Bsz // 2 if (Bsz >= 16 and Bsz % 16 == 0) else Bsz
    n_b = Bsz // b_block

    # ---- generation-aware chunk sizing --------------------------------------
    try:
        vmem_cap = int(pltpu.get_tpu_info().vmem_capacity_bytes)
    except Exception:
        vmem_cap = 64 * 1024 * 1024          # conservative: v7x per-TC VMEM
    budget = vmem_cap // 2                   # leave headroom for the pipeline
    fixed = 4 * (2 * width * width + 2 * width * output_size
                 + 2 * b_block * (width + output_size) + b_block * width)
    per_t = 4 * 2 * b_block * (width + hidden_size)   # xf + out, double-buffered
    t_cap = max(1, (budget - fixed) // per_t)
    if t_chunk_cap is not None:
        t_cap = min(t_cap, t_chunk_cap)
    t_chunk = int(max(1, min(seq_len, t_cap, 128)))
    n_chunks = -(-seq_len // t_chunk)                 # cdiv
    seq_pad = n_chunks * t_chunk
    pad = seq_pad != seq_len
    if pad:
        x_fused = jnp.pad(x_fused, ((0, seq_pad - seq_len), (0, 0), (0, 0)))
    unroll = True if t_chunk <= 64 else 16            # full unroll for LLO visibility
    vmem_limit = int(min(max(vmem_cap * 3 // 4, 32 * 1024 * 1024),
                         96 * 1024 * 1024))

    kernel = _make_lmu_kernel(seq_len, t_chunk, hidden_size, width, unroll, pad)

    # NOTE: weight inputs use constant index maps; pipeline_mode=pl.Buffered(1)
    # would reclaim their second buffer at large widths (left default here).
    grid_spec = pltpu.PrefetchScalarGridSpec(
        num_scalar_prefetch=0,
        grid=(n_b, n_chunks),
        in_specs=[
            pl.BlockSpec((t_chunk, b_block, width), lambda b, c: (c, b, 0)),   # x-term
            pl.BlockSpec((width, width), lambda b, c: (0, 0)),                 # W_fused
            pl.BlockSpec((width, output_size), lambda b, c: (0, 0)),           # fc_W (padded)
            pl.BlockSpec((1, output_size), lambda b, c: (0, 0)),               # fc_b
        ],
        out_specs=[
            pl.BlockSpec((t_chunk, b_block, hidden_size), lambda b, c: (c, b, 0)),
            pl.BlockSpec((b_block, output_size), lambda b, c: (b, 0)),         # head
            pl.BlockSpec((b_block, width), lambda b, c: (b, 0)),               # final [h,m]
        ],
        scratch_shapes=[pltpu.VMEM((b_block, width), f32)],
    )

    out_seq, head, s_fin = pl.pallas_call(
        kernel,
        out_shape=(
            jax.ShapeDtypeStruct((seq_pad, Bsz, hidden_size), f32),
            jax.ShapeDtypeStruct((Bsz, output_size), f32),
            jax.ShapeDtypeStruct((Bsz, width), f32),
        ),
        grid_spec=grid_spec,
        compiler_params=pltpu.CompilerParams(
            dimension_semantics=("parallel", "arbitrary"),
            vmem_limit_bytes=vmem_limit),
    )(x_fused, W_fused, fcW_pad, fcb)

    # TODO(synk): return time-major (seq, B, hidden) directly if consumers accept
    # it -- this transpose is a full extra HBM read+write of the output at scale.
    output = jnp.transpose(out_seq[:seq_len], (1, 0, 2))     # (B, seq, hidden)
    m_T = s_fin[:, hidden_size:]
    return output, (head, m_T)


# ----------------------------------------------------------------------------
# Pure-JAX reference (mirrors the PyTorch forward), for the correctness check
# ----------------------------------------------------------------------------
def lmu_reference(x, params):
    Bsz, seq_len, _ = x.shape
    hidden_size = params["W_h"].shape[0]
    memory_size = params["A"].shape[0]
    h = jnp.zeros((Bsz, hidden_size), jnp.float32)
    m = jnp.zeros((Bsz, memory_size), jnp.float32)
    outs = []
    dot = lambda a, b: jnp.dot(a, b, precision=HI)
    for t in range(seq_len):
        x_t = x[:, t, :]
        u = (dot(x_t, params["e_x"].T) + dot(h, params["e_h"].T)
             + dot(m, params["e_m"].T))
        m = dot(m, params["A"].T) + dot(u, params["B"].T)
        h = jnp.tanh(dot(x_t, params["W_x"].T) + dot(h, params["W_h"].T)
                     + dot(m, params["W_m"].T))
        outs.append(h)
    output = jnp.stack(outs, axis=1)
    ht = dot(h, params["fc_W"].T) + params["fc_b"]
    xyz = jax.nn.sigmoid(ht[:, 0:3])
    r = jnp.tanh(ht[:, 3:])
    r = r / jnp.maximum(jnp.sqrt(jnp.sum(r * r, axis=1, keepdims=True)), 1e-12)
    return output, (jnp.concatenate([xyz, r], axis=1), m)


# ----------------------------------------------------------------------------
# Deterministic parameter construction (mirrors the module's __init__)
# ----------------------------------------------------------------------------
def make_params(key, input_size, hidden_size, memory_size, theta, output_size):
    ks = jax.random.split(key, 7)

    def lecun_uniform(k, shape, fan_in):
        lim = np.sqrt(3.0 / fan_in)
        return jax.random.uniform(k, shape, jnp.float32, -lim, lim)

    def xavier_normal(k, shape):  # (fan_out, fan_in)
        std = np.sqrt(2.0 / (shape[0] + shape[1]))
        return std * jax.random.normal(k, shape, jnp.float32)

    A, B = state_space_matrices(memory_size, theta)
    bound = 1.0 / np.sqrt(hidden_size)
    return {
        "A": jnp.asarray(A),                                   # (mem, mem)
        "B": jnp.asarray(B),                                   # (mem, 1)
        "e_x": lecun_uniform(ks[0], (1, input_size), input_size),
        "e_h": lecun_uniform(ks[1], (1, hidden_size), hidden_size),
        "e_m": jnp.zeros((1, memory_size), jnp.float32),
        "W_x": xavier_normal(ks[2], (hidden_size, input_size)),
        "W_h": xavier_normal(ks[3], (hidden_size, hidden_size)),
        "W_m": xavier_normal(ks[4], (hidden_size, memory_size)),
        "fc_W": jax.random.uniform(ks[5], (output_size, hidden_size),
                                   jnp.float32, -bound, bound),
        "fc_b": jax.random.uniform(ks[6], (output_size,),
                                   jnp.float32, -bound, bound),
    }


if __name__ == "__main__":
    # 7 input states (x y z q1..q4); output = 3 xyz + 4 quaternion components.
    input_size, hidden_size, memory_size, theta, output_size = 7, 32, 32, 8, 7

    key = jax.random.PRNGKey(0)
    pkey, xkey1, xkey2 = jax.random.split(key, 3)
    params = make_params(pkey, input_size, hidden_size, memory_size, theta,
                         output_size)

    # -- config 1: batch=8 fills all 8 f32 sublanes; single time chunk --------
    batch1, seq1 = 8, 8
    x1 = jax.random.normal(xkey1, (batch1, seq1, input_size), jnp.float32)
    out1, (head1, m1) = jax.block_until_ready(jax.jit(lmu_forward)(x1, params))
    r_out1, (r_head1, r_m1) = lmu_reference(x1, params)
    np.testing.assert_allclose(np.asarray(out1), np.asarray(r_out1),
                               rtol=2e-3, atol=2e-3)
    np.testing.assert_allclose(np.asarray(head1), np.asarray(r_head1),
                               rtol=2e-3, atol=2e-3)
    np.testing.assert_allclose(np.asarray(m1), np.asarray(r_m1),
                               rtol=2e-3, atol=2e-3)
    assert out1.shape == (batch1, seq1, hidden_size)
    assert head1.shape == (batch1, output_size)
    assert m1.shape == (batch1, memory_size)

    # -- config 2: odd seq_len + forced small chunk: exercises the multi-chunk
    #    carry and the padded-step masking path -------------------------------
    batch2, seq2 = 4, 19
    x2 = jax.random.normal(xkey2, (batch2, seq2, input_size), jnp.float32)
    fwd2 = jax.jit(lambda xx, pp: lmu_forward(xx, pp, t_chunk_cap=8))
    out2, (head2, m2) = jax.block_until_ready(fwd2(x2, params))
    r_out2, (r_head2, r_m2) = lmu_reference(x2, params)
    np.testing.assert_allclose(np.asarray(out2), np.asarray(r_out2),
                               rtol=2e-3, atol=2e-3)
    np.testing.assert_allclose(np.asarray(head2), np.asarray(r_head2),
                               rtol=2e-3, atol=2e-3)
    np.testing.assert_allclose(np.asarray(m2), np.asarray(r_m2),
                               rtol=2e-3, atol=2e-3)
    assert out2.shape == (batch2, seq2, hidden_size)

    print("KERNEL_OK")
</pallas_src>

<mosaic_0001>
module attributes {stable_mosaic.version = 11 : i64} {
  func.func @lmu_kernel(%arg0: i32, %arg1: i32, %arg2: memref<8x8x64xf32, #tpu.memory_space<vmem>>, %arg3: memref<64x64xf32, #tpu.memory_space<vmem>>, %arg4: memref<64x7xf32, #tpu.memory_space<vmem>>, %arg5: memref<1x7xf32, #tpu.memory_space<vmem>>, %arg6: memref<8x8x32xf32, #tpu.memory_space<vmem>>, %arg7: memref<8x7xf32, #tpu.memory_space<vmem>>, %arg8: memref<8x64xf32, #tpu.memory_space<vmem>>, %arg9: memref<8x64xf32, #tpu.memory_space<vmem>>) attributes {dimension_semantics = [#tpu.dimension_semantics<parallel>, #tpu.dimension_semantics<arbitrary>], iteration_bounds = array<i64: 1, 1>, scalar_prefetch = 0 : i64, scratch_operands = 1 : i64, tpu.core_type = #tpu.core_type<tc>, window_params = [{transform_indices = @transform_0, window_bounds = array<i64: 8, 8, 64>}, {pipeline_mode = #tpu.pipeline_mode<synchronous>, transform_indices = @transform_1, window_bounds = array<i64: 64, 64>}, {pipeline_mode = #tpu.pipeline_mode<synchronous>, transform_indices = @transform_2, window_bounds = array<i64: 64, 7>}, {pipeline_mode = #tpu.pipeline_mode<synchronous>, transform_indices = @transform_3, window_bounds = array<i64: 1, 7>}, {transform_indices = @transform_4, window_bounds = array<i64: 8, 8, 32>}, {transform_indices = @transform_5, window_bounds = array<i64: 8, 7>}, {transform_indices = @transform_6, window_bounds = array<i64: 8, 64>}]} {
    %c0_i32 = arith.constant 0 : i32
    %0 = arith.cmpi eq, %arg1, %c0_i32 : i32
    %1 = arith.extui %0 : i1 to i32
    %c0_i32_0 = arith.constant 0 : i32
    %2 = arith.cmpi ne, %1, %c0_i32_0 : i32
    scf.if %2 {
      %cst_48 = arith.constant 0.000000e+00 : f32
      %124 = vector.broadcast %cst_48 : f32 to vector<8x64xf32>
      %c0_49 = arith.constant 0 : index
      %c0_50 = arith.constant 0 : index
      %125 = vector.load %arg9[%c0_49, %c0_50] : memref<8x64xf32, #tpu.memory_space<vmem>>, vector<8x64xf32>
      tpu.vector_store %arg9[%c0_49, %c0_50], %124 {strides = array<i32>} : memref<8x64xf32, #tpu.memory_space<vmem>>, vector<8x64xf32>,
    } else {
    }
    %c0 = arith.constant 0 : index
    %c0_1 = arith.constant 0 : index
    %3 = vector.load %arg3[%c0, %c0_1] : memref<64x64xf32, #tpu.memory_space<vmem>>, vector<64x64xf32>
    %4 = tpu.iota {dimensions = array<i32: 1>} : vector<1x64xi32>
    %c32_i32 = arith.constant 32 : i32
    %5 = vector.broadcast %c32_i32 : i32 to vector<1x64xi32>
    %6 = arith.cmpi slt, %4, %5 : vector<1x64xi32>
    %c0_2 = arith.constant 0 : index
    %c0_3 = arith.constant 0 : index
    %7 = vector.load %arg9[%c0_2, %c0_3] : memref<8x64xf32, #tpu.memory_space<vmem>>, vector<8x64xf32>
    %c0_i32_4 = arith.constant 0 : i32
    %8 = arith.index_cast %c0_i32_4 : i32 to index
    %c0_5 = arith.constant 0 : index
    %c0_6 = arith.constant 0 : index
    %9 = vector.load %arg2[%8, %c0_5, %c0_6] : memref<8x8x64xf32, #tpu.memory_space<vmem>>, vector<1x8x64xf32>
    %10 = vector.shape_cast %9 : vector<1x8x64xf32> to vector<8x64xf32>
    %cst = arith.constant dense<0.000000e+00> : vector<8x64xf32>
    %11 = tpu.matmul %7, %3, %cst {dimension_numbers = #tpu.dot_dimension_numbers<[1], [0], [0], [1], [0, 0, 1, 1], [], []>, precision = #tpu.contract_precision<fp32>} : vector<8x64xf32>, vector<64x64xf32>, vector<8x64xf32> -> vector<8x64xf32>
    %12 = arith.addf %10, %11 : vector<8x64xf32>
    %13 = math.tanh %12 : vector<8x64xf32>
    %14 = vector.shape_cast %6 : vector<1x64xi1> to vector<1x64xi1>
    %15 = vector.broadcast %14 : vector<1x64xi1> to vector<8x64xi1>
    %16 = arith.select %15, %13, %12 : vector<8x64xi1>, vector<8x64xf32>
    %17 = vector.extract_strided_slice %16 {offsets = [0, 0], sizes = [8, 32], strides = [1, 1]} : vector<8x64xf32> to vector<8x32xf32>
    %18 = arith.index_cast %c0_i32_4 : i32 to index
    %c0_7 = arith.constant 0 : index
    %c0_8 = arith.constant 0 : index
    %19 = vector.load %arg6[%18, %c0_7, %c0_8] : memref<8x8x32xf32, #tpu.memory_space<vmem>>, vector<1x8x32xf32>
    %20 = vector.shape_cast %19 : vector<1x8x32xf32> to vector<8x32xf32>
    %21 = vector.shape_cast %17 : vector<8x32xf32> to vector<1x8x32xf32>
    tpu.vector_store %arg6[%18, %c0_7, %c0_8], %21 {strides = array<i32>} : memref<8x8x32xf32, #tpu.memory_space<vmem>>, vector<1x8x32xf32>,
    %c1_i32 = arith.constant 1 : i32
    %22 = arith.index_cast %c1_i32 : i32 to index
    %c0_9 = arith.constant 0 : index
    %c0_10 = arith.constant 0 : index
    %23 = vector.load %arg2[%22, %c0_9, %c0_10] : memref<8x8x64xf32, #tpu.memory_space<vmem>>, vector<1x8x64xf32>
    %24 = vector.shape_cast %23 : vector<1x8x64xf32> to vector<8x64xf32>
    %cst_11 = arith.constant dense<0.000000e+00> : vector<8x64xf32>
    %25 = tpu.matmul %16, %3, %cst_11 {dimension_numbers = #tpu.dot_dimension_numbers<[1], [0], [0], [1], [0, 0, 1, 1], [], []>, precision = #tpu.contract_precision<fp32>} : vector<8x64xf32>, vector<64x64xf32>, vector<8x64xf32> -> vector<8x64xf32>
    %26 = arith.addf %24, %25 : vector<8x64xf32>
    %27 = math.tanh %26 : vector<8x64xf32>
    %28 = vector.shape_cast %6 : vector<1x64xi1> to vector<1x64xi1>
    %29 = vector.broadcast %28 : vector<1x64xi1> to vector<8x64xi1>
    %30 = arith.select %29, %27, %26 : vector<8x64xi1>, vector<8x64xf32>
    %31 = vector.extract_strided_slice %30 {offsets = [0, 0], sizes = [8, 32], strides = [1, 1]} : vector<8x64xf32> to vector<8x32xf32>
    %32 = arith.index_cast %c1_i32 : i32 to index
    %c0_12 = arith.constant 0 : index
    %c0_13 = arith.constant 0 : index
    %33 = vector.load %arg6[%32, %c0_12, %c0_13] : memref<8x8x32xf32, #tpu.memory_space<vmem>>, vector<1x8x32xf32>
    %34 = vector.shape_cast %33 : vector<1x8x32xf32> to vector<8x32xf32>
    %35 = vector.shape_cast %31 : vector<8x32xf32> to vector<1x8x32xf32>
    tpu.vector_store %arg6[%32, %c0_12, %c0_13], %35 {strides = array<i32>} : memref<8x8x32xf32, #tpu.memory_space<vmem>>, vector<1x8x32xf32>,
    %c2_i32 = arith.constant 2 : i32
    %36 = arith.index_cast %c2_i32 : i32 to index
    %c0_14 = arith.constant 0 : index
    %c0_15 = arith.constant 0 : index
    %37 = vector.load %arg2[%36, %c0_14, %c0_15] : memref<8x8x64xf32, #tpu.memory_space<vmem>>, vector<1x8x64xf32>
    %38 = vector.shape_cast %37 : vector<1x8x64xf32> to vector<8x64xf32>
    %cst_16 = arith.constant dense<0.000000e+00> : vector<8x64xf32>
    %39 = tpu.matmul %30, %3, %cst_16 {dimension_numbers = #tpu.dot_dimension_numbers<[1], [0], [0], [1], [0, 0, 1, 1], [], []>, precision = #tpu.contract_precision<fp32>} : vector<8x64xf32>, vector<64x64xf32>, vector<8x64xf32> -> vector<8x64xf32>
    %40 = arith.addf %38, %39 : vector<8x64xf32>
    %41 = math.tanh %40 : vector<8x64xf32>
    %42 = vector.shape_cast %6 : vector<1x64xi1> to vector<1x64xi1>
    %43 = vector.broadcast %42 : vector<1x64xi1> to vector<8x64xi1>
    %44 = arith.select %43, %41, %40 : vector<8x64xi1>, vector<8x64xf32>
    %45 = vector.extract_strided_slice %44 {offsets = [0, 0], sizes = [8, 32], strides = [1, 1]} : vector<8x64xf32> to vector<8x32xf32>
    %46 = arith.index_cast %c2_i32 : i32 to index
    %c0_17 = arith.constant 0 : index
    %c0_18 = arith.constant 0 : index
    %47 = vector.load %arg6[%46, %c0_17, %c0_18] : memref<8x8x32xf32, #tpu.memory_space<vmem>>, vector<1x8x32xf32>
    %48 = vector.shape_cast %47 : vector<1x8x32xf32> to vector<8x32xf32>
    %49 = vector.shape_cast %45 : vector<8x32xf32> to vector<1x8x32xf32>
    tpu.vector_store %arg6[%46, %c0_17, %c0_18], %49 {strides = array<i32>} : memref<8x8x32xf32, #tpu.memory_space<vmem>>, vector<1x8x32xf32>,
    %c3_i32 = arith.constant 3 : i32
    %50 = arith.index_cast %c3_i32 : i32 to index
    %c0_19 = arith.constant 0 : index
    %c0_20 = arith.constant 0 : index
    %51 = vector.load %arg2[%50, %c0_19, %c0_20] : memref<8x8x64xf32, #tpu.memory_space<vmem>>, vector<1x8x64xf32>
    %52 = vector.shape_cast %51 : vector<1x8x64xf32> to vector<8x64xf32>
    %cst_21 = arith.constant dense<0.000000e+00> : vector<8x64xf32>
    %53 = tpu.matmul %44, %3, %cst_21 {dimension_numbers = #tpu.dot_dimension_numbers<[1], [0], [0], [1], [0, 0, 1, 1], [], []>, precision = #tpu.contract_precision<fp32>} : vector<8x64xf32>, vector<64x64xf32>, vector<8x64xf32> -> vector<8x64xf32>
    %54 = arith.addf %52, %53 : vector<8x64xf32>
    %55 = math.tanh %54 : vector<8x64xf32>
    %56 = vector.shape_cast %6 : vector<1x64xi1> to vector<1x64xi1>
    %57 = vector.broadcast %56 : vector<1x64xi1> to vector<8x64xi1>
    %58 = arith.select %57, %55, %54 : vector<8x64xi1>, vector<8x64xf32>
    %59 = vector.extract_strided_slice %58 {offsets = [0, 0], sizes = [8, 32], strides = [1, 1]} : vector<8x64xf32> to vector<8x32xf32>
    %60 = arith.index_cast %c3_i32 : i32 to index
    %c0_22 = arith.constant 0 : index
    %c0_23 = arith.constant 0 : index
    %61 = vector.load %arg6[%60, %c0_22, %c0_23] : memref<8x8x32xf32, #tpu.memory_space<vmem>>, vector<1x8x32xf32>
    %62 = vector.shape_cast %61 : vector<1x8x32xf32> to vector<8x32xf32>
    %63 = vector.shape_cast %59 : vector<8x32xf32> to vector<1x8x32xf32>
    tpu.vector_store %arg6[%60, %c0_22, %c0_23], %63 {strides = array<i32>} : memref<8x8x32xf32, #tpu.memory_space<vmem>>, vector<1x8x32xf32>,
    %c4_i32 = arith.constant 4 : i32
    %64 = arith.index_cast %c4_i32 : i32 to index
    %c0_24 = arith.constant 0 : index
    %c0_25 = arith.constant 0 : index
    %65 = vector.load %arg2[%64, %c0_24, %c0_25] : memref<8x8x64xf32, #tpu.memory_space<vmem>>, vector<1x8x64xf32>
    %66 = vector.shape_cast %65 : vector<1x8x64xf32> to vector<8x64xf32>
    %cst_26 = arith.constant dense<0.000000e+00> : vector<8x64xf32>
    %67 = tpu.matmul %58, %3, %cst_26 {dimension_numbers = #tpu.dot_dimension_numbers<[1], [0], [0], [1], [0, 0, 1, 1], [], []>, precision = #tpu.contract_precision<fp32>} : vector<8x64xf32>, vector<64x64xf32>, vector<8x64xf32> -> vector<8x64xf32>
    %68 = arith.addf %66, %67 : vector<8x64xf32>
    %69 = math.tanh %68 : vector<8x64xf32>
    %70 = vector.shape_cast %6 : vector<1x64xi1> to vector<1x64xi1>
    %71 = vector.broadcast %70 : vector<1x64xi1> to vector<8x64xi1>
    %72 = arith.select %71, %69, %68 : vector<8x64xi1>, vector<8x64xf32>
    %73 = vector.extract_strided_slice %72 {offsets = [0, 0], sizes = [8, 32], strides = [1, 1]} : vector<8x64xf32> to vector<8x32xf32>
    %74 = arith.index_cast %c4_i32 : i32 to index
    %c0_27 = arith.constant 0 : index
    %c0_28 = arith.constant 0 : index
    %75 = vector.load %arg6[%74, %c0_27, %c0_28] : memref<8x8x32xf32, #tpu.memory_space<vmem>>, vector<1x8x32xf32>
    %76 = vector.shape_cast %75 : vector<1x8x32xf32> to vector<8x32xf32>
    %77 = vector.shape_cast %73 : vector<8x32xf32> to vector<1x8x32xf32>
    tpu.vector_store %arg6[%74, %c0_27, %c0_28], %77 {strides = array<i32>} : memref<8x8x32xf32, #tpu.memory_space<vmem>>, vector<1x8x32xf32>,
    %c5_i32 = arith.constant 5 : i32
    %78 = arith.index_cast %c5_i32 : i32 to index
    %c0_29 = arith.constant 0 : index
    %c0_30 = arith.constant 0 : index
    %79 = vector.load %arg2[%78, %c0_29, %c0_30] : memref<8x8x64xf32, #tpu.memory_space<vmem>>, vector<1x8x64xf32>
    %80 = vector.shape_cast %79 : vector<1x8x64xf32> to vector<8x64xf32>
    %cst_31 = arith.constant dense<0.000000e+00> : vector<8x64xf32>
    %81 = tpu.matmul %72, %3, %cst_31 {dimension_numbers = #tpu.dot_dimension_numbers<[1], [0], [0], [1], [0, 0, 1, 1], [], []>, precision = #tpu.contract_precision<fp32>} : vector<8x64xf32>, vector<64x64xf32>, vector<8x64xf32> -> vector<8x64xf32>
    %82 = arith.addf %80, %81 : vector<8x64xf32>
    %83 = math.tanh %82 : vector<8x64xf32>
    %84 = vector.shape_cast %6 : vector<1x64xi1> to vector<1x64xi1>
    %85 = vector.broadcast %84 : vector<1x64xi1> to vector<8x64xi1>
    %86 = arith.select %85, %83, %82 : vector<8x64xi1>, vector<8x64xf32>
    %87 = vector.extract_strided_slice %86 {offsets = [0, 0], sizes = [8, 32], strides = [1, 1]} : vector<8x64xf32> to vector<8x32xf32>
    %88 = arith.index_cast %c5_i32 : i32 to index
    %c0_32 = arith.constant 0 : index
    %c0_33 = arith.constant 0 : index
    %89 = vector.load %arg6[%88, %c0_32, %c0_33] : memref<8x8x32xf32, #tpu.memory_space<vmem>>, vector<1x8x32xf32>
    %90 = vector.shape_cast %89 : vector<1x8x32xf32> to vector<8x32xf32>
    %91 = vector.shape_cast %87 : vector<8x32xf32> to vector<1x8x32xf32>
    tpu.vector_store %arg6[%88, %c0_32, %c0_33], %91 {strides = array<i32>} : memref<8x8x32xf32, #tpu.memory_space<vmem>>, vector<1x8x32xf32>,
    %c6_i32 = arith.constant 6 : i32
    %92 = arith.index_cast %c6_i32 : i32 to index
    %c0_34 = arith.constant 0 : index
    %c0_35 = arith.constant 0 : index
    %93 = vector.load %arg2[%92, %c0_34, %c0_35] : memref<8x8x64xf32, #tpu.memory_space<vmem>>, vector<1x8x64xf32>
    %94 = vector.shape_cast %93 : vector<1x8x64xf32> to vector<8x64xf32>
    %cst_36 = arith.constant dense<0.000000e+00> : vector<8x64xf32>
    %95 = tpu.matmul %86, %3, %cst_36 {dimension_numbers = #tpu.dot_dimension_numbers<[1], [0], [0], [1], [0, 0, 1, 1], [], []>, precision = #tpu.contract_precision<fp32>} : vector<8x64xf32>, vector<64x64xf32>, vector<8x64xf32> -> vector<8x64xf32>
    %96 = arith.addf %94, %95 : vector<8x64xf32>
    %97 = math.tanh %96 : vector<8x64xf32>
    %98 = vector.shape_cast %6 : vector<1x64xi1> to vector<1x64xi1>
    %99 = vector.broadcast %98 : vector<1x64xi1> to vector<8x64xi1>
    %100 = arith.select %99, %97, %96 : vector<8x64xi1>, vector<8x64xf32>
    %101 = vector.extract_strided_slice %100 {offsets = [0, 0], sizes = [8, 32], strides = [1, 1]} : vector<8x64xf32> to vector<8x32xf32>
    %102 = arith.index_cast %c6_i32 : i32 to index
    %c0_37 = arith.constant 0 : index
    %c0_38 = arith.constant 0 : index
    %103 = vector.load %arg6[%102, %c0_37, %c0_38] : memref<8x8x32xf32, #tpu.memory_space<vmem>>, vector<1x8x32xf32>
    %104 = vector.shape_cast %103 : vector<1x8x32xf32> to vector<8x32xf32>
    %105 = vector.shape_cast %101 : vector<8x32xf32> to vector<1x8x32xf32>
    tpu.vector_store %arg6[%102, %c0_37, %c0_38], %105 {strides = array<i32>} : memref<8x8x32xf32, #tpu.memory_space<vmem>>, vector<1x8x32xf32>,
    %c7_i32 = arith.constant 7 : i32
    %106 = arith.index_cast %c7_i32 : i32 to index
    %c0_39 = arith.constant 0 : index
    %c0_40 = arith.constant 0 : index
    %107 = vector.load %arg2[%106, %c0_39, %c0_40] : memref<8x8x64xf32, #tpu.memory_space<vmem>>, vector<1x8x64xf32>
    %108 = vector.shape_cast %107 : vector<1x8x64xf32> to vector<8x64xf32>
    %cst_41 = arith.constant dense<0.000000e+00> : vector<8x64xf32>
    %109 = tpu.matmul %100, %3, %cst_41 {dimension_numbers = #tpu.dot_dimension_numbers<[1], [0], [0], [1], [0, 0, 1, 1], [], []>, precision = #tpu.contract_precision<fp32>} : vector<8x64xf32>, vector<64x64xf32>, vector<8x64xf32> -> vector<8x64xf32>
    %110 = arith.addf %108, %109 : vector<8x64xf32>
    %111 = math.tanh %110 : vector<8x64xf32>
    %112 = vector.shape_cast %6 : vector<1x64xi1> to vector<1x64xi1>
    %113 = vector.broadcast %112 : vector<1x64xi1> to vector<8x64xi1>
    %114 = arith.select %113, %111, %110 : vector<8x64xi1>, vector<8x64xf32>
    %115 = vector.extract_strided_slice %114 {offsets = [0, 0], sizes = [8, 32], strides = [1, 1]} : vector<8x64xf32> to vector<8x32xf32>
    %116 = arith.index_cast %c7_i32 : i32 to index
    %c0_42 = arith.constant 0 : index
    %c0_43 = arith.constant 0 : index
    %117 = vector.load %arg6[%116, %c0_42, %c0_43] : memref<8x8x32xf32, #tpu.memory_space<vmem>>, vector<1x8x32xf32>
    %118 = vector.shape_cast %117 : vector<1x8x32xf32> to vector<8x32xf32>
    %119 = vector.shape_cast %115 : vector<8x32xf32> to vector<1x8x32xf32>
    tpu.vector_store %arg6[%116, %c0_42, %c0_43], %119 {strides = array<i32>} : memref<8x8x32xf32, #tpu.memory_space<vmem>>, vector<1x8x32xf32>,
    %c8_i32 = arith.constant 8 : i32
    %c0_44 = arith.constant 0 : index
    %c0_45 = arith.constant 0 : index
    %120 = vector.load %arg9[%c0_44, %c0_45] : memref<8x64xf32, #tpu.memory_space<vmem>>, vector<8x64xf32>
    tpu.vector_store %arg9[%c0_44, %c0_45], %114 {strides = array<i32>} : memref<8x64xf32, #tpu.memory_space<vmem>>, vector<8x64xf32>,
    %c0_i32_46 = arith.constant 0 : i32
    %121 = arith.cmpi eq, %arg1, %c0_i32_46 : i32
    %122 = arith.extui %121 : i1 to i32
    %c0_i32_47 = arith.constant 0 : i32
    %123 = arith.cmpi ne, %122, %c0_i32_47 : i32
    scf.if %123 {
      %c0_48 = arith.constant 0 : index
      %c0_49 = arith.constant 0 : index
      %124 = vector.load %arg8[%c0_48, %c0_49] : memref<8x64xf32, #tpu.memory_space<vmem>>, vector<8x64xf32>
      tpu.vector_store %arg8[%c0_48, %c0_49], %114 {strides = array<i32>} : memref<8x64xf32, #tpu.memory_space<vmem>>, vector<8x64xf32>,
      %c0_50 = arith.constant 0 : index
      %c0_51 = arith.constant 0 : index
      %125 = vector.load %arg4[%c0_50, %c0_51] : memref<64x7xf32, #tpu.memory_space<vmem>>, vector<64x7xf32>
      %cst_52 = arith.constant dense<0.000000e+00> : vector<8x7xf32>
      %126 = tpu.matmul %114, %125, %cst_52 {dimension_numbers = #tpu.dot_dimension_numbers<[1], [0], [0], [1], [0, 0, 1, 1], [], []>, precision = #tpu.contract_precision<fp32>} : vector<8x64xf32>, vector<64x7xf32>, vector<8x7xf32> -> vector<8x7xf32>
      %c0_53 = arith.constant 0 : index
      %c0_54 = arith.constant 0 : index
      %127 = vector.load %arg5[%c0_53, %c0_54] : memref<1x7xf32, #tpu.memory_space<vmem>>, vector<1x7xf32>
      %128 = vector.broadcast %127 : vector<1x7xf32> to vector<8x7xf32>
      %129 = arith.addf %126, %128 : vector<8x7xf32>
      %130 = vector.extract_strided_slice %129 {offsets = [0, 0], sizes = [8, 3], strides = [1, 1]} : vector<8x7xf32> to vector<8x3xf32>
      %131 = arith.negf %130 : vector<8x3xf32>
      %132 = math.exp %131 : vector<8x3xf32>
      %cst_55 = arith.constant 1.000000e+00 : f32
      %133 = vector.broadcast %cst_55 : f32 to vector<8x3xf32>
      %134 = arith.addf %133, %132 : vector<8x3xf32>
      %135 = arith.divf %133, %134 : vector<8x3xf32>
      %136 = vector.extract_strided_slice %129 {offsets = [0, 3], sizes = [8, 4], strides = [1, 1]} : vector<8x7xf32> to vector<8x4xf32>
      %137 = math.tanh %136 : vector<8x4xf32>
      %138 = arith.mulf %137, %137 : vector<8x4xf32>
      %cst_56 = arith.constant dense<0.000000e+00> : vector<8xf32>
      %139 = vector.multi_reduction <add>, %138, %cst_56 [1] : vector<8x4xf32> to vector<8xf32>
      %140 = vector.shape_cast %139 : vector<8xf32> to vector<8x1xf32>
      %141 = math.sqrt %140 : vector<8x1xf32>
      %cst_57 = arith.constant 9.99999996E-13 : f32
      %142 = vector.broadcast %cst_57 : f32 to vector<8x1xf32>
      %143 = arith.maximumf %141, %142 : vector<8x1xf32>
      %144 = vector.broadcast %143 : vector<8x1xf32> to vector<8x4xf32>
      %145 = arith.divf %137, %144 : vector<8x4xf32>
      %146 = tpu.concatenate %135, %145 in 1 : vector<8x3xf32>, vector<8x4xf32> -> vector<8x7xf32>
      %c0_58 = arith.constant 0 : index
      %c0_59 = arith.constant 0 : index
      %147 = vector.load %arg7[%c0_58, %c0_59] : memref<8x7xf32, #tpu.memory_space<vmem>>, vector<8x7xf32>
      tpu.vector_store %arg7[%c0_58, %c0_59], %146 {strides = array<i32>} : memref<8x7xf32, #tpu.memory_space<vmem>>, vector<8x7xf32>,
    } else {
    }
    return
  }
  func.func @transform_0(%arg0: i32, %arg1: i32) -> (i32, i32, i32) {
    %c0_i32 = arith.constant 0 : i32
    %c0_i32_0 = arith.constant 0 : i32
    return %arg1, %arg0, %c0_i32 : i32, i32, i32
  }
  func.func @transform_1(%arg0: i32, %arg1: i32) -> (i32, i32) {
    %c0_i32 = arith.constant 0 : i32
    %c0_i32_0 = arith.constant 0 : i32
    %c0_i32_1 = arith.constant 0 : i32
    return %c0_i32, %c0_i32_0 : i32, i32
  }
  func.func @transform_2(%arg0: i32, %arg1: i32) -> (i32, i32) {
    %c0_i32 = arith.constant 0 : i32
    %c0_i32_0 = arith.constant 0 : i32
    %c0_i32_1 = arith.constant 0 : i32
    return %c0_i32, %c0_i32_0 : i32, i32
  }
  func.func @transform_3(%arg0: i32, %arg1: i32) -> (i32, i32) {
    %c0_i32 = arith.constant 0 : i32
    %c0_i32_0 = arith.constant 0 : i32
    %c0_i32_1 = arith.constant 0 : i32
    return %c0_i32, %c0_i32_0 : i32, i32
  }
  func.func @transform_4(%arg0: i32, %arg1: i32) -> (i32, i32, i32) {
    %c0_i32 = arith.constant 0 : i32
    %c0_i32_0 = arith.constant 0 : i32
    return %arg1, %arg0, %c0_i32 : i32, i32, i32
  }
  func.func @transform_5(%arg0: i32, %arg1: i32) -> (i32, i32) {
    %c0_i32 = arith.constant 0 : i32
    %c0_i32_0 = arith.constant 0 : i32
    return %arg0, %c0_i32 : i32, i32
  }
  func.func @transform_6(%arg0: i32, %arg1: i32) -> (i32, i32) {
    %c0_i32 = arith.constant 0 : i32
    %c0_i32_0 = arith.constant 0 : i32
    return %arg0, %c0_i32 : i32, i32
  }
}

</mosaic_0001>

<llo_original>
// kernel: lmu_forward.1
$region0: #{lmu_forward.1}
  #allocation0 [shape = 'u32[]', space=smem, size = 0x4, offset = 0x4, fixed_abs, tag = 'smem constant byte address 0x4 - core index']
  #allocation1 [shape = 'u32[144,128]{1,0:T(1,128)}', space=vmem, size = 0x12000, scoped, tag = 'internal scratch']
  #allocation2 [shape = 'f32[8,64]{1,0:T(8,128)}', space=vmem, size = 0x1000, scoped, tag = 'scratch operand']
  %s0 = inlined_call_operand.vmem [shape: f32[8,8,64], index: 0, kind: input, shape index: {}]
  %s1 = inlined_call_operand.vmem [shape: f32[64,64], index: 1, kind: input, shape index: {}]
  %s2 = inlined_call_operand.vmem [shape: f32[64,7], index: 2, kind: input, shape index: {}]
  %s3 = inlined_call_operand.vmem [shape: f32[1,7], index: 3, kind: input, shape index: {}]
  %s4 = inlined_call_operand.vmem [shape: f32[8,8,32], index: 4, kind: output, shape index: {0}]
  %s5 = inlined_call_operand.hbm [shape: f32[8,7], index: 5, kind: output, shape index: {1}]
  %s6 = inlined_call_operand.vmem [shape: f32[8,64], index: 6, kind: output, shape index: {2}]
  %7 = xla_tuple %s4, %s5, %s6
  %s8 = sld [smem:[#allocation0]]
  $region50: #{lmu_forward.1} parent=0
    _
  %s10 = ssub.s32 1, %s8
  %s11 = scalar_select 0, %s10, %s8
  $region1: #{lmu_forward.1} parent=0
    #allocation3 [shape = 'u8[4096]{0}', space=vmem, size = 0x1000, scoped, tag = 'output window, operand 1, single buffered']
    #allocation4 [shape = 's32[1]{0}', space=sflag, size = 0x4, scoped, tag = 'scoped memory for lmu_forward.1']
    %12 = vsyncpa [#allocation4], 0
    // Predicated region
    $region2: #{lmu_forward.1} parent=1 // pred_check
      _
    $region3: #{lmu_forward.1} parent=1 // pred_check_branch
      %14 = sbr.rel (0) target = $region5
    $region4: #{lmu_forward.1} parent=1 // pred_region
      _
    $region5: #{lmu_forward.1} parent=1 // pred_fallthru
      _
    // Predicated region
    $region6: #{lmu_forward.1} parent=1 // pred_check
      _
    $region7: #{lmu_forward.1} parent=1 // pred_check_branch
      %16 = sbr.rel (0) target = $region9
    $region8: #{lmu_forward.1} parent=1 // pred_region
      _
    $region9: #{lmu_forward.1} parent=1 // pred_fallthru
      _
    // Predicated region
    $region10: #{lmu_forward.1} parent=1 // pred_check
      _
    $region11: #{lmu_forward.1} parent=1 // pred_check_branch
      %18 = sbr.rel (0) target = $region13
    $region12: #{lmu_forward.1} parent=1 // pred_region
      _
    $region13: #{lmu_forward.1} parent=1 // pred_fallthru
      _
    // Predicated region
    $region14: #{lmu_forward.1} parent=1 // pred_check
      _
    $region15: #{lmu_forward.1} parent=1 // pred_check_branch
      %20 = sbr.rel (0) target = $region17
    $region16: #{lmu_forward.1} parent=1 // pred_region
      _
    $region17: #{lmu_forward.1} parent=1 // pred_fallthru
      _
    %p21 = scmp.eq.s32.totalorder 0, 0
    // Predicated region
    $region18: #{lmu_forward.1} parent=1 // pred_check
      %p22 = pneg %p21
    $region19: #{lmu_forward.1} parent=1 // pred_check_branch
      %24 = sbr.rel (%p22) target = $region21
    $region20: #{lmu_forward.1} parent=1 // pred_region
      %vm25 = vcmask 523264
      %26 = vst.msk [vmem:[#allocation2] sm:$0xff] %vm25, 0.0
    $region21: #{lmu_forward.1} parent=1 // pred_fallthru
      _
    %v27 = vld [vmem:[%s1] sm:$0xff]
    %v28 = vld [vmem:[%s1 + $0x8] sm:$0xff]
    %v29 = vld [vmem:[%s1 + $0x10] sm:$0xff]
    %v30 = vld [vmem:[%s1 + $0x18] sm:$0xff]
    %v31 = vld [vmem:[%s1 + $0x20] sm:$0xff]
    %v32 = vld [vmem:[%s1 + $0x28] sm:$0xff]
    %v33 = vld [vmem:[%s1 + $0x30] sm:$0xff]
    %v34 = vld [vmem:[%s1 + $0x38] sm:$0xff]
    %v35 = vlaneseq
    %v36 = vand.u32 %v35, 127
    %vm37 = vcmp.lt.s32.totalorder %v36, 32
    %v38 = vld [vmem:[#allocation2] sm:$0xff]
    %v39 = vld [vmem:[%s0] sm:$0xff]
    %vm40 = vcmask 523264
    %v42 = vsel %vm40, %v38, 0
    %44 = vmatprep.subr.mxu0 0.0
    %v45 = vand.u32 %v27, 4294901760
    %46 = vmatpush1.msra.mxu0 %v45
    %47 = vmatprep.subr.mxu0 0.0
    %v48 = vand.u32 %v28, 4294901760
    %49 = vmatpush1.msra.mxu0 %v48
    %50 = vmatprep.subr.mxu0 0.0
    %v51 = vand.u32 %v29, 4294901760
    %52 = vmatpush1.msra.mxu0 %v51
    %53 = vmatprep.subr.mxu0 0.0
    %v54 = vand.u32 %v30, 4294901760
    %55 = vmatpush1.msra.mxu0 %v54
    %56 = vmatprep.subr.mxu0 0.0
    %v57 = vand.u32 %v31, 4294901760
    %58 = vmatpush1.msra.mxu0 %v57
    %59 = vmatprep.subr.mxu0 0.0
    %v60 = vand.u32 %v32, 4294901760
    %61 = vmatpush1.msra.mxu0 %v60
    %62 = vmatprep.subr.mxu0 0.0
    %v63 = vand.u32 %v33, 4294901760
    %64 = vmatpush1.msra.mxu0 %v63
    %65 = vmatprep.subr.mxu0 0.0
    %v66 = vand.u32 %v34, 4294901760
    %67 = vmatpush1.msra.mxu0 %v66
    %68 = vmatprep.subr.mxu0 0.0
    %69 = vmatpush1.msra.mxu0 0.0
    %70 = vmatprep.subr.mxu0 0.0
    %71 = vmatpush1.msra.mxu0 0.0
    %72 = vmatprep.subr.mxu0 0.0
    %73 = vmatpush1.msra.mxu0 0.0
    %74 = vmatprep.subr.mxu0 0.0
    %75 = vmatpush1.msra.mxu0 0.0
    %76 = vmatprep.subr.mxu0 0.0
    %77 = vmatpush1.msra.mxu0 0.0
    %78 = vmatprep.subr.mxu0 0.0
    %79 = vmatpush1.msra.mxu0 0.0
    %80 = vmatprep.subr.mxu0 0.0
    %81 = vmatpush1.msra.mxu0 0.0
    %82 = vmatprep.subr.mxu0 0.0
    %83 = vmatpush1.msra.mxu0 0.0
    %84 = vmatprep.subr.mxu0 0.0
    %85 = vmatpush1.msra.mxu0 0.0
    %86 = vmatprep.subr.mxu0 0.0
    %87 = vmatpush1.msra.mxu0 0.0
    %88 = vmatprep.subr.mxu0 0.0
    %89 = vmatpush1.msra.mxu0 0.0
    %90 = vmatprep.subr.mxu0 0.0
    %91 = vmatpush1.msra.mxu0 0.0
    %92 = vmatprep.subr.mxu0 0.0
    %93 = vmatpush1.msra.mxu0 0.0
    %94 = vmatprep.subr.mxu0 0.0
    %95 = vmatpush1.msra.mxu0 0.0
    %96 = vmatprep.subr.mxu0 0.0
    %97 = vmatpush1.msra.mxu0 0.0
    %98 = vmatprep.subr.mxu0 0.0
    %99 = vmatpush1.msra.mxu0 0.0
    %100 = vmatprep.subr.mxu0 0.0
    %101 = vmatpush1.msra.mxu0 0.0
    %102 = vmatprep.subr.mxu0 0.0
    %103 = vmatpush1.msra.mxu0 0.0
    %104 = vmatprep.subr.mxu0 0.0
    %105 = vmatpush1.msra.mxu0 0.0
    %106 = vmatprep.subr.mxu0 0.0
    %107 = vmatpush1.msra.mxu0 0.0
    %108 = vmatprep.subr.mxu0 0.0
    %109 = vmatpush1.msra.mxu0 0.0
    %110 = vmatprep.subr.mxu0 0.0
    %111 = vmatpush1.msra.mxu0 0.0
    %112 = vmatprep.subr.mxu0 0.0
    %113 = vmatpush1.msra.mxu0 0.0
    %114 = vmatprep.subr.mxu0 0.0
    %115 = vmatpush1.msra.mxu0 0.0
    %116 = vmatprep.mubr.f32.mxu0 0.0
    %v117 = vand.u32 %v42, 4294901760
    %v118 = vsub.f32 %v42, %v117
    %v119 = vand.u32 %v118, 4294901760
    %v120 = vsub.f32 %v118, %v119
    %v121 = vand.u32 %v120, 4294901760
    %122 = vmatmul.mubr.f32.gmra.mrb[0].mxu0 %v121
    %v123 = vpop.f32.mrb[0].mxu0
    %v124 = vadd.f32 0.0, %v123
    %v125 = vpop.f32.mrb[0].mxu0
    %126 = vdwg.mxu0
    %127 = vmatprep.subr.mxu0 0.0
    %v128 = vand.u32 %v27, 4294901760
    %v129 = vsub.f32 %v27, %v128
    %v130 = vand.u32 %v129, 4294901760
    %v131 = vsub.f32 %v129, %v130
    %v132 = vand.u32 %v131, 4294901760
    %133 = vmatpush1.msra.mxu0 %v132
    %134 = vmatprep.subr.mxu0 0.0
    %v135 = vand.u32 %v28, 4294901760
    %v136 = vsub.f32 %v28, %v135
    %v137 = vand.u32 %v136, 4294901760
    %v138 = vsub.f32 %v136, %v137
    %v139 = vand.u32 %v138, 4294901760
    %140 = vmatpush1.msra.mxu0 %v139
    %141 = vmatprep.subr.mxu0 0.0
    %v142 = vand.u32 %v29, 4294901760
    %v143 = vsub.f32 %v29, %v142
    %v144 = vand.u32 %v143, 4294901760
    %v145 = vsub.f32 %v143, %v144
    %v146 = vand.u32 %v145, 4294901760
    %147 = vmatpush1.msra.mxu0 %v146
    %148 = vmatprep.subr.mxu0 0.0
    %v149 = vand.u32 %v30, 4294901760
    %v150 = vsub.f32 %v30, %v149
    %v151 = vand.u32 %v150, 4294901760
    %v152 = vsub.f32 %v150, %v151
    %v153 = vand.u32 %v152, 4294901760
    %154 = vmatpush1.msra.mxu0 %v153
    %155 = vmatprep.subr.mxu0 0.0
    %v156 = vand.u32 %v31, 4294901760
    %v157 = vsub.f32 %v31, %v156
    %v158 = vand.u32 %v157, 4294901760
    %v159 = vsub.f32 %v157, %v158
    %v160 = vand.u32 %v159, 4294901760
    %161 = vmatpush1.msra.mxu0 %v160
    %162 = vmatprep.subr.mxu0 0.0
    %v163 = vand.u32 %v32, 4294901760
    %v164 = vsub.f32 %v32, %v163
    %v165 = vand.u32 %v164, 4294901760
    %v166 = vsub.f32 %v164, %v165
    %v167 = vand.u32 %v166, 4294901760
    %168 = vmatpush1.msra.mxu0 %v167
    %169 = vmatprep.subr.mxu0 0.0
    %v170 = vand.u32 %v33, 4294901760
    %v171 = vsub.f32 %v33, %v170
    %v172 = vand.u32 %v171, 4294901760
    %v173 = vsub.f32 %v171, %v172
    %v174 = vand.u32 %v173, 4294901760
    %175 = vmatpush1.msra.mxu0 %v174
    %176 = vmatprep.subr.mxu0 0.0
    %v177 = vand.u32 %v34, 4294901760
    %v178 = vsub.f32 %v34, %v177
    %v179 = vand.u32 %v178, 4294901760
    %v180 = vsub.f32 %v178, %v179
    %v181 = vand.u32 %v180, 4294901760
    %182 = vmatpush1.msra.mxu0 %v181
    %183 = vmatprep.subr.mxu0 0.0
    %184 = vmatpush1.msra.mxu0 0.0
    %185 = vmatprep.subr.mxu0 0.0
    %186 = vmatpush1.msra.mxu0 0.0
    %187 = vmatprep.subr.mxu0 0.0
    %188 = vmatpush1.msra.mxu0 0.0
    %189 = vmatprep.subr.mxu0 0.0
    %190 = vmatpush1.msra.mxu0 0.0
    %191 = vmatprep.subr.mxu0 0.0
    %192 = vmatpush1.msra.mxu0 0.0
    %193 = vmatprep.subr.mxu0 0.0
    %194 = vmatpush1.msra.mxu0 0.0
    %195 = vmatprep.subr.mxu0 0.0
    %196 = vmatpush1.msra.mxu0 0.0
    %197 = vmatprep.subr.mxu0 0.0
    %198 = vmatpush1.msra.mxu0 0.0
    %199 = vmatprep.subr.mxu0 0.0
    %200 = vmatpush1.msra.mxu0 0.0
    %201 = vmatprep.subr.mxu0 0.0
    %202 = vmatpush1.msra.mxu0 0.0
    %203 = vmatprep.subr.mxu0 0.0
    %204 = vmatpush1.msra.mxu0 0.0
    %205 = vmatprep.subr.mxu0 0.0
    %206 = vmatpush1.msra.mxu0 0.0
    %207 = vmatprep.subr.mxu0 0.0
    %208 = vmatpush1.msra.mxu0 0.0
    %209 = vmatprep.subr.mxu0 0.0
    %210 = vmatpush1.msra.mxu0 0.0
    %211 = vmatprep.subr.mxu0 0.0
    %212 = vmatpush1.msra.mxu0 0.0
    %213 = vmatprep.subr.mxu0 0.0
    %214 = vmatpush1.msra.mxu0 0.0
    %215 = vmatprep.subr.mxu0 0.0
    %216 = vmatpush1.msra.mxu0 0.0
    %217 = vmatprep.subr.mxu0 0.0
    %218 = vmatpush1.msra.mxu0 0.0
    %219 = vmatprep.subr.mxu0 0.0
    %220 = vmatpush1.msra.mxu0 0.0
    %221 = vmatprep.subr.mxu0 0.0
    %222 = vmatpush1.msra.mxu0 0.0
    %223 = vmatprep.subr.mxu0 0.0
    %224 = vmatpush1.msra.mxu0 0.0
    %225 = vmatprep.subr.mxu0 0.0
    %226 = vmatpush1.msra.mxu0 0.0
    %227 = vmatprep.subr.mxu0 0.0
    %228 = vmatpush1.msra.mxu0 0.0
    %229 = vmatprep.subr.mxu0 0.0
    %230 = vmatpush1.msra.mxu0 0.0
    %231 = vmatprep.mubr.f32.mxu0 0.0
    %v232 = vand.u32 %v42, 4294901760
    %233 = vmatmul.mubr.f32.gmra.mrb[0].mxu0 %v232
    %v234 = vpop.f32.mrb[0].mxu0
    %v235 = vadd.f32 %v124, %v234
    %v236 = vpop.f32.mrb[0].mxu0
    %237 = vdwg.mxu0
    %238 = vmatprep.subr.mxu0 0.0
    %v239 = vand.u32 %v27, 4294901760
    %v240 = vsub.f32 %v27, %v239
    %241 = vmatpush1.msra.mxu0 %v240
    %242 = vmatprep.subr.mxu0 0.0
    %v243 = vand.u32 %v28, 4294901760
    %v244 = vsub.f32 %v28, %v243
    %245 = vmatpush1.msra.mxu0 %v244
    %246 = vmatprep.subr.mxu0 0.0
    %v247 = vand.u32 %v29, 4294901760
    %v248 = vsub.f32 %v29, %v247
    %249 = vmatpush1.msra.mxu0 %v248
    %250 = vmatprep.subr.mxu0 0.0
    %v251 = vand.u32 %v30, 4294901760
    %v252 = vsub.f32 %v30, %v251
    %253 = vmatpush1.msra.mxu0 %v252
    %254 = vmatprep.subr.mxu0 0.0
    %v255 = vand.u32 %v31, 4294901760
    %v256 = vsub.f32 %v31, %v255
    %257 = vmatpush1.msra.mxu0 %v256
    %258 = vmatprep.subr.mxu0 0.0
    %v259 = vand.u32 %v32, 4294901760
    %v260 = vsub.f32 %v32, %v259
    %261 = vmatpush1.msra.mxu0 %v260
    %262 = vmatprep.subr.mxu0 0.0
    %v263 = vand.u32 %v33, 4294901760
    %v264 = vsub.f32 %v33, %v263
    %265 = vmatpush1.msra.mxu0 %v264
    %266 = vmatprep.subr.mxu0 0.0
    %v267 = vand.u32 %v34, 4294901760
    %v268 = vsub.f32 %v34, %v267
    %269 = vmatpush1.msra.mxu0 %v268
    %270 = vmatprep.subr.mxu0 0.0
    %271 = vmatpush1.msra.mxu0 0.0
    %272 = vmatprep.subr.mxu0 0.0
    %273 = vmatpush1.msra.mxu0 0.0
    %274 = vmatprep.subr.mxu0 0.0
    %275 = vmatpush1.msra.mxu0 0.0
    %276 = vmatprep.subr.mxu0 0.0
    %277 = vmatpush1.msra.mxu0 0.0
    %278 = vmatprep.subr.mxu0 0.0
    %279 = vmatpush1.msra.mxu0 0.0
    %280 = vmatprep.subr.mxu0 0.0
    %281 = vmatpush1.msra.mxu0 0.0
    %282 = vmatprep.subr.mxu0 0.0
    %283 = vmatpush1.msra.mxu0 0.0
    %284 = vmatprep.subr.mxu0 0.0
    %285 = vmatpush1.msra.mxu0 0.0
    %286 = vmatprep.subr.mxu0 0.0
    %287 = vmatpush1.msra.mxu0 0.0
    %288 = vmatprep.subr.mxu0 0.0
    %289 = vmatpush1.msra.mxu0 0.0
    %290 = vmatprep.subr.mxu0 0.0
    %291 = vmatpush1.msra.mxu0 0.0
    %292 = vmatprep.subr.mxu0 0.0
    %293 = vmatpush1.msra.mxu0 0.0
    %294 = vmatprep.subr.mxu0 0.0
    %295 = vmatpush1.msra.mxu0 0.0
    %296 = vmatprep.subr.mxu0 0.0
    %297 = vmatpush1.msra.mxu0 0.0
    %298 = vmatprep.subr.mxu0 0.0
    %299 = vmatpush1.msra.mxu0 0.0
    %300 = vmatprep.subr.mxu0 0.0
    %301 = vmatpush1.msra.mxu0 0.0
    %302 = vmatprep.subr.mxu0 0.0
    %303 = vmatpush1.msra.mxu0 0.0
    %304 = vmatprep.subr.mxu0 0.0
    %305 = vmatpush1.msra.mxu0 0.0
    %306 = vmatprep.subr.mxu0 0.0
    %307 = vmatpush1.msra.mxu0 0.0
    %308 = vmatprep.subr.mxu0 0.0
    %309 = vmatpush1.msra.mxu0 0.0
    %310 = vmatprep.subr.mxu0 0.0
    %311 = vmatpush1.msra.mxu0 0.0
    %312 = vmatprep.subr.mxu0 0.0
    %313 = vmatpush1.msra.mxu0 0.0
    %314 = vmatprep.subr.mxu0 0.0
    %315 = vmatpush1.msra.mxu0 0.0
    %316 = vmatprep.subr.mxu0 0.0
    %317 = vmatpush1.msra.mxu0 0.0
    %318 = vmatprep.mubr.f32.mxu0 0.0
    %v319 = vand.u32 %v42, 4294901760
    %v320 = vsub.f32 %v42, %v319
    %321 = vmatmul.mubr.f32.gmra.mrb[0].mxu0 %v320
    %v322 = vpop.f32.mrb[0].mxu0
    %v323 = vadd.f32 %v235, %v322
    %v324 = vpop.f32.mrb[0].mxu0
    %325 = vdwg.mxu0
    %326 = vmatprep.subr.mxu0 0.0
    %v327 = vand.u32 %v27, 4294901760
    %328 = vmatpush1.msra.mxu0 %v327
    %329 = vmatprep.subr.mxu0 0.0
    %v330 = vand.u32 %v28, 4294901760
    %331 = vmatpush1.msra.mxu0 %v330
    %332 = vmatprep.subr.mxu0 0.0
    %v333 = vand.u32 %v29, 4294901760
    %334 = vmatpush1.msra.mxu0 %v333
    %335 = vmatprep.subr.mxu0 0.0
    %v336 = vand.u32 %v30, 4294901760
    %337 = vmatpush1.msra.mxu0 %v336
    %338 = vmatprep.subr.mxu0 0.0
    %v339 = vand.u32 %v31, 4294901760
    %340 = vmatpush1.msra.mxu0 %v339
    %341 = vmatprep.subr.mxu0 0.0
    %v342 = vand.u32 %v32, 4294901760
    %343 = vmatpush1.msra.mxu0 %v342
    %344 = vmatprep.subr.mxu0 0.0
    %v345 = vand.u32 %v33, 4294901760
    %346 = vmatpush1.msra.mxu0 %v345
    %347 = vmatprep.subr.mxu0 0.0
    %v348 = vand.u32 %v34, 4294901760
    %349 = vmatpush1.msra.mxu0 %v348
    %350 = vmatprep.subr.mxu0 0.0
    %351 = vmatpush1.msra.mxu0 0.0
    %352 = vmatprep.subr.mxu0 0.0
    %353 = vmatpush1.msra.mxu0 0.0
    %354 = vmatprep.subr.mxu0 0.0
    %355 = vmatpush1.msra.mxu0 0.0
    %356 = vmatprep.subr.mxu0 0.0
    %357 = vmatpush1.msra.mxu0 0.0
    %358 = vmatprep.subr.mxu0 0.0
    %359 = vmatpush1.msra.mxu0 0.0
    %360 = vmatprep.subr.mxu0 0.0
    %361 = vmatpush1.msra.mxu0 0.0
    %362 = vmatprep.subr.mxu0 0.0
    %363 = vmatpush1.msra.mxu0 0.0
    %364 = vmatprep.subr.mxu0 0.0
    %365 = vmatpush1.msra.mxu0 0.0
    %366 = vmatprep.subr.mxu0 0.0
    %367 = vmatpush1.msra.mxu0 0.0
    %368 = vmatprep.subr.mxu0 0.0
    %369 = vmatpush1.msra.mxu0 0.0
    %370 = vmatprep.subr.mxu0 0.0
    %371 = vmatpush1.msra.mxu0 0.0
    %372 = vmatprep.subr.mxu0 0.0
    %373 = vmatpush1.msra.mxu0 0.0
    %374 = vmatprep.subr.mxu0 0.0
    %375 = vmatpush1.msra.mxu0 0.0
    %376 = vmatprep.subr.mxu0 0.0
    %377 = vmatpush1.msra.mxu0 0.0
    %378 = vmatprep.subr.mxu0 0.0
    %379 = vmatpush1.msra.mxu0 0.0
    %380 = vmatprep.subr.mxu0 0.0
    %381 = vmatpush1.msra.mxu0 0.0
    %382 = vmatprep.subr.mxu0 0.0
    %383 = vmatpush1.msra.mxu0 0.0
    %384 = vmatprep.subr.mxu0 0.0
    %385 = vmatpush1.msra.mxu0 0.0
    %386 = vmatprep.subr.mxu0 0.0
    %387 = vmatpush1.msra.mxu0 0.0
    %388 = vmatprep.subr.mxu0 0.0
    %389 = vmatpush1.msra.mxu0 0.0
    %390 = vmatprep.subr.mxu0 0.0
    %391 = vmatpush1.msra.mxu0 0.0
    %392 = vmatprep.subr.mxu0 0.0
    %393 = vmatpush1.msra.mxu0 0.0
    %394 = vmatprep.subr.mxu0 0.0
    %395 = vmatpush1.msra.mxu0 0.0
    %396 = vmatprep.subr.mxu0 0.0
    %397 = vmatpush1.msra.mxu0 0.0
    %398 = vmatprep.mubr.f32.mxu0 0.0
    %v399 = vand.u32 %v42, 4294901760
    %v400 = vsub.f32 %v42, %v399
    %v401 = vand.u32 %v400, 4294901760
    %402 = vmatmul.mubr.f32.gmra.mrb[0].mxu0 %v401
    %v403 = vpop.f32.mrb[0].mxu0
    %v404 = vadd.f32 %v323, %v403
    %v405 = vpop.f32.mrb[0].mxu0
    %406 = vdwg.mxu0
    %407 = vmatprep.subr.mxu0 0.0
    %v408 = vand.u32 %v27, 4294901760
    %v409 = vsub.f32 %v27, %v408
    %v410 = vand.u32 %v409, 4294901760
    %411 = vmatpush1.msra.mxu0 %v410
    %412 = vmatprep.subr.mxu0 0.0
    %v413 = vand.u32 %v28, 4294901760
    %v414 = vsub.f32 %v28, %v413
    %v415 = vand.u32 %v414, 4294901760
    %416 = vmatpush1.msra.mxu0 %v415
    %417 = vmatprep.subr.mxu0 0.0
    %v418 = vand.u32 %v29, 4294901760
    %v419 = vsub.f32 %v29, %v418
    %v420 = vand.u32 %v419, 4294901760
    %421 = vmatpush1.msra.mxu0 %v420
    %422 = vmatprep.subr.mxu0 0.0
    %v423 = vand.u32 %v30, 4294901760
    %v424 = vsub.f32 %v30, %v423
    %v425 = vand.u32 %v424, 4294901760
    %426 = vmatpush1.msra.mxu0 %v425
    %427 = vmatprep.subr.mxu0 0.0
    %v428 = vand.u32 %v31, 4294901760
    %v429 = vsub.f32 %v31, %v428
    %v430 = vand.u32 %v429, 4294901760
    %431 = vmatpush1.msra.mxu0 %v430
    %432 = vmatprep.subr.mxu0 0.0
    %v433 = vand.u32 %v32, 4294901760
    %v434 = vsub.f32 %v32, %v433
    %v435 = vand.u32 %v434, 4294901760
    %436 = vmatpush1.msra.mxu0 %v435
    %437 = vmatprep.subr.mxu0 0.0
    %v438 = vand.u32 %v33, 4294901760
    %v439 = vsub.f32 %v33, %v438
    %v440 = vand.u32 %v439, 4294901760
    %441 = vmatpush1.msra.mxu0 %v440
    %442 = vmatprep.subr.mxu0 0.0
    %v443 = vand.u32 %v34, 4294901760
    %v444 = vsub.f32 %v34, %v443
    %v445 = vand.u32 %v444, 4294901760
    %446 = vmatpush1.msra.mxu0 %v445
    %447 = vmatprep.subr.mxu0 0.0
    %448 = vmatpush1.msra.mxu0 0.0
    %449 = vmatprep.subr.mxu0 0.0
    %450 = vmatpush1.msra.mxu0 0.0
    %451 = vmatprep.subr.mxu0 0.0
    %452 = vmatpush1.msra.mxu0 0.0
    %453 = vmatprep.subr.mxu0 0.0
    %454 = vmatpush1.msra.mxu0 0.0
    %455 = vmatprep.subr.mxu0 0.0
    %456 = vmatpush1.msra.mxu0 0.0
    %457 = vmatprep.subr.mxu0 0.0
    %458 = vmatpush1.msra.mxu0 0.0
    %459 = vmatprep.subr.mxu0 0.0
    %460 = vmatpush1.msra.mxu0 0.0
    %461 = vmatprep.subr.mxu0 0.0
    %462 = vmatpush1.msra.mxu0 0.0
    %463 = vmatprep.subr.mxu0 0.0
    %464 = vmatpush1.msra.mxu0 0.0
    %465 = vmatprep.subr.mxu0 0.0
    %466 = vmatpush1.msra.mxu0 0.0
    %467 = vmatprep.subr.mxu0 0.0
    %468 = vmatpush1.msra.mxu0 0.0
    %469 = vmatprep.subr.mxu0 0.0
    %470 = vmatpush1.msra.mxu0 0.0
    %471 = vmatprep.subr.mxu0 0.0
    %472 = vmatpush1.msra.mxu0 0.0
    %473 = vmatprep.subr.mxu0 0.0
    %474 = vmatpush1.msra.mxu0 0.0
    %475 = vmatprep.subr.mxu0 0.0
    %476 = vmatpush1.msra.mxu0 0.0
    %477 = vmatprep.subr.mxu0 0.0
    %478 = vmatpush1.msra.mxu0 0.0
    %479 = vmatprep.subr.mxu0 0.0
    %480 = vmatpush1.msra.mxu0 0.0
    %481 = vmatprep.subr.mxu0 0.0
    %482 = vmatpush1.msra.mxu0 0.0
    %483 = vmatprep.subr.mxu0 0.0
    %484 = vmatpush1.msra.mxu0 0.0
    %485 = vmatprep.subr.mxu0 0.0
    %486 = vmatpush1.msra.mxu0 0.0
    %487 = vmatprep.subr.mxu0 0.0
    %488 = vmatpush1.msra.mxu0 0.0
    %489 = vmatprep.subr.mxu0 0.0
    %490 = vmatpush1.msra.mxu0 0.0
    %491 = vmatprep.subr.mxu0 0.0
    %492 = vmatpush1.msra.mxu0 0.0
    %493 = vmatprep.subr.mxu0 0.0
    %494 = vmatpush1.msra.mxu0 0.0
    %495 = vmatprep.mubr.f32.mxu0 0.0
    %v496 = vand.u32 %v42, 4294901760
    %497 = vmatmul.mubr.f32.gmra.mrb[0].mxu0 %v496
    %v498 = vpop.f32.mrb[0].mxu0
    %v499 = vadd.f32 %v404, %v498
    %v500 = vpop.f32.mrb[0].mxu0
    %501 = vdwg.mxu0
    %502 = vmatprep.subr.mxu0 0.0
    %v503 = vand.u32 %v27, 4294901760
    %504 = vmatpush1.msra.mxu0 %v503
    %505 = vmatprep.subr.mxu0 0.0
    %v506 = vand.u32 %v28, 4294901760
    %507 = vmatpush1.msra.mxu0 %v506
    %508 = vmatprep.subr.mxu0 0.0
    %v509 = vand.u32 %v29, 4294901760
    %510 = vmatpush1.msra.mxu0 %v509
    %511 = vmatprep.subr.mxu0 0.0
    %v512 = vand.u32 %v30, 4294901760
    %513 = vmatpush1.msra.mxu0 %v512
    %514 = vmatprep.subr.mxu0 0.0
    %v515 = vand.u32 %v31, 4294901760
    %516 = vmatpush1.msra.mxu0 %v515
    %517 = vmatprep.subr.mxu0 0.0
    %v518 = vand.u32 %v32, 4294901760
    %519 = vmatpush1.msra.mxu0 %v518
    %520 = vmatprep.subr.mxu0 0.0
    %v521 = vand.u32 %v33, 4294901760
    %522 = vmatpush1.msra.mxu0 %v521
    %523 = vmatprep.subr.mxu0 0.0
    %v524 = vand.u32 %v34, 4294901760
    %525 = vmatpush1.msra.mxu0 %v524
    %526 = vmatprep.subr.mxu0 0.0
    %527 = vmatpush1.msra.mxu0 0.0
    %528 = vmatprep.subr.mxu0 0.0
    %529 = vmatpush1.msra.mxu0 0.0
    %530 = vmatprep.subr.mxu0 0.0
    %531 = vmatpush1.msra.mxu0 0.0
    %532 = vmatprep.subr.mxu0 0.0
    %533 = vmatpush1.msra.mxu0 0.0
    %534 = vmatprep.subr.mxu0 0.0
    %535 = vmatpush1.msra.mxu0 0.0
    %536 = vmatprep.subr.mxu0 0.0
    %537 = vmatpush1.msra.mxu0 0.0
    %538 = vmatprep.subr.mxu0 0.0
    %539 = vmatpush1.msra.mxu0 0.0
    %540 = vmatprep.subr.mxu0 0.0
    %541 = vmatpush1.msra.mxu0 0.0
    %542 = vmatprep.subr.mxu0 0.0
    %543 = vmatpush1.msra.mxu0 0.0
    %544 = vmatprep.subr.mxu0 0.0
    %545 = vmatpush1.msra.mxu0 0.0
    %546 = vmatprep.subr.mxu0 0.0
    %547 = vmatpush1.msra.mxu0 0.0
    %548 = vmatprep.subr.mxu0 0.0
    %549 = vmatpush1.msra.mxu0 0.0
    %550 = vmatprep.subr.mxu0 0.0
    %551 = vmatpush1.msra.mxu0 0.0
    %552 = vmatprep.subr.mxu0 0.0
    %553 = vmatpush1.msra.mxu0 0.0
    %554 = vmatprep.subr.mxu0 0.0
    %555 = vmatpush1.msra.mxu0 0.0
    %556 = vmatprep.subr.mxu0 0.0
    %557 = vmatpush1.msra.mxu0 0.0
    %558 = vmatprep.subr.mxu0 0.0
    %559 = vmatpush1.msra.mxu0 0.0
    %560 = vmatprep.subr.mxu0 0.0
    %561 = vmatpush1.msra.mxu0 0.0
    %562 = vmatprep.subr.mxu0 0.0
    %563 = vmatpush1.msra.mxu0 0.0
    %564 = vmatprep.subr.mxu0 0.0
    %565 = vmatpush1.msra.mxu0 0.0
    %566 = vmatprep.subr.mxu0 0.0
    %567 = vmatpush1.msra.mxu0 0.0
    %568 = vmatprep.subr.mxu0 0.0
    %569 = vmatpush1.msra.mxu0 0.0
    %570 = vmatprep.subr.mxu0 0.0
    %571 = vmatpush1.msra.mxu0 0.0
    %572 = vmatprep.subr.mxu0 0.0
    %573 = vmatpush1.msra.mxu0 0.0
    %574 = vmatprep.mubr.f32.mxu0 0.0
    %v575 = vand.u32 %v42, 4294901760
    %576 = vmatmul.mubr.f32.gmra.mrb[0].mxu0 %v575
    %v577 = vpop.f32.mrb[0].mxu0
    %v578 = vadd.f32 %v499, %v577
    %v579 = vpop.f32.mrb[0].mxu0
    %580 = vdwg.mxu0
    %v581 = vadd.f32 %v39, %v578
    %v582 = vtanh.pop %v581
    %v583 = vsel %vm37, 1, 0
    %vm584 = vcmp.eq.s32.totalorder %v583, 1
    %v585 = vsel %vm584, %v582, %v581
    %vm586 = vcmask 261120
    %587 = vst.msk [vmem:[%s4] sm:$0xff] %vm586, %v585
    %s588 = scalar_lea.vmem %s0, 8
    %v589 = vld [vmem:[%s588] sm:$0xff]
    %v591 = vsel %vm40, %v585, 0
    %593 = vmatprep.subr.mxu0 0.0
    %v594 = vand.u32 %v27, 4294901760
    %595 = vmatpush1.msra.mxu0 %v594
    %596 = vmatprep.subr.mxu0 0.0
    %v597 = vand.u32 %v28, 4294901760
    %598 = vmatpush1.msra.mxu0 %v597
    %599 = vmatprep.subr.mxu0 0.0
    %v600 = vand.u32 %v29, 4294901760
    %601 = vmatpush1.msra.mxu0 %v600
    %602 = vmatprep.subr.mxu0 0.0
    %v603 = vand.u32 %v30, 4294901760
    %604 = vmatpush1.msra.mxu0 %v603
    %605 = vmatprep.subr.mxu0 0.0
    %v606 = vand.u32 %v31, 4294901760
    %607 = vmatpush1.msra.mxu0 %v606
    %608 = vmatprep.subr.mxu0 0.0
    %v609 = vand.u32 %v32, 4294901760
    %610 = vmatpush1.msra.mxu0 %v609
    %611 = vmatprep.subr.mxu0 0.0
    %v612 = vand.u32 %v33, 4294901760
    %613 = vmatpush1.msra.mxu0 %v612
    %614 = vmatprep.subr.mxu0 0.0
    %v615 = vand.u32 %v34, 4294901760
    %616 = vmatpush1.msra.mxu0 %v615
    %617 = vmatprep.subr.mxu0 0.0
    %618 = vmatpush1.msra.mxu0 0.0
    %619 = vmatprep.subr.mxu0 0.0
    %620 = vmatpush1.msra.mxu0 0.0
    %621 = vmatprep.subr.mxu0 0.0
    %622 = vmatpush1.msra.mxu0 0.0
    %623 = vmatprep.subr.mxu0 0.0
    %624 = vmatpush1.msra.mxu0 0.0
    %625 = vmatprep.subr.mxu0 0.0
    %626 = vmatpush1.msra.mxu0 0.0
    %627 = vmatprep.subr.mxu0 0.0
    %628 = vmatpush1.msra.mxu0 0.0
    %629 = vmatprep.subr.mxu0 0.0
    %630 = vmatpush1.msra.mxu0 0.0
    %631 = vmatprep.subr.mxu0 0.0
    %632 = vmatpush1.msra.mxu0 0.0
    %633 = vmatprep.subr.mxu0 0.0
    %634 = vmatpush1.msra.mxu0 0.0
    %635 = vmatprep.subr.mxu0 0.0
    %636 = vmatpush1.msra.mxu0 0.0
    %637 = vmatprep.subr.mxu0 0.0
    %638 = vmatpush1.msra.mxu0 0.0
    %639 = vmatprep.subr.mxu0 0.0
    %640 = vmatpush1.msra.mxu0 0.0
    %641 = vmatprep.subr.mxu0 0.0
    %642 = vmatpush1.msra.mxu0 0.0
    %643 = vmatprep.subr.mxu0 0.0
    %644 = vmatpush1.msra.mxu0 0.0
    %645 = vmatprep.subr.mxu0 0.0
    %646 = vmatpush1.msra.mxu0 0.0
    %647 = vmatprep.subr.mxu0 0.0
    %648 = vmatpush1.msra.mxu0 0.0
    %649 = vmatprep.subr.mxu0 0.0
    %650 = vmatpush1.msra.mxu0 0.0
    %651 = vmatprep.subr.mxu0 0.0
    %652 = vmatpush1.msra.mxu0 0.0
    %653 = vmatprep.subr.mxu0 0.0
    %654 = vmatpush1.msra.mxu0 0.0
    %655 = vmatprep.subr.mxu0 0.0
    %656 = vmatpush1.msra.mxu0 0.0
    %657 = vmatprep.subr.mxu0 0.0
    %658 = vmatpush1.msra.mxu0 0.0
    %659 = vmatprep.subr.mxu0 0.0
    %660 = vmatpush1.msra.mxu0 0.0
    %661 = vmatprep.subr.mxu0 0.0
    %662 = vmatpush1.msra.mxu0 0.0
    %663 = vmatprep.subr.mxu0 0.0
    %664 = vmatpush1.msra.mxu0 0.0
    %665 = vmatprep.mubr.f32.mxu0 0.0
    %v666 = vand.u32 %v591, 4294901760
    %v667 = vsub.f32 %v591, %v666
    %v668 = vand.u32 %v667, 4294901760
    %v669 = vsub.f32 %v667, %v668
    %v670 = vand.u32 %v669, 4294901760
    %671 = vmatmul.mubr.f32.gmra.mrb[0].mxu0 %v670
    %v672 = vpop.f32.mrb[0].mxu0
    %v673 = vadd.f32 0.0, %v672
    %v674 = vpop.f32.mrb[0].mxu0
    %675 = vdwg.mxu0
    %676 = vmatprep.subr.mxu0 0.0
    %v677 = vand.u32 %v27, 4294901760
    %v678 = vsub.f32 %v27, %v677
    %v679 = vand.u32 %v678, 4294901760
    %v680 = vsub.f32 %v678, %v679
    %v681 = vand.u32 %v680, 4294901760
    %682 = vmatpush1.msra.mxu0 %v681
    %683 = vmatprep.subr.mxu0 0.0
    %v684 = vand.u32 %v28, 4294901760
    %v685 = vsub.f32 %v28, %v684
    %v686 = vand.u32 %v685, 4294901760
    %v687 = vsub.f32 %v685, %v686
    %v688 = vand.u32 %v687, 4294901760
    %689 = vmatpush1.msra.mxu0 %v688
    %690 = vmatprep.subr.mxu0 0.0
    %v691 = vand.u32 %v29, 4294901760
    %v692 = vsub.f32 %v29, %v691
    %v693 = vand.u32 %v692, 4294901760
    %v694 = vsub.f32 %v692, %v693
    %v695 = vand.u32 %v694, 4294901760
    %696 = vmatpush1.msra.mxu0 %v695
    %697 = vmatprep.subr.mxu0 0.0
    %v698 = vand.u32 %v30, 4294901760
    %v699 = vsub.f32 %v30, %v698
    %v700 = vand.u32 %v699, 4294901760
    %v701 = vsub.f32 %v699, %v700
    %v702 = vand.u32 %v701, 4294901760
    %703 = vmatpush1.msra.mxu0 %v702
    %704 = vmatprep.subr.mxu0 0.0
    %v705 = vand.u32 %v31, 4294901760
    %v706 = vsub.f32 %v31, %v705
    %v707 = vand.u32 %v706, 4294901760
    %v708 = vsub.f32 %v706, %v707
    %v709 = vand.u32 %v708, 4294901760
    %710 = vmatpush1.msra.mxu0 %v709
    %711 = vmatprep.subr.mxu0 0.0
    %v712 = vand.u32 %v32, 4294901760
    %v713 = vsub.f32 %v32, %v712
    %v714 = vand.u32 %v713, 4294901760
    %v715 = vsub.f32 %v713, %v714
    %v716 = vand.u32 %v715, 4294901760
    %717 = vmatpush1.msra.mxu0 %v716
    %718 = vmatprep.subr.mxu0 0.0
    %v719 = vand.u32 %v33, 4294901760
    %v720 = vsub.f32 %v33, %v719
    %v721 = vand.u32 %v720, 4294901760
    %v722 = vsub.f32 %v720, %v721
    %v723 = vand.u32 %v722, 4294901760
    %724 = vmatpush1.msra.mxu0 %v723
    %725 = vmatprep.subr.mxu0 0.0
    %v726 = vand.u32 %v34, 4294901760
    %v727 = vsub.f32 %v34, %v726
    %v728 = vand.u32 %v727, 4294901760
    %v729 = vsub.f32 %v727, %v728
    %v730 = vand.u32 %v729, 4294901760
    %731 = vmatpush1.msra.mxu0 %v730
    %732 = vmatprep.subr.mxu0 0.0
    %733 = vmatpush1.msra.mxu0 0.0
    %734 = vmatprep.subr.mxu0 0.0
    %735 = vmatpush1.msra.mxu0 0.0
    %736 = vmatprep.subr.mxu0 0.0
    %737 = vmatpush1.msra.mxu0 0.0
    %738 = vmatprep.subr.mxu0 0.0
    %739 = vmatpush1.msra.mxu0 0.0
    %740 = vmatprep.subr.mxu0 0.0
    %741 = vmatpush1.msra.mxu0 0.0
    %742 = vmatprep.subr.mxu0 0.0
    %743 = vmatpush1.msra.mxu0 0.0
    %744 = vmatprep.subr.mxu0 0.0
    %745 = vmatpush1.msra.mxu0 0.0
    %746 = vmatprep.subr.mxu0 0.0
    %747 = vmatpush1.msra.mxu0 0.0
    %748 = vmatprep.subr.mxu0 0.0
    %749 = vmatpush1.msra.mxu0 0.0
    %750 = vmatprep.subr.mxu0 0.0
    %751 = vmatpush1.msra.mxu0 0.0
    %752 = vmatprep.subr.mxu0 0.0
    %753 = vmatpush1.msra.mxu0 0.0
    %754 = vmatprep.subr.mxu0 0.0
    %755 = vmatpush1.msra.mxu0 0.0
    %756 = vmatprep.subr.mxu0 0.0
    %757 = vmatpush1.msra.mxu0 0.0
    %758 = vmatprep.subr.mxu0 0.0
    %759 = vmatpush1.msra.mxu0 0.0
    %760 = vmatprep.subr.mxu0 0.0
    %761 = vmatpush1.msra.mxu0 0.0
    %762 = vmatprep.subr.mxu0 0.0
    %763 = vmatpush1.msra.mxu0 0.0
    %764 = vmatprep.subr.mxu0 0.0
    %765 = vmatpush1.msra.mxu0 0.0
    %766 = vmatprep.subr.mxu0 0.0
    %767 = vmatpush1.msra.mxu0 0.0
    %768 = vmatprep.subr.mxu0 0.0
    %769 = vmatpush1.msra.mxu0 0.0
    %770 = vmatprep.subr.mxu0 0.0
    %771 = vmatpush1.msra.mxu0 0.0
    %772 = vmatprep.subr.mxu0 0.0
    %773 = vmatpush1.msra.mxu0 0.0
    %774 = vmatprep.subr.mxu0 0.0
    %775 = vmatpush1.msra.mxu0 0.0
    %776 = vmatprep.subr.mxu0 0.0
    %777 = vmatpush1.msra.mxu0 0.0
    %778 = vmatprep.subr.mxu0 0.0
    %779 = vmatpush1.msra.mxu0 0.0
    %780 = vmatprep.mubr.f32.mxu0 0.0
    %v781 = vand.u32 %v591, 4294901760
    %782 = vmatmul.mubr.f32.gmra.mrb[0].mxu0 %v781
    %v783 = vpop.f32.mrb[0].mxu0
    %v784 = vadd.f32 %v673, %v783
    %v785 = vpop.f32.mrb[0].mxu0
    %786 = vdwg.mxu0
    %787 = vmatprep.subr.mxu0 0.0
    %v788 = vand.u32 %v27, 4294901760
    %v789 = vsub.f32 %v27, %v788
    %790 = vmatpush1.msra.mxu0 %v789
    %791 = vmatprep.subr.mxu0 0.0
    %v792 = vand.u32 %v28, 4294901760
    %v793 = vsub.f32 %v28, %v792
    %794 = vmatpush1.msra.mxu0 %v793
    %795 = vmatprep.subr.mxu0 0.0
    %v796 = vand.u32 %v29, 4294901760
    %v797 = vsub.f32 %v29, %v796
    %798 = vmatpush1.msra.mxu0 %v797
    %799 = vmatprep.subr.mxu0 0.0
    %v800 = vand.u32 %v30, 4294901760
    %v801 = vsub.f32 %v30, %v800
    %802 = vmatpush1.msra.mxu0 %v801
    %803 = vmatprep.subr.mxu0 0.0
    %v804 = vand.u32 %v31, 4294901760
    %v805 = vsub.f32 %v31, %v804
    %806 = vmatpush1.msra.mxu0 %v805
    %807 = vmatprep.subr.mxu0 0.0
    %v808 = vand.u32 %v32, 4294901760
    %v809 = vsub.f32 %v32, %v808
    %810 = vmatpush1.msra.mxu0 %v809
    %811 = vmatprep.subr.mxu0 0.0
    %v812 = vand.u32 %v33, 4294901760
    %v813 = vsub.f32 %v33, %v812
    %814 = vmatpush1.msra.mxu0 %v813
    %815 = vmatprep.subr.mxu0 0.0
    %v816 = vand.u32 %v34, 4294901760
    %v817 = vsub.f32 %v34, %v816
    %818 = vmatpush1.msra.mxu0 %v817
    %819 = vmatprep.subr.mxu0 0.0
    %820 = vmatpush1.msra.mxu0 0.0
    %821 = vmatprep.subr.mxu0 0.0
    %822 = vmatpush1.msra.mxu0 0.0
    %823 = vmatprep.subr.mxu0 0.0
    %824 = vmatpush1.msra.mxu0 0.0
    %825 = vmatprep.subr.mxu0 0.0
    %826 = vmatpush1.msra.mxu0 0.0
    %827 = vmatprep.subr.mxu0 0.0
    %828 = vmatpush1.msra.mxu0 0.0
    %829 = vmatprep.subr.mxu0 0.0
    %830 = vmatpush1.msra.mxu0 0.0
    %831 = vmatprep.subr.mxu0 0.0
    %832 = vmatpush1.msra.mxu0 0.0
    %833 = vmatprep.subr.mxu0 0.0
    %834 = vmatpush1.msra.mxu0 0.0
    %835 = vmatprep.subr.mxu0 0.0
    %836 = vmatpush1.msra.mxu0 0.0
    %837 = vmatprep.subr.mxu0 0.0
    %838 = vmatpush1.msra.mxu0 0.0
    %839 = vmatprep.subr.mxu0 0.0
    %840 = vmatpush1.msra.mxu0 0.0
    %841 = vmatprep.subr.mxu0 0.0
    %842 = vmatpush1.msra.mxu0 0.0
    %843 = vmatprep.subr.mxu0 0.0
    %844 = vmatpush1.msra.mxu0 0.0
    %845 = vmatprep.subr.mxu0 0.0
    %846 = vmatpush1.msra.mxu0 0.0
    %847 = vmatprep.subr.mxu0 0.0
    %848 = vmatpush1.msra.mxu0 0.0
    %849 = vmatprep.subr.mxu0 0.0
    %850 = vmatpush1.msra.mxu0 0.0
    %851 = vmatprep.subr.mxu0 0.0
    %852 = vmatpush1.msra.mxu0 0.0
    %853 = vmatprep.subr.mxu0 0.0
    %854 = vmatpush1.msra.mxu0 0.0
    %855 = vmatprep.subr.mxu0 0.0
    %856 = vmatpush1.msra.mxu0 0.0
    %857 = vmatprep.subr.mxu0 0.0
    %858 = vmatpush1.msra.mxu0 0.0
    %859 = vmatprep.subr.mxu0 0.0
    %860 = vmatpush1.msra.mxu0 0.0
    %861 = vmatprep.subr.mxu0 0.0
    %862 = vmatpush1.msra.mxu0 0.0
    %863 = vmatprep.subr.mxu0 0.0
    %864 = vmatpush1.msra.mxu0 0.0
    %865 = vmatprep.subr.mxu0 0.0
    %866 = vmatpush1.msra.mxu0 0.0
    %867 = vmatprep.mubr.f32.mxu0 0.0
    %v868 = vand.u32 %v591, 4294901760
    %v869 = vsub.f32 %v591, %v868
    %870 = vmatmul.mubr.f32.gmra.mrb[0].mxu0 %v869
    %v871 = vpop.f32.mrb[0].mxu0
    %v872 = vadd.f32 %v784, %v871
    %v873 = vpop.f32.mrb[0].mxu0
    %874 = vdwg.mxu0
    %875 = vmatprep.subr.mxu0 0.0
    %v876 = vand.u32 %v27, 4294901760
    %877 = vmatpush1.msra.mxu0 %v876
    %878 = vmatprep.subr.mxu0 0.0
    %v879 = vand.u32 %v28, 4294901760
    %880 = vmatpush1.msra.mxu0 %v879
    %881 = vmatprep.subr.mxu0 0.0
    %v882 = vand.u32 %v29, 4294901760
    %883 = vmatpush1.msra.mxu0 %v882
    %884 = vmatprep.subr.mxu0 0.0
    %v885 = vand.u32 %v30, 4294901760
    %886 = vmatpush1.msra.mxu0 %v885
    %887 = vmatprep.subr.mxu0 0.0
    %v888 = vand.u32 %v31, 4294901760
    %889 = vmatpush1.msra.mxu0 %v888
    %890 = vmatprep.subr.mxu0 0.0
    %v891 = vand.u32 %v32, 4294901760
    %892 = vmatpush1.msra.mxu0 %v891
    %893 = vmatprep.subr.mxu0 0.0
    %v894 = vand.u32 %v33, 4294901760
    %895 = vmatpush1.msra.mxu0 %v894
    %896 = vmatprep.subr.mxu0 0.0
    %v897 = vand.u32 %v34, 4294901760
    %898 = vmatpush1.msra.mxu0 %v897
    %899 = vmatprep.subr.mxu0 0.0
    %900 = vmatpush1.msra.mxu0 0.0
    %901 = vmatprep.subr.mxu0 0.0
    %902 = vmatpush1.msra.mxu0 0.0
    %903 = vmatprep.subr.mxu0 0.0
    %904 = vmatpush1.msra.mxu0 0.0
    %905 = vmatprep.subr.mxu0 0.0
    %906 = vmatpush1.msra.mxu0 0.0
    %907 = vmatprep.subr.mxu0 0.0
    %908 = vmatpush1.msra.mxu0 0.0
    %909 = vmatprep.subr.mxu0 0.0
    %910 = vmatpush1.msra.mxu0 0.0
    %911 = vmatprep.subr.mxu0 0.0
    %912 = vmatpush1.msra.mxu0 0.0
    %913 = vmatprep.subr.mxu0 0.0
    %914 = vmatpush1.msra.mxu0 0.0
    %915 = vmatprep.subr.mxu0 0.0
    %916 = vmatpush1.msra.mxu0 0.0
    %917 = vmatprep.subr.mxu0 0.0
    %918 = vmatpush1.msra.mxu0 0.0
    %919 = vmatprep.subr.mxu0 0.0
    %920 = vmatpush1.msra.mxu0 0.0
    %921 = vmatprep.subr.mxu0 0.0
    %922 = vmatpush1.msra.mxu0 0.0
    %923 = vmatprep.subr.mxu0 0.0
    %924 = vmatpush1.msra.mxu0 0.0
    %925 = vmatprep.subr.mxu0 0.0
    %926 = vmatpush1.msra.mxu0 0.0
    %927 = vmatprep.subr.mxu0 0.0
    %928 = vmatpush1.msra.mxu0 0.0
    %929 = vmatprep.subr.mxu0 0.0
    %930 = vmatpush1.msra.mxu0 0.0
    %931 = vmatprep.subr.mxu0 0.0
    %932 = vmatpush1.msra.mxu0 0.0
    %933 = vmatprep.subr.mxu0 0.0
    %934 = vmatpush1.msra.mxu0 0.0
    %935 = vmatprep.subr.mxu0 0.0
    %936 = vmatpush1.msra.mxu0 0.0
    %937 = vmatprep.subr.mxu0 0.0
    %938 = vmatpush1.msra.mxu0 0.0
    %939 = vmatprep.subr.mxu0 0.0
    %940 = vmatpush1.msra.mxu0 0.0
    %941 = vmatprep.subr.mxu0 0.0
    %942 = vmatpush1.msra.mxu0 0.0
    %943 = vmatprep.subr.mxu0 0.0
    %944 = vmatpush1.msra.mxu0 0.0
    %945 = vmatprep.subr.mxu0 0.0
    %946 = vmatpush1.msra.mxu0 0.0
    %947 = vmatprep.mubr.f32.mxu0 0.0
    %v948 = vand.u32 %v591, 4294901760
    %v949 = vsub.f32 %v591, %v948
    %v950 = vand.u32 %v949, 4294901760
    %951 = vmatmul.mubr.f32.gmra.mrb[0].mxu0 %v950
    %v952 = vpop.f32.mrb[0].mxu0
    %v953 = vadd.f32 %v872, %v952
    %v954 = vpop.f32.mrb[0].mxu0
    %955 = vdwg.mxu0
    %956 = vmatprep.subr.mxu0 0.0
    %v957 = vand.u32 %v27, 4294901760
    %v958 = vsub.f32 %v27, %v957
    %v959 = vand.u32 %v958, 4294901760
    %960 = vmatpush1.msra.mxu0 %v959
    %961 = vmatprep.subr.mxu0 0.0
    %v962 = vand.u32 %v28, 4294901760
    %v963 = vsub.f32 %v28, %v962
    %v964 = vand.u32 %v963, 4294901760
    %965 = vmatpush1.msra.mxu0 %v964
    %966 = vmatprep.subr.mxu0 0.0
    %v967 = vand.u32 %v29, 4294901760
    %v968 = vsub.f32 %v29, %v967
    %v969 = vand.u32 %v968, 4294901760
    %970 = vmatpush1.msra.mxu0 %v969
    %971 = vmatprep.subr.mxu0 0.0
    %v972 = vand.u32 %v30, 4294901760
    %v973 = vsub.f32 %v30, %v972
    %v974 = vand.u32 %v973, 4294901760
    %975 = vmatpush1.msra.mxu0 %v974
    %976 = vmatprep.subr.mxu0 0.0
    %v977 = vand.u32 %v31, 4294901760
    %v978 = vsub.f32 %v31, %v977
    %v979 = vand.u32 %v978, 4294901760
    %980 = vmatpush1.msra.mxu0 %v979
    %981 = vmatprep.subr.mxu0 0.0
    %v982 = vand.u32 %v32, 4294901760
    %v983 = vsub.f32 %v32, %v982
    %v984 = vand.u32 %v983, 4294901760
    %985 = vmatpush1.msra.mxu0 %v984
    %986 = vmatprep.subr.mxu0 0.0
    %v987 = vand.u32 %v33, 4294901760
    %v988 = vsub.f32 %v33, %v987
    %v989 = vand.u32 %v988, 4294901760
    %990 = vmatpush1.msra.mxu0 %v989
    %991 = vmatprep.subr.mxu0 0.0
    %v992 = vand.u32 %v34, 4294901760
    %v993 = vsub.f32 %v34, %v992
    %v994 = vand.u32 %v993, 4294901760
    %995 = vmatpush1.msra.mxu0 %v994
    %996 = vmatprep.subr.mxu0 0.0
    %997 = vmatpush1.msra.mxu0 0.0
    %998 = vmatprep.subr.mxu0 0.0
    %999 = vmatpush1.msra.mxu0 0.0
    %1000 = vmatprep.subr.mxu0 0.0
    %1001 = vmatpush1.msra.mxu0 0.0
    %1002 = vmatprep.subr.mxu0 0.0
    %1003 = vmatpush1.msra.mxu0 0.0
    %1004 = vmatprep.subr.mxu0 0.0
    %1005 = vmatpush1.msra.mxu0 0.0
    %1006 = vmatprep.subr.mxu0 0.0
    %1007 = vmatpush1.msra.mxu0 0.0
    %1008 = vmatprep.subr.mxu0 0.0
    %1009 = vmatpush1.msra.mxu0 0.0
    %1010 = vmatprep.subr.mxu0 0.0
    %1011 = vmatpush1.msra.mxu0 0.0
    %1012 = vmatprep.subr.mxu0 0.0
    %1013 = vmatpush1.msra.mxu0 0.0
    %1014 = vmatprep.subr.mxu0 0.0
    %1015 = vmatpush1.msra.mxu0 0.0
    %1016 = vmatprep.subr.mxu0 0.0
    %1017 = vmatpush1.msra.mxu0 0.0
    %1018 = vmatprep.subr.mxu0 0.0
    %1019 = vmatpush1.msra.mxu0 0.0
    %1020 = vmatprep.subr.mxu0 0.0
    %1021 = vmatpush1.msra.mxu0 0.0
    %1022 = vmatprep.subr.mxu0 0.0
    %1023 = vmatpush1.msra.mxu0 0.0
    %1024 = vmatprep.subr.mxu0 0.0
    %1025 = vmatpush1.msra.mxu0 0.0
    %1026 = vmatprep.subr.mxu0 0.0
    %1027 = vmatpush1.msra.mxu0 0.0
    %1028 = vmatprep.subr.mxu0 0.0
    %1029 = vmatpush1.msra.mxu0 0.0
    %1030 = vmatprep.subr.mxu0 0.0
    %1031 = vmatpush1.msra.mxu0 0.0
    %1032 = vmatprep.subr.mxu0 0.0
    %1033 = vmatpush1.msra.mxu0 0.0
    %1034 = vmatprep.subr.mxu0 0.0
    %1035 = vmatpush1.msra.mxu0 0.0
    %1036 = vmatprep.subr.mxu0 0.0
    %1037 = vmatpush1.msra.mxu0 0.0
    %1038 = vmatprep.subr.mxu0 0.0
    %1039 = vmatpush1.msra.mxu0 0.0
    %1040 = vmatprep.subr.mxu0 0.0
    %1041 = vmatpush1.msra.mxu0 0.0
    %1042 = vmatprep.subr.mxu0 0.0
    %1043 = vmatpush1.msra.mxu0 0.0
    %1044 = vmatprep.mubr.f32.mxu0 0.0
    %v1045 = vand.u32 %v591, 4294901760
    %1046 = vmatmul.mubr.f32.gmra.mrb[0].mxu0 %v1045
    %v1047 = vpop.f32.mrb[0].mxu0
    %v1048 = vadd.f32 %v953, %v1047
    %v1049 = vpop.f32.mrb[0].mxu0
    %1050 = vdwg.mxu0
    %1051 = vmatprep.subr.mxu0 0.0
    %v1052 = vand.u32 %v27, 4294901760
    %1053 = vmatpush1.msra.mxu0 %v1052
    %1054 = vmatprep.subr.mxu0 0.0
    %v1055 = vand.u32 %v28, 4294901760
    %1056 = vmatpush1.msra.mxu0 %v1055
    %1057 = vmatprep.subr.mxu0 0.0
    %v1058 = vand.u32 %v29, 4294901760
    %1059 = vmatpush1.msra.mxu0 %v1058
    %1060 = vmatprep.subr.mxu0 0.0
    %v1061 = vand.u32 %v30, 4294901760
    %1062 = vmatpush1.msra.mxu0 %v1061
    %1063 = vmatprep.subr.mxu0 0.0
    %v1064 = vand.u32 %v31, 4294901760
    %1065 = vmatpush1.msra.mxu0 %v1064
    %1066 = vmatprep.subr.mxu0 0.0
    %v1067 = vand.u32 %v32, 4294901760
    %1068 = vmatpush1.msra.mxu0 %v1067
    %1069 = vmatprep.subr.mxu0 0.0
    %v1070 = vand.u32 %v33, 4294901760
    %1071 = vmatpush1.msra.mxu0 %v1070
    %1072 = vmatprep.subr.mxu0 0.0
    %v1073 = vand.u32 %v34, 4294901760
    %1074 = vmatpush1.msra.mxu0 %v1073
    %1075 = vmatprep.subr.mxu0 0.0
    %1076 = vmatpush1.msra.mxu0 0.0
    %1077 = vmatprep.subr.mxu0 0.0
    %1078 = vmatpush1.msra.mxu0 0.0
    %1079 = vmatprep.subr.mxu0 0.0
    %1080 = vmatpush1.msra.mxu0 0.0
    %1081 = vmatprep.subr.mxu0 0.0
    %1082 = vmatpush1.msra.mxu0 0.0
    %1083 = vmatprep.subr.mxu0 0.0
    %1084 = vmatpush1.msra.mxu0 0.0
    %1085 = vmatprep.subr.mxu0 0.0
    %1086 = vmatpush1.msra.mxu0 0.0
    %1087 = vmatprep.subr.mxu0 0.0
    %1088 = vmatpush1.msra.mxu0 0.0
    %1089 = vmatprep.subr.mxu0 0.0
    %1090 = vmatpush1.msra.mxu0 0.0
    %1091 = vmatprep.subr.mxu0 0.0
    %1092 = vmatpush1.msra.mxu0 0.0
    %1093 = vmatprep.subr.mxu0 0.0
    %1094 = vmatpush1.msra.mxu0 0.0
    %1095 = vmatprep.subr.mxu0 0.0
    %1096 = vmatpush1.msra.mxu0 0.0
    %1097 = vmatprep.subr.mxu0 0.0
    %1098 = vmatpush1.msra.mxu0 0.0
    %1099 = vmatprep.subr.mxu0 0.0
    %1100 = vmatpush1.msra.mxu0 0.0
    %1101 = vmatprep.subr.mxu0 0.0
    %1102 = vmatpush1.msra.mxu0 0.0
    %1103 = vmatprep.subr.mxu0 0.0
    %1104 = vmatpush1.msra.mxu0 0.0
    %1105 = vmatprep.subr.mxu0 0.0
    %1106 = vmatpush1.msra.mxu0 0.0
    %1107 = vmatprep.subr.mxu0 0.0
    %1108 = vmatpush1.msra.mxu0 0.0
    %1109 = vmatprep.subr.mxu0 0.0
    %1110 = vmatpush1.msra.mxu0 0.0
    %1111 = vmatprep.subr.mxu0 0.0
    %1112 = vmatpush1.msra.mxu0 0.0
    %1113 = vmatprep.subr.mxu0 0.0
    %1114 = vmatpush1.msra.mxu0 0.0
    %1115 = vmatprep.subr.mxu0 0.0
    %1116 = vmatpush1.msra.mxu0 0.0
    %1117 = vmatprep.subr.mxu0 0.0
    %1118 = vmatpush1.msra.mxu0 0.0
    %1119 = vmatprep.subr.mxu0 0.0
    %1120 = vmatpush1.msra.mxu0 0.0
    %1121 = vmatprep.subr.mxu0 0.0
    %1122 = vmatpush1.msra.mxu0 0.0
    %1123 = vmatprep.mubr.f32.mxu0 0.0
    %v1124 = vand.u32 %v591, 4294901760
    %1125 = vmatmul.mubr.f32.gmra.mrb[0].mxu0 %v1124
    %v1126 = vpop.f32.mrb[0].mxu0
    %v1127 = vadd.f32 %v1048, %v1126
    %v1128 = vpop.f32.mrb[0].mxu0
    %1129 = vdwg.mxu0
    %v1130 = vadd.f32 %v589, %v1127
    %v1131 = vtanh.pop %v1130
    %v1132 = vsel %vm584, %v1131, %v1130
    %s1133 = scalar_lea.vmem %s4, 8
    %1134 = vst.msk [vmem:[%s1133] sm:$0xff] %vm586, %v1132
    %s1135 = scalar_lea.vmem %s0, 16
    %v1136 = vld [vmem:[%s1135] sm:$0xff]
    %v1138 = vsel %vm40, %v1132, 0
    %1140 = vmatprep.subr.mxu0 0.0
    %v1141 = vand.u32 %v27, 4294901760
    %1142 = vmatpush1.msra.mxu0 %v1141
    %1143 = vmatprep.subr.mxu0 0.0
    %v1144 = vand.u32 %v28, 4294901760
    %1145 = vmatpush1.msra.mxu0 %v1144
    %1146 = vmatprep.subr.mxu0 0.0
    %v1147 = vand.u32 %v29, 4294901760
    %1148 = vmatpush1.msra.mxu0 %v1147
    %1149 = vmatprep.subr.mxu0 0.0
    %v1150 = vand.u32 %v30, 4294901760
    %1151 = vmatpush1.msra.mxu0 %v1150
    %1152 = vmatprep.subr.mxu0 0.0
    %v1153 = vand.u32 %v31, 4294901760
    %1154 = vmatpush1.msra.mxu0 %v1153
    %1155 = vmatprep.subr.mxu0 0.0
    %v1156 = vand.u32 %v32, 4294901760
    %1157 = vmatpush1.msra.mxu0 %v1156
    %1158 = vmatprep.subr.mxu0 0.0
    %v1159 = vand.u32 %v33, 4294901760
    %1160 = vmatpush1.msra.mxu0 %v1159
    %1161 = vmatprep.subr.mxu0 0.0
    %v1162 = vand.u32 %v34, 4294901760
    %1163 = vmatpush1.msra.mxu0 %v1162
    %1164 = vmatprep.subr.mxu0 0.0
    %1165 = vmatpush1.msra.mxu0 0.0
    %1166 = vmatprep.subr.mxu0 0.0
    %1167 = vmatpush1.msra.mxu0 0.0
    %1168 = vmatprep.subr.mxu0 0.0
    %1169 = vmatpush1.msra.mxu0 0.0
    %1170 = vmatprep.subr.mxu0 0.0
    %1171 = vmatpush1.msra.mxu0 0.0
    %1172 = vmatprep.subr.mxu0 0.0
    %1173 = vmatpush1.msra.mxu0 0.0
    %1174 = vmatprep.subr.mxu0 0.0
    %1175 = vmatpush1.msra.mxu0 0.0
    %1176 = vmatprep.subr.mxu0 0.0
    %1177 = vmatpush1.msra.mxu0 0.0
    %1178 = vmatprep.subr.mxu0 0.0
    %1179 = vmatpush1.msra.mxu0 0.0
    %1180 = vmatprep.subr.mxu0 0.0
    %1181 = vmatpush1.msra.mxu0 0.0
    %1182 = vmatprep.subr.mxu0 0.0
    %1183 = vmatpush1.msra.mxu0 0.0
    %1184 = vmatprep.subr.mxu0 0.0
    %1185 = vmatpush1.msra.mxu0 0.0
    %1186 = vmatprep.subr.mxu0 0.0
    %1187 = vmatpush1.msra.mxu0 0.0
    %1188 = vmatprep.subr.mxu0 0.0
    %1189 = vmatpush1.msra.mxu0 0.0
    %1190 = vmatprep.subr.mxu0 0.0
    %1191 = vmatpush1.msra.mxu0 0.0
    %1192 = vmatprep.subr.mxu0 0.0
    %1193 = vmatpush1.msra.mxu0 0.0
    %1194 = vmatprep.subr.mxu0 0.0
    %1195 = vmatpush1.msra.mxu0 0.0
    %1196 = vmatprep.subr.mxu0 0.0
    %1197 = vmatpush1.msra.mxu0 0.0
    %1198 = vmatprep.subr.mxu0 0.0
    %1199 = vmatpush1.msra.mxu0 0.0
    %1200 = vmatprep.subr.mxu0 0.0
    %1201 = vmatpush1.msra.mxu0 0.0
    %1202 = vmatprep.subr.mxu0 0.0
    %1203 = vmatpush1.msra.mxu0 0.0
    %1204 = vmatprep.subr.mxu0 0.0
    %1205 = vmatpush1.msra.mxu0 0.0
    %1206 = vmatprep.subr.mxu0 0.0
    %1207 = vmatpush1.msra.mxu0 0.0
    %1208 = vmatprep.subr.mxu0 0.0
    %1209 = vmatpush1.msra.mxu0 0.0
    %1210 = vmatprep.subr.mxu0 0.0
    %1211 = vmatpush1.msra.mxu0 0.0
    %1212 = vmatprep.mubr.f32.mxu0 0.0
    %v1213 = vand.u32 %v1138, 4294901760
    %v1214 = vsub.f32 %v1138, %v1213
    %v1215 = vand.u32 %v1214, 4294901760
    %v1216 = vsub.f32 %v1214, %v1215
    %v1217 = vand.u32 %v1216, 4294901760
    %1218 = vmatmul.mubr.f32.gmra.mrb[0].mxu0 %v1217
    %v1219 = vpop.f32.mrb[0].mxu0
    %v1220 = vadd.f32 0.0, %v1219
    %v1221 = vpop.f32.mrb[0].mxu0
    %1222 = vdwg.mxu0
    %1223 = vmatprep.subr.mxu0 0.0
    %v1224 = vand.u32 %v27, 4294901760
    %v1225 = vsub.f32 %v27, %v1224
    %v1226 = vand.u32 %v1225, 4294901760
    %v1227 = vsub.f32 %v1225, %v1226
    %v1228 = vand.u32 %v1227, 4294901760
    %1229 = vmatpush1.msra.mxu0 %v1228
    %1230 = vmatprep.subr.mxu0 0.0
    %v1231 = vand.u32 %v28, 4294901760
    %v1232 = vsub.f32 %v28, %v1231
    %v1233 = vand.u32 %v1232, 4294901760
    %v1234 = vsub.f32 %v1232, %v1233
    %v1235 = vand.u32 %v1234, 4294901760
    %1236 = vmatpush1.msra.mxu0 %v1235
    %1237 = vmatprep.subr.mxu0 0.0
    %v1238 = vand.u32 %v29, 4294901760
    %v1239 = vsub.f32 %v29, %v1238
    %v1240 = vand.u32 %v1239, 4294901760
    %v1241 = vsub.f32 %v1239, %v1240
    %v1242 = vand.u32 %v1241, 4294901760
    %1243 = vmatpush1.msra.mxu0 %v1242
    %1244 = vmatprep.subr.mxu0 0.0
    %v1245 = vand.u32 %v30, 4294901760
    %v1246 = vsub.f32 %v30, %v1245
    %v1247 = vand.u32 %v1246, 4294901760
    %v1248 = vsub.f32 %v1246, %v1247
    %v1249 = vand.u32 %v1248, 4294901760
    %1250 = vmatpush1.msra.mxu0 %v1249
    %1251 = vmatprep.subr.mxu0 0.0
    %v1252 = vand.u32 %v31, 4294901760
    %v1253 = vsub.f32 %v31, %v1252
    %v1254 = vand.u32 %v1253, 4294901760
    %v1255 = vsub.f32 %v1253, %v1254
    %v1256 = vand.u32 %v1255, 4294901760
    %1257 = vmatpush1.msra.mxu0 %v1256
    %1258 = vmatprep.subr.mxu0 0.0
    %v1259 = vand.u32 %v32, 4294901760
    %v1260 = vsub.f32 %v32, %v1259
    %v1261 = vand.u32 %v1260, 4294901760
    %v1262 = vsub.f32 %v1260, %v1261
    %v1263 = vand.u32 %v1262, 4294901760
    %1264 = vmatpush1.msra.mxu0 %v1263
    %1265 = vmatprep.subr.mxu0 0.0
    %v1266 = vand.u32 %v33, 4294901760
    %v1267 = vsub.f32 %v33, %v1266
    %v1268 = vand.u32 %v1267, 4294901760
    %v1269 = vsub.f32 %v1267, %v1268
    %v1270 = vand.u32 %v1269, 4294901760
    %1271 = vmatpush1.msra.mxu0 %v1270
    %1272 = vmatprep.subr.mxu0 0.0
    %v1273 = vand.u32 %v34, 4294901760
    %v1274 = vsub.f32 %v34, %v1273
    %v1275 = vand.u32 %v1274, 4294901760
    %v1276 = vsub.f32 %v1274, %v1275
    %v1277 = vand.u32 %v1276, 4294901760
    %1278 = vmatpush1.msra.mxu0 %v1277
    %1279 = vmatprep.subr.mxu0 0.0
    %1280 = vmatpush1.msra.mxu0 0.0
    %1281 = vmatprep.subr.mxu0 0.0
    %1282 = vmatpush1.msra.mxu0 0.0
    %1283 = vmatprep.subr.mxu0 0.0
    %1284 = vmatpush1.msra.mxu0 0.0
    %1285 = vmatprep.subr.mxu0 0.0
    %1286 = vmatpush1.msra.mxu0 0.0
    %1287 = vmatprep.subr.mxu0 0.0
    %1288 = vmatpush1.msra.mxu0 0.0
    %1289 = vmatprep.subr.mxu0 0.0
    %1290 = vmatpush1.msra.mxu0 0.0
    %1291 = vmatprep.subr.mxu0 0.0
    %1292 = vmatpush1.msra.mxu0 0.0
    %1293 = vmatprep.subr.mxu0 0.0
    %1294 = vmatpush1.msra.mxu0 0.0
    %1295 = vmatprep.subr.mxu0 0.0
    %1296 = vmatpush1.msra.mxu0 0.0
    %1297 = vmatprep.subr.mxu0 0.0
    %1298 = vmatpush1.msra.mxu0 0.0
    %1299 = vmatprep.subr.mxu0 0.0
    %1300 = vmatpush1.msra.mxu0 0.0
    %1301 = vmatprep.subr.mxu0 0.0
    %1302 = vmatpush1.msra.mxu0 0.0
    %1303 = vmatprep.subr.mxu0 0.0
    %1304 = vmatpush1.msra.mxu0 0.0
    %1305 = vmatprep.subr.mxu0 0.0
    %1306 = vmatpush1.msra.mxu0 0.0
    %1307 = vmatprep.subr.mxu0 0.0
    %1308 = vmatpush1.msra.mxu0 0.0
    %1309 = vmatprep.subr.mxu0 0.0
    %1310 = vmatpush1.msra.mxu0 0.0
    %1311 = vmatprep.subr.mxu0 0.0
    %1312 = vmatpush1.msra.mxu0 0.0
    %1313 = vmatprep.subr.mxu0 0.0
    %1314 = vmatpush1.msra.mxu0 0.0
    %1315 = vmatprep.subr.mxu0 0.0
    %1316 = vmatpush1.msra.mxu0 0.0
    %1317 = vmatprep.subr.mxu0 0.0
    %1318 = vmatpush1.msra.mxu0 0.0
    %1319 = vmatprep.subr.mxu0 0.0
    %1320 = vmatpush1.msra.mxu0 0.0
    %1321 = vmatprep.subr.mxu0 0.0
    %1322 = vmatpush1.msra.mxu0 0.0
    %1323 = vmatprep.subr.mxu0 0.0
    %1324 = vmatpush1.msra.mxu0 0.0
    %1325 = vmatprep.subr.mxu0 0.0
    %1326 = vmatpush1.msra.mxu0 0.0
    %1327 = vmatprep.mubr.f32.mxu0 0.0
    %v1328 = vand.u32 %v1138, 4294901760
    %1329 = vmatmul.mubr.f32.gmra.mrb[0].mxu0 %v1328
    %v1330 = vpop.f32.mrb[0].mxu0
    %v1331 = vadd.f32 %v1220, %v1330
    %v1332 = vpop.f32.mrb[0].mxu0
    %1333 = vdwg.mxu0
    %1334 = vmatprep.subr.mxu0 0.0
    %v1335 = vand.u32 %v27, 4294901760
    %v1336 = vsub.f32 %v27, %v1335
    %1337 = vmatpush1.msra.mxu0 %v1336
    %1338 = vmatprep.subr.mxu0 0.0
    %v1339 = vand.u32 %v28, 4294901760
    %v1340 = vsub.f32 %v28, %v1339
    %1341 = vmatpush1.msra.mxu0 %v1340
    %1342 = vmatprep.subr.mxu0 0.0
    %v1343 = vand.u32 %v29, 4294901760
    %v1344 = vsub.f32 %v29, %v1343
    %1345 = vmatpush1.msra.mxu0 %v1344
    %1346 = vmatprep.subr.mxu0 0.0
    %v1347 = vand.u32 %v30, 4294901760
    %v1348 = vsub.f32 %v30, %v1347
    %1349 = vmatpush1.msra.mxu0 %v1348
    %1350 = vmatprep.subr.mxu0 0.0
    %v1351 = vand.u32 %v31, 4294901760
    %v1352 = vsub.f32 %v31, %v1351
    %1353 = vmatpush1.msra.mxu0 %v1352
    %1354 = vmatprep.subr.mxu0 0.0
    %v1355 = vand.u32 %v32, 4294901760
    %v1356 = vsub.f32 %v32, %v1355
    %1357 = vmatpush1.msra.mxu0 %v1356
    %1358 = vmatprep.subr.mxu0 0.0
    %v1359 = vand.u32 %v33, 4294901760
    %v1360 = vsub.f32 %v33, %v1359
    %1361 = vmatpush1.msra.mxu0 %v1360
    %1362 = vmatprep.subr.mxu0 0.0
    %v1363 = vand.u32 %v34, 4294901760
    %v1364 = vsub.f32 %v34, %v1363
    %1365 = vmatpush1.msra.mxu0 %v1364
    %1366 = vmatprep.subr.mxu0 0.0
    %1367 = vmatpush1.msra.mxu0 0.0
    %1368 = vmatprep.subr.mxu0 0.0
    %1369 = vmatpush1.msra.mxu0 0.0
    %1370 = vmatprep.subr.mxu0 0.0
    %1371 = vmatpush1.msra.mxu0 0.0
    %1372 = vmatprep.subr.mxu0 0.0
    %1373 = vmatpush1.msra.mxu0 0.0
    %1374 = vmatprep.subr.mxu0 0.0
    %1375 = vmatpush1.msra.mxu0 0.0
    %1376 = vmatprep.subr.mxu0 0.0
    %1377 = vmatpush1.msra.mxu0 0.0
    %1378 = vmatprep.subr.mxu0 0.0
    %1379 = vmatpush1.msra.mxu0 0.0
    %1380 = vmatprep.subr.mxu0 0.0
    %1381 = vmatpush1.msra.mxu0 0.0
    %1382 = vmatprep.subr.mxu0 0.0
    %1383 = vmatpush1.msra.mxu0 0.0
    %1384 = vmatprep.subr.mxu0 0.0
    %1385 = vmatpush1.msra.mxu0 0.0
    %1386 = vmatprep.subr.mxu0 0.0
    %1387 = vmatpush1.msra.mxu0 0.0
    %1388 = vmatprep.subr.mxu0 0.0
    %1389 = vmatpush1.msra.mxu0 0.0
    %1390 = vmatprep.subr.mxu0 0.0
    %1391 = vmatpush1.msra.mxu0 0.0
    %1392 = vmatprep.subr.mxu0 0.0
    %1393 = vmatpush1.msra.mxu0 0.0
    %1394 = vmatprep.subr.mxu0 0.0
    %1395 = vmatpush1.msra.mxu0 0.0
    %1396 = vmatprep.subr.mxu0 0.0
    %1397 = vmatpush1.msra.mxu0 0.0
    %1398 = vmatprep.subr.mxu0 0.0
    %1399 = vmatpush1.msra.mxu0 0.0
    %1400 = vmatprep.subr.mxu0 0.0
    %1401 = vmatpush1.msra.mxu0 0.0
    %1402 = vmatprep.subr.mxu0 0.0
    %1403 = vmatpush1.msra.mxu0 0.0
    %1404 = vmatprep.subr.mxu0 0.0
    %1405 = vmatpush1.msra.mxu0 0.0
    %1406 = vmatprep.subr.mxu0 0.0
    %1407 = vmatpush1.msra.mxu0 0.0
    %1408 = vmatprep.subr.mxu0 0.0
    %1409 = vmatpush1.msra.mxu0 0.0
    %1410 = vmatprep.subr.mxu0 0.0
    %1411 = vmatpush1.msra.mxu0 0.0
    %1412 = vmatprep.subr.mxu0 0.0
    %1413 = vmatpush1.msra.mxu0 0.0
    %1414 = vmatprep.mubr.f32.mxu0 0.0
    %v1415 = vand.u32 %v1138, 4294901760
    %v1416 = vsub.f32 %v1138, %v1415
    %1417 = vmatmul.mubr.f32.gmra.mrb[0].mxu0 %v1416
    %v1418 = vpop.f32.mrb[0].mxu0
    %v1419 = vadd.f32 %v1331, %v1418
    %v1420 = vpop.f32.mrb[0].mxu0
    %1421 = vdwg.mxu0
    %1422 = vmatprep.subr.mxu0 0.0
    %v1423 = vand.u32 %v27, 4294901760
    %1424 = vmatpush1.msra.mxu0 %v1423
    %1425 = vmatprep.subr.mxu0 0.0
    %v1426 = vand.u32 %v28, 4294901760
    %1427 = vmatpush1.msra.mxu0 %v1426
    %1428 = vmatprep.subr.mxu0 0.0
    %v1429 = vand.u32 %v29, 4294901760
    %1430 = vmatpush1.msra.mxu0 %v1429
    %1431 = vmatprep.subr.mxu0 0.0
    %v1432 = vand.u32 %v30, 4294901760
    %1433 = vmatpush1.msra.mxu0 %v1432
    %1434 = vmatprep.subr.mxu0 0.0
    %v1435 = vand.u32 %v31, 4294901760
    %1436 = vmatpush1.msra.mxu0 %v1435
    %1437 = vmatprep.subr.mxu0 0.0
    %v1438 = vand.u32 %v32, 4294901760
    %1439 = vmatpush1.msra.mxu0 %v1438
    %1440 = vmatprep.subr.mxu0 0.0
    %v1441 = vand.u32 %v33, 4294901760
    %1442 = vmatpush1.msra.mxu0 %v1441
    %1443 = vmatprep.subr.mxu0 0.0
    %v1444 = vand.u32 %v34, 4294901760
    %1445 = vmatpush1.msra.mxu0 %v1444
    %1446 = vmatprep.subr.mxu0 0.0
    %1447 = vmatpush1.msra.mxu0 0.0
    %1448 = vmatprep.subr.mxu0 0.0
    %1449 = vmatpush1.msra.mxu0 0.0
    %1450 = vmatprep.subr.mxu0 0.0
    %1451 = vmatpush1.msra.mxu0 0.0
    %1452 = vmatprep.subr.mxu0 0.0
    %1453 = vmatpush1.msra.mxu0 0.0
    %1454 = vmatprep.subr.mxu0 0.0
    %1455 = vmatpush1.msra.mxu0 0.0
    %1456 = vmatprep.subr.mxu0 0.0
    %1457 = vmatpush1.msra.mxu0 0.0
    %1458 = vmatprep.subr.mxu0 0.0
    %1459 = vmatpush1.msra.mxu0 0.0
    %1460 = vmatprep.subr.mxu0 0.0
    %1461 = vmatpush1.msra.mxu0 0.0
    %1462 = vmatprep.subr.mxu0 0.0
    %1463 = vmatpush1.msra.mxu0 0.0
    %1464 = vmatprep.subr.mxu0 0.0
    %1465 = vmatpush1.msra.mxu0 0.0
    %1466 = vmatprep.subr.mxu0 0.0
    %1467 = vmatpush1.msra.mxu0 0.0
    %1468 = vmatprep.subr.mxu0 0.0
    %1469 = vmatpush1.msra.mxu0 0.0
    %1470 = vmatprep.subr.mxu0 0.0
    %1471 = vmatpush1.msra.mxu0 0.0
    %1472 = vmatprep.subr.mxu0 0.0
    %1473 = vmatpush1.msra.mxu0 0.0
    %1474 = vmatprep.subr.mxu0 0.0
    %1475 = vmatpush1.msra.mxu0 0.0
    %1476 = vmatprep.subr.mxu0 0.0
    %1477 = vmatpush1.msra.mxu0 0.0
    %1478 = vmatprep.subr.mxu0 0.0
    %1479 = vmatpush1.msra.mxu0 0.0
    %1480 = vmatprep.subr.mxu0 0.0
    %1481 = vmatpush1.msra.mxu0 0.0
    %1482 = vmatprep.subr.mxu0 0.0
    %1483 = vmatpush1.msra.mxu0 0.0
    %1484 = vmatprep.subr.mxu0 0.0
    %1485 = vmatpush1.msra.mxu0 0.0
    %1486 = vmatprep.subr.mxu0 0.0
    %1487 = vmatpush1.msra.mxu0 0.0
    %1488 = vmatprep.subr.mxu0 0.0
    %1489 = vmatpush1.msra.mxu0 0.0
    %1490 = vmatprep.subr.mxu0 0.0
    %1491 = vmatpush1.msra.mxu0 0.0
    %1492 = vmatprep.subr.mxu0 0.0
    %1493 = vmatpush1.msra.mxu0 0.0
    %1494 = vmatprep.mubr.f32.mxu0 0.0
    %v1495 = vand.u32 %v1138, 4294901760
    %v1496 = vsub.f32 %v1138, %v1495
    %v1497 = vand.u32 %v1496, 4294901760
    %1498 = vmatmul.mubr.f32.gmra.mrb[0].mxu0 %v1497
    %v1499 = vpop.f32.mrb[0].mxu0
    %v1500 = vadd.f32 %v1419, %v1499
    %v1501 = vpop.f32.mrb[0].mxu0
    %1502 = vdwg.mxu0
    %1503 = vmatprep.subr.mxu0 0.0
    %v1504 = vand.u32 %v27, 4294901760
    %v1505 = vsub.f32 %v27, %v1504
    %v1506 = vand.u32 %v1505, 4294901760
    %1507 = vmatpush1.msra.mxu0 %v1506
    %1508 = vmatprep.subr.mxu0 0.0
    %v1509 = vand.u32 %v28, 4294901760
    %v1510 = vsub.f32 %v28, %v1509
    %v1511 = vand.u32 %v1510, 4294901760
    %1512 = vmatpush1.msra.mxu0 %v1511
    %1513 = vmatprep.subr.mxu0 0.0
    %v1514 = vand.u32 %v29, 4294901760
    %v1515 = vsub.f32 %v29, %v1514
    %v1516 = vand.u32 %v1515, 4294901760
    %1517 = vmatpush1.msra.mxu0 %v1516
    %1518 = vmatprep.subr.mxu0 0.0
    %v1519 = vand.u32 %v30, 4294901760
    %v1520 = vsub.f32 %v30, %v1519
    %v1521 = vand.u32 %v1520, 4294901760
    %1522 = vmatpush1.msra.mxu0 %v1521
    %1523 = vmatprep.subr.mxu0 0.0
    %v1524 = vand.u32 %v31, 4294901760
    %v1525 = vsub.f32 %v31, %v1524
    %v1526 = vand.u32 %v1525, 4294901760
    %1527 = vmatpush1.msra.mxu0 %v1526
    %1528 = vmatprep.subr.mxu0 0.0
    %v1529 = vand.u32 %v32, 4294901760
    %v1530 = vsub.f32 %v32, %v1529
    %v1531 = vand.u32 %v1530, 4294901760
    %1532 = vmatpush1.msra.mxu0 %v1531
    %1533 = vmatprep.subr.mxu0 0.0
    %v1534 = vand.u32 %v33, 4294901760
    %v1535 = vsub.f32 %v33, %v1534
    %v1536 = vand.u32 %v1535, 4294901760
    %1537 = vmatpush1.msra.mxu0 %v1536
    %1538 = vmatprep.subr.mxu0 0.0
    %v1539 = vand.u32 %v34, 4294901760
    %v1540 = vsub.f32 %v34, %v1539
    %v1541 = vand.u32 %v1540, 4294901760
    %1542 = vmatpush1.msra.mxu0 %v1541
    %1543 = vmatprep.subr.mxu0 0.0
    %1544 = vmatpush1.msra.mxu0 0.0
    %1545 = vmatprep.subr.mxu0 0.0
    %1546 = vmatpush1.msra.mxu0 0.0
    %1547 = vmatprep.subr.mxu0 0.0
    %1548 = vmatpush1.msra.mxu0 0.0
    %1549 = vmatprep.subr.mxu0 0.0
    %1550 = vmatpush1.msra.mxu0 0.0
    %1551 = vmatprep.subr.mxu0 0.0
    %1552 = vmatpush1.msra.mxu0 0.0
    %1553 = vmatprep.subr.mxu0 0.0
    %1554 = vmatpush1.msra.mxu0 0.0
    %1555 = vmatprep.subr.mxu0 0.0
    %1556 = vmatpush1.msra.mxu0 0.0
    %1557 = vmatprep.subr.mxu0 0.0
    %1558 = vmatpush1.msra.mxu0 0.0
    %1559 = vmatprep.subr.mxu0 0.0
    %1560 = vmatpush1.msra.mxu0 0.0
    %1561 = vmatprep.subr.mxu0 0.0
    %1562 = vmatpush1.msra.mxu0 0.0
    %1563 = vmatprep.subr.mxu0 0.0
    %1564 = vmatpush1.msra.mxu0 0.0
    %1565 = vmatprep.subr.mxu0 0.0
    %1566 = vmatpush1.msra.mxu0 0.0
    %1567 = vmatprep.subr.mxu0 0.0
    %1568 = vmatpush1.msra.mxu0 0.0
    %1569 = vmatprep.subr.mxu0 0.0
    %1570 = vmatpush1.msra.mxu0 0.0
    %1571 = vmatprep.subr.mxu0 0.0
    %1572 = vmatpush1.msra.mxu0 0.0
    %1573 = vmatprep.subr.mxu0 0.0
    %1574 = vmatpush1.msra.mxu0 0.0
    %1575 = vmatprep.subr.mxu0 0.0
    %1576 = vmatpush1.msra.mxu0 0.0
    %1577 = vmatprep.subr.mxu0 0.0
    %1578 = vmatpush1.msra.mxu0 0.0
    %1579 = vmatprep.subr.mxu0 0.0
    %1580 = vmatpush1.msra.mxu0 0.0
    %1581 = vmatprep.subr.mxu0 0.0
    %1582 = vmatpush1.msra.mxu0 0.0
    %1583 = vmatprep.subr.mxu0 0.0
    %1584 = vmatpush1.msra.mxu0 0.0
    %1585 = vmatprep.subr.mxu0 0.0
    %1586 = vmatpush1.msra.mxu0 0.0
    %1587 = vmatprep.subr.mxu0 0.0
    %1588 = vmatpush1.msra.mxu0 0.0
    %1589 = vmatprep.subr.mxu0 0.0
    %1590 = vmatpush1.msra.mxu0 0.0
    %1591 = vmatprep.mubr.f32.mxu0 0.0
    %v1592 = vand.u32 %v1138, 4294901760
    %1593 = vmatmul.mubr.f32.gmra.mrb[0].mxu0 %v1592
    %v1594 = vpop.f32.mrb[0].mxu0
    %v1595 = vadd.f32 %v1500, %v1594
    %v1596 = vpop.f32.mrb[0].mxu0
    %1597 = vdwg.mxu0
    %1598 = vmatprep.subr.mxu0 0.0
    %v1599 = vand.u32 %v27, 4294901760
    %1600 = vmatpush1.msra.mxu0 %v1599
    %1601 = vmatprep.subr.mxu0 0.0
    %v1602 = vand.u32 %v28, 4294901760
    %1603 = vmatpush1.msra.mxu0 %v1602
    %1604 = vmatprep.subr.mxu0 0.0
    %v1605 = vand.u32 %v29, 4294901760
    %1606 = vmatpush1.msra.mxu0 %v1605
    %1607 = vmatprep.subr.mxu0 0.0
    %v1608 = vand.u32 %v30, 4294901760
    %1609 = vmatpush1.msra.mxu0 %v1608
    %1610 = vmatprep.subr.mxu0 0.0
    %v1611 = vand.u32 %v31, 4294901760
    %1612 = vmatpush1.msra.mxu0 %v1611
    %1613 = vmatprep.subr.mxu0 0.0
    %v1614 = vand.u32 %v32, 4294901760
    %1615 = vmatpush1.msra.mxu0 %v1614
    %1616 = vmatprep.subr.mxu0 0.0
    %v1617 = vand.u32 %v33, 4294901760
    %1618 = vmatpush1.msra.mxu0 %v1617
    %1619 = vmatprep.subr.mxu0 0.0
    %v1620 = vand.u32 %v34, 4294901760
    %1621 = vmatpush1.msra.mxu0 %v1620
    %1622 = vmatprep.subr.mxu0 0.0
    %1623 = vmatpush1.msra.mxu0 0.0
    %1624 = vmatprep.subr.mxu0 0.0
    %1625 = vmatpush1.msra.mxu0 0.0
    %1626 = vmatprep.subr.mxu0 0.0
    %1627 = vmatpush1.msra.mxu0 0.0
    %1628 = vmatprep.subr.mxu0 0.0
    %1629 = vmatpush1.msra.mxu0 0.0
    %1630 = vmatprep.subr.mxu0 0.0
    %1631 = vmatpush1.msra.mxu0 0.0
    %1632 = vmatprep.subr.mxu0 0.0
    %1633 = vmatpush1.msra.mxu0 0.0
    %1634 = vmatprep.subr.mxu0 0.0
    %1635 = vmatpush1.msra.mxu0 0.0
    %1636 = vmatprep.subr.mxu0 0.0
    %1637 = vmatpush1.msra.mxu0 0.0
    %1638 = vmatprep.subr.mxu0 0.0
    %1639 = vmatpush1.msra.mxu0 0.0
    %1640 = vmatprep.subr.mxu0 0.0
    %1641 = vmatpush1.msra.mxu0 0.0
    %1642 = vmatprep.subr.mxu0 0.0
    %1643 = vmatpush1.msra.mxu0 0.0
    %1644 = vmatprep.subr.mxu0 0.0
    %1645 = vmatpush1.msra.mxu0 0.0
    %1646 = vmatprep.subr.mxu0 0.0
    %1647 = vmatpush1.msra.mxu0 0.0
    %1648 = vmatprep.subr.mxu0 0.0
    %1649 = vmatpush1.msra.mxu0 0.0
    %1650 = vmatprep.subr.mxu0 0.0
    %1651 = vmatpush1.msra.mxu0 0.0
    %1652 = vmatprep.subr.mxu0 0.0
    %1653 = vmatpush1.msra.mxu0 0.0
    %1654 = vmatprep.subr.mxu0 0.0
    %1655 = vmatpush1.msra.mxu0 0.0
    %1656 = vmatprep.subr.mxu0 0.0
    %1657 = vmatpush1.msra.mxu0 0.0
    %1658 = vmatprep.subr.mxu0 0.0
    %1659 = vmatpush1.msra.mxu0 0.0
    %1660 = vmatprep.subr.mxu0 0.0
    %1661 = vmatpush1.msra.mxu0 0.0
    %1662 = vmatprep.subr.mxu0 0.0
    %1663 = vmatpush1.msra.mxu0 0.0
    %1664 = vmatprep.subr.mxu0 0.0
    %1665 = vmatpush1.msra.mxu0 0.0
    %1666 = vmatprep.subr.mxu0 0.0
    %1667 = vmatpush1.msra.mxu0 0.0
    %1668 = vmatprep.subr.mxu0 0.0
    %1669 = vmatpush1.msra.mxu0 0.0
    %1670 = vmatprep.mubr.f32.mxu0 0.0
    %v1671 = vand.u32 %v1138, 4294901760
    %1672 = vmatmul.mubr.f32.gmra.mrb[0].mxu0 %v1671
    %v1673 = vpop.f32.mrb[0].mxu0
    %v1674 = vadd.f32 %v1595, %v1673
    %v1675 = vpop.f32.mrb[0].mxu0
    %1676 = vdwg.mxu0
    %v1677 = vadd.f32 %v1136, %v1674
    %v1678 = vtanh.pop %v1677
    %v1679 = vsel %vm584, %v1678, %v1677
    %s1680 = scalar_lea.vmem %s4, 16
    %1681 = vst.msk [vmem:[%s1680] sm:$0xff] %vm586, %v1679
    %s1682 = scalar_lea.vmem %s0, 24
    %v1683 = vld [vmem:[%s1682] sm:$0xff]
    %v1685 = vsel %vm40, %v1679, 0
    %1687 = vmatprep.subr.mxu0 0.0
    %v1688 = vand.u32 %v27, 4294901760
    %1689 = vmatpush1.msra.mxu0 %v1688
    %1690 = vmatprep.subr.mxu0 0.0
    %v1691 = vand.u32 %v28, 4294901760
    %1692 = vmatpush1.msra.mxu0 %v1691
    %1693 = vmatprep.subr.mxu0 0.0
    %v1694 = vand.u32 %v29, 4294901760
    %1695 = vmatpush1.msra.mxu0 %v1694
    %1696 = vmatprep.subr.mxu0 0.0
    %v1697 = vand.u32 %v30, 4294901760
    %1698 = vmatpush1.msra.mxu0 %v1697
    %1699 = vmatprep.subr.mxu0 0.0
    %v1700 = vand.u32 %v31, 4294901760
    %1701 = vmatpush1.msra.mxu0 %v1700
    %1702 = vmatprep.subr.mxu0 0.0
    %v1703 = vand.u32 %v32, 4294901760
    %1704 = vmatpush1.msra.mxu0 %v1703
    %1705 = vmatprep.subr.mxu0 0.0
    %v1706 = vand.u32 %v33, 4294901760
    %1707 = vmatpush1.msra.mxu0 %v1706
    %1708 = vmatprep.subr.mxu0 0.0
    %v1709 = vand.u32 %v34, 4294901760
    %1710 = vmatpush1.msra.mxu0 %v1709
    %1711 = vmatprep.subr.mxu0 0.0
    %1712 = vmatpush1.msra.mxu0 0.0
    %1713 = vmatprep.subr.mxu0 0.0
    %1714 = vmatpush1.msra.mxu0 0.0
    %1715 = vmatprep.subr.mxu0 0.0
    %1716 = vmatpush1.msra.mxu0 0.0
    %1717 = vmatprep.subr.mxu0 0.0
    %1718 = vmatpush1.msra.mxu0 0.0
    %1719 = vmatprep.subr.mxu0 0.0
    %1720 = vmatpush1.msra.mxu0 0.0
    %1721 = vmatprep.subr.mxu0 0.0
    %1722 = vmatpush1.msra.mxu0 0.0
    %1723 = vmatprep.subr.mxu0 0.0
    %1724 = vmatpush1.msra.mxu0 0.0
    %1725 = vmatprep.subr.mxu0 0.0
    %1726 = vmatpush1.msra.mxu0 0.0
    %1727 = vmatprep.subr.mxu0 0.0
    %1728 = vmatpush1.msra.mxu0 0.0
    %1729 = vmatprep.subr.mxu0 0.0
    %1730 = vmatpush1.msra.mxu0 0.0
    %1731 = vmatprep.subr.mxu0 0.0
    %1732 = vmatpush1.msra.mxu0 0.0
    %1733 = vmatprep.subr.mxu0 0.0
    %1734 = vmatpush1.msra.mxu0 0.0
    %1735 = vmatprep.subr.mxu0 0.0
    %1736 = vmatpush1.msra.mxu0 0.0
    %1737 = vmatprep.subr.mxu0 0.0
    %1738 = vmatpush1.msra.mxu0 0.0
    %1739 = vmatprep.subr.mxu0 0.0
    %1740 = vmatpush1.msra.mxu0 0.0
    %1741 = vmatprep.subr.mxu0 0.0
    %1742 = vmatpush1.msra.mxu0 0.0
    %1743 = vmatprep.subr.mxu0 0.0
    %1744 = vmatpush1.msra.mxu0 0.0
    %1745 = vmatprep.subr.mxu0 0.0
    %1746 = vmatpush1.msra.mxu0 0.0
    %1747 = vmatprep.subr.mxu0 0.0
    %1748 = vmatpush1.msra.mxu0 0.0
    %1749 = vmatprep.subr.mxu0 0.0
    %1750 = vmatpush1.msra.mxu0 0.0
    %1751 = vmatprep.subr.mxu0 0.0
    %1752 = vmatpush1.msra.mxu0 0.0
    %1753 = vmatprep.subr.mxu0 0.0
    %1754 = vmatpush1.msra.mxu0 0.0
    %1755 = vmatprep.subr.mxu0 0.0
    %1756 = vmatpush1.msra.mxu0 0.0
    %1757 = vmatprep.subr.mxu0 0.0
    %1758 = vmatpush1.msra.mxu0 0.0
    %1759 = vmatprep.mubr.f32.mxu0 0.0
    %v1760 = vand.u32 %v1685, 4294901760
    %v1761 = vsub.f32 %v1685, %v1760
    %v1762 = vand.u32 %v1761, 4294901760
    %v1763 = vsub.f32 %v1761, %v1762
    %v1764 = vand.u32 %v1763, 4294901760
    %1765 = vmatmul.mubr.f32.gmra.mrb[0].mxu0 %v1764
    %v1766 = vpop.f32.mrb[0].mxu0
    %v1767 = vadd.f32 0.0, %v1766
    %v1768 = vpop.f32.mrb[0].mxu0
    %1769 = vdwg.mxu0
    %1770 = vmatprep.subr.mxu0 0.0
    %v1771 = vand.u32 %v27, 4294901760
    %v1772 = vsub.f32 %v27, %v1771
    %v1773 = vand.u32 %v1772, 4294901760
    %v1774 = vsub.f32 %v1772, %v1773
    %v1775 = vand.u32 %v1774, 4294901760
    %1776 = vmatpush1.msra.mxu0 %v1775
    %1777 = vmatprep.subr.mxu0 0.0
    %v1778 = vand.u32 %v28, 4294901760
    %v1779 = vsub.f32 %v28, %v1778
    %v1780 = vand.u32 %v1779, 4294901760
    %v1781 = vsub.f32 %v1779, %v1780
    %v1782 = vand.u32 %v1781, 4294901760
    %1783 = vmatpush1.msra.mxu0 %v1782
    %1784 = vmatprep.subr.mxu0 0.0
    %v1785 = vand.u32 %v29, 4294901760
    %v1786 = vsub.f32 %v29, %v1785
    %v1787 = vand.u32 %v1786, 4294901760
    %v1788 = vsub.f32 %v1786, %v1787
    %v1789 = vand.u32 %v1788, 4294901760
    %1790 = vmatpush1.msra.mxu0 %v1789
    %1791 = vmatprep.subr.mxu0 0.0
    %v1792 = vand.u32 %v30, 4294901760
    %v1793 = vsub.f32 %v30, %v1792
    %v1794 = vand.u32 %v1793, 4294901760
    %v1795 = vsub.f32 %v1793, %v1794
    %v1796 = vand.u32 %v1795, 4294901760
    %1797 = vmatpush1.msra.mxu0 %v1796
    %1798 = vmatprep.subr.mxu0 0.0
    %v1799 = vand.u32 %v31, 4294901760
    %v1800 = vsub.f32 %v31, %v1799
    %v1801 = vand.u32 %v1800, 4294901760
    %v1802 = vsub.f32 %v1800, %v1801
    %v1803 = vand.u32 %v1802, 4294901760
    %1804 = vmatpush1.msra.mxu0 %v1803
    %1805 = vmatprep.subr.mxu0 0.0
    %v1806 = vand.u32 %v32, 4294901760
    %v1807 = vsub.f32 %v32, %v1806
    %v1808 = vand.u32 %v1807, 4294901760
    %v1809 = vsub.f32 %v1807, %v1808
    %v1810 = vand.u32 %v1809, 4294901760
    %1811 = vmatpush1.msra.mxu0 %v1810
    %1812 = vmatprep.subr.mxu0 0.0
    %v1813 = vand.u32 %v33, 4294901760
    %v1814 = vsub.f32 %v33, %v1813
    %v1815 = vand.u32 %v1814, 4294901760
    %v1816 = vsub.f32 %v1814, %v1815
    %v1817 = vand.u32 %v1816, 4294901760
    %1818 = vmatpush1.msra.mxu0 %v1817
    %1819 = vmatprep.subr.mxu0 0.0
    %v1820 = vand.u32 %v34, 4294901760
    %v1821 = vsub.f32 %v34, %v1820
    %v1822 = vand.u32 %v1821, 4294901760
    %v1823 = vsub.f32 %v1821, %v1822
    %v1824 = vand.u32 %v1823, 4294901760
    %1825 = vmatpush1.msra.mxu0 %v1824
    %1826 = vmatprep.subr.mxu0 0.0
    %1827 = vmatpush1.msra.mxu0 0.0
    %1828 = vmatprep.subr.mxu0 0.0
    %1829 = vmatpush1.msra.mxu0 0.0
    %1830 = vmatprep.subr.mxu0 0.0
    %1831 = vmatpush1.msra.mxu0 0.0
    %1832 = vmatprep.subr.mxu0 0.0
    %1833 = vmatpush1.msra.mxu0 0.0
    %1834 = vmatprep.subr.mxu0 0.0
    %1835 = vmatpush1.msra.mxu0 0.0
    %1836 = vmatprep.subr.mxu0 0.0
    %1837 = vmatpush1.msra.mxu0 0.0
    %1838 = vmatprep.subr.mxu0 0.0
    %1839 = vmatpush1.msra.mxu0 0.0
    %1840 = vmatprep.subr.mxu0 0.0
    %1841 = vmatpush1.msra.mxu0 0.0
    %1842 = vmatprep.subr.mxu0 0.0
    %1843 = vmatpush1.msra.mxu0 0.0
    %1844 = vmatprep.subr.mxu0 0.0
    %1845 = vmatpush1.msra.mxu0 0.0
    %1846 = vmatprep.subr.mxu0 0.0
    %1847 = vmatpush1.msra.mxu0 0.0
    %1848 = vmatprep.subr.mxu0 0.0
    %1849 = vmatpush1.msra.mxu0 0.0
    %1850 = vmatprep.subr.mxu0 0.0
    %1851 = vmatpush1.msra.mxu0 0.0
    %1852 = vmatprep.subr.mxu0 0.0
    %1853 = vmatpush1.msra.mxu0 0.0
    %1854 = vmatprep.subr.mxu0 0.0
    %1855 = vmatpush1.msra.mxu0 0.0
    %1856 = vmatprep.subr.mxu0 0.0
    %1857 = vmatpush1.msra.mxu0 0.0
    %1858 = vmatprep.subr.mxu0 0.0
    %1859 = vmatpush1.msra.mxu0 0.0
    %1860 = vmatprep.subr.mxu0 0.0
    %1861 = vmatpush1.msra.mxu0 0.0
    %1862 = vmatprep.subr.mxu0 0.0
    %1863 = vmatpush1.msra.mxu0 0.0
    %1864 = vmatprep.subr.mxu0 0.0
    %1865 = vmatpush1.msra.mxu0 0.0
    %1866 = vmatprep.subr.mxu0 0.0
    %1867 = vmatpush1.msra.mxu0 0.0
    %1868 = vmatprep.subr.mxu0 0.0
    %1869 = vmatpush1.msra.mxu0 0.0
    %1870 = vmatprep.subr.mxu0 0.0
    %1871 = vmatpush1.msra.mxu0 0.0
    %1872 = vmatprep.subr.mxu0 0.0
    %1873 = vmatpush1.msra.mxu0 0.0
    %1874 = vmatprep.mubr.f32.mxu0 0.0
    %v1875 = vand.u32 %v1685, 4294901760
    %1876 = vmatmul.mubr.f32.gmra.mrb[0].mxu0 %v1875
    %v1877 = vpop.f32.mrb[0].mxu0
    %v1878 = vadd.f32 %v1767, %v1877
    %v1879 = vpop.f32.mrb[0].mxu0
    %1880 = vdwg.mxu0
    %1881 = vmatprep.subr.mxu0 0.0
    %v1882 = vand.u32 %v27, 4294901760
    %v1883 = vsub.f32 %v27, %v1882
    %1884 = vmatpush1.msra.mxu0 %v1883
    %1885 = vmatprep.subr.mxu0 0.0
    %v1886 = vand.u32 %v28, 4294901760
    %v1887 = vsub.f32 %v28, %v1886
    %1888 = vmatpush1.msra.mxu0 %v1887
    %1889 = vmatprep.subr.mxu0 0.0
    %v1890 = vand.u32 %v29, 4294901760
    %v1891 = vsub.f32 %v29, %v1890
    %1892 = vmatpush1.msra.mxu0 %v1891
    %1893 = vmatprep.subr.mxu0 0.0
    %v1894 = vand.u32 %v30, 4294901760
    %v1895 = vsub.f32 %v30, %v1894
    %1896 = vmatpush1.msra.mxu0 %v1895
    %1897 = vmatprep.subr.mxu0 0.0
    %v1898 = vand.u32 %v31, 4294901760
    %v1899 = vsub.f32 %v31, %v1898
    %1900 = vmatpush1.msra.mxu0 %v1899
    %1901 = vmatprep.subr.mxu0 0.0
    %v1902 = vand.u32 %v32, 4294901760
    %v1903 = vsub.f32 %v32, %v1902
    %1904 = vmatpush1.msra.mxu0 %v1903
    %1905 = vmatprep.subr.mxu0 0.0
    %v1906 = vand.u32 %v33, 4294901760
    %v1907 = vsub.f32 %v33, %v1906
    %1908 = vmatpush1.msra.mxu0 %v1907
    %1909 = vmatprep.subr.mxu0 0.0
    %v1910 = vand.u32 %v34, 4294901760
    %v1911 = vsub.f32 %v34, %v1910
    %1912 = vmatpush1.msra.mxu0 %v1911
    %1913 = vmatprep.subr.mxu0 0.0
    %1914 = vmatpush1.msra.mxu0 0.0
    %1915 = vmatprep.subr.mxu0 0.0
    %1916 = vmatpush1.msra.mxu0 0.0
    %1917 = vmatprep.subr.mxu0 0.0
    %1918 = vmatpush1.msra.mxu0 0.0
    %1919 = vmatprep.subr.mxu0 0.0
    %1920 = vmatpush1.msra.mxu0 0.0
    %1921 = vmatprep.subr.mxu0 0.0
    %1922 = vmatpush1.msra.mxu0 0.0
    %1923 = vmatprep.subr.mxu0 0.0
    %1924 = vmatpush1.msra.mxu0 0.0
    %1925 = vmatprep.subr.mxu0 0.0
    %1926 = vmatpush1.msra.mxu0 0.0
    %1927 = vmatprep.subr.mxu0 0.0
    %1928 = vmatpush1.msra.mxu0 0.0
    %1929 = vmatprep.subr.mxu0 0.0
    %1930 = vmatpush1.msra.mxu0 0.0
    %1931 = vmatprep.subr.mxu0 0.0
    %1932 = vmatpush1.msra.mxu0 0.0
    %1933 = vmatprep.subr.mxu0 0.0
    %1934 = vmatpush1.msra.mxu0 0.0
    %1935 = vmatprep.subr.mxu0 0.0
    %1936 = vmatpush1.msra.mxu0 0.0
    %1937 = vmatprep.subr.mxu0 0.0
    %1938 = vmatpush1.msra.mxu0 0.0
    %1939 = vmatprep.subr.mxu0 0.0
    %1940 = vmatpush1.msra.mxu0 0.0
    %1941 = vmatprep.subr.mxu0 0.0
    %1942 = vmatpush1.msra.mxu0 0.0
    %1943 = vmatprep.subr.mxu0 0.0
    %1944 = vmatpush1.msra.mxu0 0.0
    %1945 = vmatprep.subr.mxu0 0.0
    %1946 = vmatpush1.msra.mxu0 0.0
    %1947 = vmatprep.subr.mxu0 0.0
    %1948 = vmatpush1.msra.mxu0 0.0
    %1949 = vmatprep.subr.mxu0 0.0
    %1950 = vmatpush1.msra.mxu0 0.0
    %1951 = vmatprep.subr.mxu0 0.0
    %1952 = vmatpush1.msra.mxu0 0.0
    %1953 = vmatprep.subr.mxu0 0.0
    %1954 = vmatpush1.msra.mxu0 0.0
    %1955 = vmatprep.subr.mxu0 0.0
    %1956 = vmatpush1.msra.mxu0 0.0
    %1957 = vmatprep.subr.mxu0 0.0
    %1958 = vmatpush1.msra.mxu0 0.0
    %1959 = vmatprep.subr.mxu0 0.0
    %1960 = vmatpush1.msra.mxu0 0.0
    %1961 = vmatprep.mubr.f32.mxu0 0.0
    %v1962 = vand.u32 %v1685, 4294901760
    %v1963 = vsub.f32 %v1685, %v1962
    %1964 = vmatmul.mubr.f32.gmra.mrb[0].mxu0 %v1963
    %v1965 = vpop.f32.mrb[0].mxu0
    %v1966 = vadd.f32 %v1878, %v1965
    %v1967 = vpop.f32.mrb[0].mxu0
    %1968 = vdwg.mxu0
    %1969 = vmatprep.subr.mxu0 0.0
    %v1970 = vand.u32 %v27, 4294901760
    %1971 = vmatpush1.msra.mxu0 %v1970
    %1972 = vmatprep.subr.mxu0 0.0
    %v1973 = vand.u32 %v28, 4294901760
    %1974 = vmatpush1.msra.mxu0 %v1973
    %1975 = vmatprep.subr.mxu0 0.0
    %v1976 = vand.u32 %v29, 4294901760
    %1977 = vmatpush1.msra.mxu0 %v1976
    %1978 = vmatprep.subr.mxu0 0.0
    %v1979 = vand.u32 %v30, 4294901760
    %1980 = vmatpush1.msra.mxu0 %v1979
    %1981 = vmatprep.subr.mxu0 0.0
    %v1982 = vand.u32 %v31, 4294901760
    %1983 = vmatpush1.msra.mxu0 %v1982
    %1984 = vmatprep.subr.mxu0 0.0
    %v1985 = vand.u32 %v32, 4294901760
    %1986 = vmatpush1.msra.mxu0 %v1985
    %1987 = vmatprep.subr.mxu0 0.0
    %v1988 = vand.u32 %v33, 4294901760
    %1989 = vmatpush1.msra.mxu0 %v1988
    %1990 = vmatprep.subr.mxu0 0.0
    %v1991 = vand.u32 %v34, 4294901760
    %1992 = vmatpush1.msra.mxu0 %v1991
    %1993 = vmatprep.subr.mxu0 0.0
    %1994 = vmatpush1.msra.mxu0 0.0
    %1995 = vmatprep.subr.mxu0 0.0
    %1996 = vmatpush1.msra.mxu0 0.0
    %1997 = vmatprep.subr.mxu0 0.0
    %1998 = vmatpush1.msra.mxu0 0.0
    %1999 = vmatprep.subr.mxu0 0.0
    %2000 = vmatpush1.msra.mxu0 0.0
    %2001 = vmatprep.subr.mxu0 0.0
    %2002 = vmatpush1.msra.mxu0 0.0
    %2003 = vmatprep.subr.mxu0 0.0
    %2004 = vmatpush1.msra.mxu0 0.0
    %2005 = vmatprep.subr.mxu0 0.0
    %2006 = vmatpush1.msra.mxu0 0.0
    %2007 = vmatprep.subr.mxu0 0.0
    %2008 = vmatpush1.msra.mxu0 0.0
    %2009 = vmatprep.subr.mxu0 0.0
    %2010 = vmatpush1.msra.mxu0 0.0
    %2011 = vmatprep.subr.mxu0 0.0
    %2012 = vmatpush1.msra.mxu0 0.0
    %2013 = vmatprep.subr.mxu0 0.0
    %2014 = vmatpush1.msra.mxu0 0.0
    %2015 = vmatprep.subr.mxu0 0.0
    %2016 = vmatpush1.msra.mxu0 0.0
    %2017 = vmatprep.subr.mxu0 0.0
    %2018 = vmatpush1.msra.mxu0 0.0
    %2019 = vmatprep.subr.mxu0 0.0
    %2020 = vmatpush1.msra.mxu0 0.0
    %2021 = vmatprep.subr.mxu0 0.0
    %2022 = vmatpush1.msra.mxu0 0.0
    %2023 = vmatprep.subr.mxu0 0.0
    %2024 = vmatpush1.msra.mxu0 0.0
    %2025 = vmatprep.subr.mxu0 0.0
    %2026 = vmatpush1.msra.mxu0 0.0
    %2027 = vmatprep.subr.mxu0 0.0
    %2028 = vmatpush1.msra.mxu0 0.0
    %2029 = vmatprep.subr.mxu0 0.0
    %2030 = vmatpush1.msra.mxu0 0.0
    %2031 = vmatprep.subr.mxu0 0.0
    %2032 = vmatpush1.msra.mxu0 0.0
    %2033 = vmatprep.subr.mxu0 0.0
    %2034 = vmatpush1.msra.mxu0 0.0
    %2035 = vmatprep.subr.mxu0 0.0
    %2036 = vmatpush1.msra.mxu0 0.0
    %2037 = vmatprep.subr.mxu0 0.0
    %2038 = vmatpush1.msra.mxu0 0.0
    %2039 = vmatprep.subr.mxu0 0.0
    %2040 = vmatpush1.msra.mxu0 0.0
    %2041 = vmatprep.mubr.f32.mxu0 0.0
    %v2042 = vand.u32 %v1685, 4294901760
    %v2043 = vsub.f32 %v1685, %v2042
    %v2044 = vand.u32 %v2043, 4294901760
    %2045 = vmatmul.mubr.f32.gmra.mrb[0].mxu0 %v2044
    %v2046 = vpop.f32.mrb[0].mxu0
    %v2047 = vadd.f32 %v1966, %v2046
    %v2048 = vpop.f32.mrb[0].mxu0
    %2049 = vdwg.mxu0
    %2050 = vmatprep.subr.mxu0 0.0
    %v2051 = vand.u32 %v27, 4294901760
    %v2052 = vsub.f32 %v27, %v2051
    %v2053 = vand.u32 %v2052, 4294901760
    %2054 = vmatpush1.msra.mxu0 %v2053
    %2055 = vmatprep.subr.mxu0 0.0
    %v2056 = vand.u32 %v28, 4294901760
    %v2057 = vsub.f32 %v28, %v2056
    %v2058 = vand.u32 %v2057, 4294901760
    %2059 = vmatpush1.msra.mxu0 %v2058
    %2060 = vmatprep.subr.mxu0 0.0
    %v2061 = vand.u32 %v29, 4294901760
    %v2062 = vsub.f32 %v29, %v2061
    %v2063 = vand.u32 %v2062, 4294901760
    %2064 = vmatpush1.msra.mxu0 %v2063
    %2065 = vmatprep.subr.mxu0 0.0
    %v2066 = vand.u32 %v30, 4294901760
    %v2067 = vsub.f32 %v30, %v2066
    %v2068 = vand.u32 %v2067, 4294901760
    %2069 = vmatpush1.msra.mxu0 %v2068
    %2070 = vmatprep.subr.mxu0 0.0
    %v2071 = vand.u32 %v31, 4294901760
    %v2072 = vsub.f32 %v31, %v2071
    %v2073 = vand.u32 %v2072, 4294901760
    %2074 = vmatpush1.msra.mxu0 %v2073
    %2075 = vmatprep.subr.mxu0 0.0
    %v2076 = vand.u32 %v32, 4294901760
    %v2077 = vsub.f32 %v32, %v2076
    %v2078 = vand.u32 %v2077, 4294901760
    %2079 = vmatpush1.msra.mxu0 %v2078
    %2080 = vmatprep.subr.mxu0 0.0
    %v2081 = vand.u32 %v33, 4294901760
    %v2082 = vsub.f32 %v33, %v2081
    %v2083 = vand.u32 %v2082, 4294901760
    %2084 = vmatpush1.msra.mxu0 %v2083
    %2085 = vmatprep.subr.mxu0 0.0
    %v2086 = vand.u32 %v34, 4294901760
    %v2087 = vsub.f32 %v34, %v2086
    %v2088 = vand.u32 %v2087, 4294901760
    %2089 = vmatpush1.msra.mxu0 %v2088
    %2090 = vmatprep.subr.mxu0 0.0
    %2091 = vmatpush1.msra.mxu0 0.0
    %2092 = vmatprep.subr.mxu0 0.0
    %2093 = vmatpush1.msra.mxu0 0.0
    %2094 = vmatprep.subr.mxu0 0.0
    %2095 = vmatpush1.msra.mxu0 0.0
    %2096 = vmatprep.subr.mxu0 0.0
    %2097 = vmatpush1.msra.mxu0 0.0
    %2098 = vmatprep.subr.mxu0 0.0
    %2099 = vmatpush1.msra.mxu0 0.0
    %2100 = vmatprep.subr.mxu0 0.0
    %2101 = vmatpush1.msra.mxu0 0.0
    %2102 = vmatprep.subr.mxu0 0.0
    %2103 = vmatpush1.msra.mxu0 0.0
    %2104 = vmatprep.subr.mxu0 0.0
    %2105 = vmatpush1.msra.mxu0 0.0
    %2106 = vmatprep.subr.mxu0 0.0
    %2107 = vmatpush1.msra.mxu0 0.0
    %2108 = vmatprep.subr.mxu0 0.0
    %2109 = vmatpush1.msra.mxu0 0.0
    %2110 = vmatprep.subr.mxu0 0.0
    %2111 = vmatpush1.msra.mxu0 0.0
    %2112 = vmatprep.subr.mxu0 0.0
    %2113 = vmatpush1.msra.mxu0 0.0
    %2114 = vmatprep.subr.mxu0 0.0
    %2115 = vmatpush1.msra.mxu0 0.0
    %2116 = vmatprep.subr.mxu0 0.0
    %2117 = vmatpush1.msra.mxu0 0.0
    %2118 = vmatprep.subr.mxu0 0.0
    %2119 = vmatpush1.msra.mxu0 0.0
    %2120 = vmatprep.subr.mxu0 0.0
    %2121 = vmatpush1.msra.mxu0 0.0
    %2122 = vmatprep.subr.mxu0 0.0
    %2123 = vmatpush1.msra.mxu0 0.0
    %2124 = vmatprep.subr.mxu0 0.0
    %2125 = vmatpush1.msra.mxu0 0.0
    %2126 = vmatprep.subr.mxu0 0.0
    %2127 = vmatpush1.msra.mxu0 0.0
    %2128 = vmatprep.subr.mxu0 0.0
    %2129 = vmatpush1.msra.mxu0 0.0
    %2130 = vmatprep.subr.mxu0 0.0
    %2131 = vmatpush1.msra.mxu0 0.0
    %2132 = vmatprep.subr.mxu0 0.0
    %2133 = vmatpush1.msra.mxu0 0.0
    %2134 = vmatprep.subr.mxu0 0.0
    %2135 = vmatpush1.msra.mxu0 0.0
    %2136 = vmatprep.subr.mxu0 0.0
    %2137 = vmatpush1.msra.mxu0 0.0
    %2138 = vmatprep.mubr.f32.mxu0 0.0
    %v2139 = vand.u32 %v1685, 4294901760
    %2140 = vmatmul.mubr.f32.gmra.mrb[0].mxu0 %v2139
    %v2141 = vpop.f32.mrb[0].mxu0
    %v2142 = vadd.f32 %v2047, %v2141
    %v2143 = vpop.f32.mrb[0].mxu0
    %2144 = vdwg.mxu0
    %2145 = vmatprep.subr.mxu0 0.0
    %v2146 = vand.u32 %v27, 4294901760
    %2147 = vmatpush1.msra.mxu0 %v2146
    %2148 = vmatprep.subr.mxu0 0.0
    %v2149 = vand.u32 %v28, 4294901760
    %2150 = vmatpush1.msra.mxu0 %v2149
    %2151 = vmatprep.subr.mxu0 0.0
    %v2152 = vand.u32 %v29, 4294901760
    %2153 = vmatpush1.msra.mxu0 %v2152
    %2154 = vmatprep.subr.mxu0 0.0
    %v2155 = vand.u32 %v30, 4294901760
    %2156 = vmatpush1.msra.mxu0 %v2155
    %2157 = vmatprep.subr.mxu0 0.0
    %v2158 = vand.u32 %v31, 4294901760
    %2159 = vmatpush1.msra.mxu0 %v2158
    %2160 = vmatprep.subr.mxu0 0.0
    %v2161 = vand.u32 %v32, 4294901760
    %2162 = vmatpush1.msra.mxu0 %v2161
    %2163 = vmatprep.subr.mxu0 0.0
    %v2164 = vand.u32 %v33, 4294901760
    %2165 = vmatpush1.msra.mxu0 %v2164
    %2166 = vmatprep.subr.mxu0 0.0
    %v2167 = vand.u32 %v34, 4294901760
    %2168 = vmatpush1.msra.mxu0 %v2167
    %2169 = vmatprep.subr.mxu0 0.0
    %2170 = vmatpush1.msra.mxu0 0.0
    %2171 = vmatprep.subr.mxu0 0.0
    %2172 = vmatpush1.msra.mxu0 0.0
    %2173 = vmatprep.subr.mxu0 0.0
    %2174 = vmatpush1.msra.mxu0 0.0
    %2175 = vmatprep.subr.mxu0 0.0
    %2176 = vmatpush1.msra.mxu0 0.0
    %2177 = vmatprep.subr.mxu0 0.0
    %2178 = vmatpush1.msra.mxu0 0.0
    %2179 = vmatprep.subr.mxu0 0.0
    %2180 = vmatpush1.msra.mxu0 0.0
    %2181 = vmatprep.subr.mxu0 0.0
    %2182 = vmatpush1.msra.mxu0 0.0
    %2183 = vmatprep.subr.mxu0 0.0
    %2184 = vmatpush1.msra.mxu0 0.0
    %2185 = vmatprep.subr.mxu0 0.0
    %2186 = vmatpush1.msra.mxu0 0.0
    %2187 = vmatprep.subr.mxu0 0.0
    %2188 = vmatpush1.msra.mxu0 0.0
    %2189 = vmatprep.subr.mxu0 0.0
    %2190 = vmatpush1.msra.mxu0 0.0
    %2191 = vmatprep.subr.mxu0 0.0
    %2192 = vmatpush1.msra.mxu0 0.0
    %2193 = vmatprep.subr.mxu0 0.0
    %2194 = vmatpush1.msra.mxu0 0.0
    %2195 = vmatprep.subr.mxu0 0.0
    %2196 = vmatpush1.msra.mxu0 0.0
    %2197 = vmatprep.subr.mxu0 0.0
    %2198 = vmatpush1.msra.mxu0 0.0
    %2199 = vmatprep.subr.mxu0 0.0
    %2200 = vmatpush1.msra.mxu0 0.0
    %2201 = vmatprep.subr.mxu0 0.0
    %2202 = vmatpush1.msra.mxu0 0.0
    %2203 = vmatprep.subr.mxu0 0.0
    %2204 = vmatpush1.msra.mxu0 0.0
    %2205 = vmatprep.subr.mxu0 0.0
    %2206 = vmatpush1.msra.mxu0 0.0
    %2207 = vmatprep.subr.mxu0 0.0
    %2208 = vmatpush1.msra.mxu0 0.0
    %2209 = vmatprep.subr.mxu0 0.0
    %2210 = vmatpush1.msra.mxu0 0.0
    %2211 = vmatprep.subr.mxu0 0.0
    %2212 = vmatpush1.msra.mxu0 0.0
    %2213 = vmatprep.subr.mxu0 0.0
    %2214 = vmatpush1.msra.mxu0 0.0
    %2215 = vmatprep.subr.mxu0 0.0
    %2216 = vmatpush1.msra.mxu0 0.0
    %2217 = vmatprep.mubr.f32.mxu0 0.0
    %v2218 = vand.u32 %v1685, 4294901760
    %2219 = vmatmul.mubr.f32.gmra.mrb[0].mxu0 %v2218
    %v2220 = vpop.f32.mrb[0].mxu0
    %v2221 = vadd.f32 %v2142, %v2220
    %v2222 = vpop.f32.mrb[0].mxu0
    %2223 = vdwg.mxu0
    %v2224 = vadd.f32 %v1683, %v2221
    %v2225 = vtanh.pop %v2224
    %v2226 = vsel %vm584, %v2225, %v2224
    %s2227 = scalar_lea.vmem %s4, 24
    %2228 = vst.msk [vmem:[%s2227] sm:$0xff] %vm586, %v2226
    %s2229 = scalar_lea.vmem %s0, 32
    %v2230 = vld [vmem:[%s2229] sm:$0xff]
    %v2232 = vsel %vm40, %v2226, 0
    %2234 = vmatprep.subr.mxu0 0.0
    %v2235 = vand.u32 %v27, 4294901760
    %2236 = vmatpush1.msra.mxu0 %v2235
    %2237 = vmatprep.subr.mxu0 0.0
    %v2238 = vand.u32 %v28, 4294901760
    %2239 = vmatpush1.msra.mxu0 %v2238
    %2240 = vmatprep.subr.mxu0 0.0
    %v2241 = vand.u32 %v29, 4294901760
    %2242 = vmatpush1.msra.mxu0 %v2241
    %2243 = vmatprep.subr.mxu0 0.0
    %v2244 = vand.u32 %v30, 4294901760
    %2245 = vmatpush1.msra.mxu0 %v2244
    %2246 = vmatprep.subr.mxu0 0.0
    %v2247 = vand.u32 %v31, 4294901760
    %2248 = vmatpush1.msra.mxu0 %v2247
    %2249 = vmatprep.subr.mxu0 0.0
    %v2250 = vand.u32 %v32, 4294901760
    %2251 = vmatpush1.msra.mxu0 %v2250
    %2252 = vmatprep.subr.mxu0 0.0
    %v2253 = vand.u32 %v33, 4294901760
    %2254 = vmatpush1.msra.mxu0 %v2253
    %2255 = vmatprep.subr.mxu0 0.0
    %v2256 = vand.u32 %v34, 4294901760
    %2257 = vmatpush1.msra.mxu0 %v2256
    %2258 = vmatprep.subr.mxu0 0.0
    %2259 = vmatpush1.msra.mxu0 0.0
    %2260 = vmatprep.subr.mxu0 0.0
    %2261 = vmatpush1.msra.mxu0 0.0
    %2262 = vmatprep.subr.mxu0 0.0
    %2263 = vmatpush1.msra.mxu0 0.0
    %2264 = vmatprep.subr.mxu0 0.0
    %2265 = vmatpush1.msra.mxu0 0.0
    %2266 = vmatprep.subr.mxu0 0.0
    %2267 = vmatpush1.msra.mxu0 0.0
    %2268 = vmatprep.subr.mxu0 0.0
    %2269 = vmatpush1.msra.mxu0 0.0
    %2270 = vmatprep.subr.mxu0 0.0
    %2271 = vmatpush1.msra.mxu0 0.0
    %2272 = vmatprep.subr.mxu0 0.0
    %2273 = vmatpush1.msra.mxu0 0.0
    %2274 = vmatprep.subr.mxu0 0.0
    %2275 = vmatpush1.msra.mxu0 0.0
    %2276 = vmatprep.subr.mxu0 0.0
    %2277 = vmatpush1.msra.mxu0 0.0
    %2278 = vmatprep.subr.mxu0 0.0
    %2279 = vmatpush1.msra.mxu0 0.0
    %2280 = vmatprep.subr.mxu0 0.0
    %2281 = vmatpush1.msra.mxu0 0.0
    %2282 = vmatprep.subr.mxu0 0.0
    %2283 = vmatpush1.msra.mxu0 0.0
    %2284 = vmatprep.subr.mxu0 0.0
    %2285 = vmatpush1.msra.mxu0 0.0
    %2286 = vmatprep.subr.mxu0 0.0
    %2287 = vmatpush1.msra.mxu0 0.0
    %2288 = vmatprep.subr.mxu0 0.0
    %2289 = vmatpush1.msra.mxu0 0.0
    %2290 = vmatprep.subr.mxu0 0.0
    %2291 = vmatpush1.msra.mxu0 0.0
    %2292 = vmatprep.subr.mxu0 0.0
    %2293 = vmatpush1.msra.mxu0 0.0
    %2294 = vmatprep.subr.mxu0 0.0
    %2295 = vmatpush1.msra.mxu0 0.0
    %2296 = vmatprep.subr.mxu0 0.0
    %2297 = vmatpush1.msra.mxu0 0.0
    %2298 = vmatprep.subr.mxu0 0.0
    %2299 = vmatpush1.msra.mxu0 0.0
    %2300 = vmatprep.subr.mxu0 0.0
    %2301 = vmatpush1.msra.mxu0 0.0
    %2302 = vmatprep.subr.mxu0 0.0
    %2303 = vmatpush1.msra.mxu0 0.0
    %2304 = vmatprep.subr.mxu0 0.0
    %2305 = vmatpush1.msra.mxu0 0.0
    %2306 = vmatprep.mubr.f32.mxu0 0.0
    %v2307 = vand.u32 %v2232, 4294901760
    %v2308 = vsub.f32 %v2232, %v2307
    %v2309 = vand.u32 %v2308, 4294901760
    %v2310 = vsub.f32 %v2308, %v2309
    %v2311 = vand.u32 %v2310, 4294901760
    %2312 = vmatmul.mubr.f32.gmra.mrb[0].mxu0 %v2311
    %v2313 = vpop.f32.mrb[0].mxu0
    %v2314 = vadd.f32 0.0, %v2313
    %v2315 = vpop.f32.mrb[0].mxu0
    %2316 = vdwg.mxu0
    %2317 = vmatprep.subr.mxu0 0.0
    %v2318 = vand.u32 %v27, 4294901760
    %v2319 = vsub.f32 %v27, %v2318
    %v2320 = vand.u32 %v2319, 4294901760
    %v2321 = vsub.f32 %v2319, %v2320
    %v2322 = vand.u32 %v2321, 4294901760
    %2323 = vmatpush1.msra.mxu0 %v2322
    %2324 = vmatprep.subr.mxu0 0.0
    %v2325 = vand.u32 %v28, 4294901760
    %v2326 = vsub.f32 %v28, %v2325
    %v2327 = vand.u32 %v2326, 4294901760
    %v2328 = vsub.f32 %v2326, %v2327
    %v2329 = vand.u32 %v2328, 4294901760
    %2330 = vmatpush1.msra.mxu0 %v2329
    %2331 = vmatprep.subr.mxu0 0.0
    %v2332 = vand.u32 %v29, 4294901760
    %v2333 = vsub.f32 %v29, %v2332
    %v2334 = vand.u32 %v2333, 4294901760
    %v2335 = vsub.f32 %v2333, %v2334
    %v2336 = vand.u32 %v2335, 4294901760
    %2337 = vmatpush1.msra.mxu0 %v2336
    %2338 = vmatprep.subr.mxu0 0.0
    %v2339 = vand.u32 %v30, 4294901760
    %v2340 = vsub.f32 %v30, %v2339
    %v2341 = vand.u32 %v2340, 4294901760
    %v2342 = vsub.f32 %v2340, %v2341
    %v2343 = vand.u32 %v2342, 4294901760
    %2344 = vmatpush1.msra.mxu0 %v2343
    %2345 = vmatprep.subr.mxu0 0.0
    %v2346 = vand.u32 %v31, 4294901760
    %v2347 = vsub.f32 %v31, %v2346
    %v2348 = vand.u32 %v2347, 4294901760
    %v2349 = vsub.f32 %v2347, %v2348
    %v2350 = vand.u32 %v2349, 4294901760
    %2351 = vmatpush1.msra.mxu0 %v2350
    %2352 = vmatprep.subr.mxu0 0.0
    %v2353 = vand.u32 %v32, 4294901760
    %v2354 = vsub.f32 %v32, %v2353
    %v2355 = vand.u32 %v2354, 4294901760
    %v2356 = vsub.f32 %v2354, %v2355
    %v2357 = vand.u32 %v2356, 4294901760
    %2358 = vmatpush1.msra.mxu0 %v2357
    %2359 = vmatprep.subr.mxu0 0.0
    %v2360 = vand.u32 %v33, 4294901760
    %v2361 = vsub.f32 %v33, %v2360
    %v2362 = vand.u32 %v2361, 4294901760
    %v2363 = vsub.f32 %v2361, %v2362
    %v2364 = vand.u32 %v2363, 4294901760
    %2365 = vmatpush1.msra.mxu0 %v2364
    %2366 = vmatprep.subr.mxu0 0.0
    %v2367 = vand.u32 %v34, 4294901760
    %v2368 = vsub.f32 %v34, %v2367
    %v2369 = vand.u32 %v2368, 4294901760
    %v2370 = vsub.f32 %v2368, %v2369
    %v2371 = vand.u32 %v2370, 4294901760
    %2372 = vmatpush1.msra.mxu0 %v2371
    %2373 = vmatprep.subr.mxu0 0.0
    %2374 = vmatpush1.msra.mxu0 0.0
    %2375 = vmatprep.subr.mxu0 0.0
    %2376 = vmatpush1.msra.mxu0 0.0
    %2377 = vmatprep.subr.mxu0 0.0
    %2378 = vmatpush1.msra.mxu0 0.0
    %2379 = vmatprep.subr.mxu0 0.0
    %2380 = vmatpush1.msra.mxu0 0.0
    %2381 = vmatprep.subr.mxu0 0.0
    %2382 = vmatpush1.msra.mxu0 0.0
    %2383 = vmatprep.subr.mxu0 0.0
    %2384 = vmatpush1.msra.mxu0 0.0
    %2385 = vmatprep.subr.mxu0 0.0
    %2386 = vmatpush1.msra.mxu0 0.0
    %2387 = vmatprep.subr.mxu0 0.0
    %2388 = vmatpush1.msra.mxu0 0.0
    %2389 = vmatprep.subr.mxu0 0.0
    %2390 = vmatpush1.msra.mxu0 0.0
    %2391 = vmatprep.subr.mxu0 0.0
    %2392 = vmatpush1.msra.mxu0 0.0
    %2393 = vmatprep.subr.mxu0 0.0
    %2394 = vmatpush1.msra.mxu0 0.0
    %2395 = vmatprep.subr.mxu0 0.0
    %2396 = vmatpush1.msra.mxu0 0.0
    %2397 = vmatprep.subr.mxu0 0.0
    %2398 = vmatpush1.msra.mxu0 0.0
    %2399 = vmatprep.subr.mxu0 0.0
    %2400 = vmatpush1.msra.mxu0 0.0
    %2401 = vmatprep.subr.mxu0 0.0
    %2402 = vmatpush1.msra.mxu0 0.0
    %2403 = vmatprep.subr.mxu0 0.0
    %2404 = vmatpush1.msra.mxu0 0.0
    %2405 = vmatprep.subr.mxu0 0.0
    %2406 = vmatpush1.msra.mxu0 0.0
    %2407 = vmatprep.subr.mxu0 0.0
    %2408 = vmatpush1.msra.mxu0 0.0
    %2409 = vmatprep.subr.mxu0 0.0
    %2410 = vmatpush1.msra.mxu0 0.0
    %2411 = vmatprep.subr.mxu0 0.0
    %2412 = vmatpush1.msra.mxu0 0.0
    %2413 = vmatprep.subr.mxu0 0.0
    %2414 = vmatpush1.msra.mxu0 0.0
    %2415 = vmatprep.subr.mxu0 0.0
    %2416 = vmatpush1.msra.mxu0 0.0
    %2417 = vmatprep.subr.mxu0 0.0
    %2418 = vmatpush1.msra.mxu0 0.0
    %2419 = vmatprep.subr.mxu0 0.0
    %2420 = vmatpush1.msra.mxu0 0.0
    %2421 = vmatprep.mubr.f32.mxu0 0.0
    %v2422 = vand.u32 %v2232, 4294901760
    %2423 = vmatmul.mubr.f32.gmra.mrb[0].mxu0 %v2422
    %v2424 = vpop.f32.mrb[0].mxu0
    %v2425 = vadd.f32 %v2314, %v2424
    %v2426 = vpop.f32.mrb[0].mxu0
    %2427 = vdwg.mxu0
    %2428 = vmatprep.subr.mxu0 0.0
    %v2429 = vand.u32 %v27, 4294901760
    %v2430 = vsub.f32 %v27, %v2429
    %2431 = vmatpush1.msra.mxu0 %v2430
    %2432 = vmatprep.subr.mxu0 0.0
    %v2433 = vand.u32 %v28, 4294901760
    %v2434 = vsub.f32 %v28, %v2433
    %2435 = vmatpush1.msra.mxu0 %v2434
    %2436 = vmatprep.subr.mxu0 0.0
    %v2437 = vand.u32 %v29, 4294901760
    %v2438 = vsub.f32 %v29, %v2437
    %2439 = vmatpush1.msra.mxu0 %v2438
    %2440 = vmatprep.subr.mxu0 0.0
    %v2441 = vand.u32 %v30, 4294901760
    %v2442 = vsub.f32 %v30, %v2441
    %2443 = vmatpush1.msra.mxu0 %v2442
    %2444 = vmatprep.subr.mxu0 0.0
    %v2445 = vand.u32 %v31, 4294901760
    %v2446 = vsub.f32 %v31, %v2445
    %2447 = vmatpush1.msra.mxu0 %v2446
    %2448 = vmatprep.subr.mxu0 0.0
    %v2449 = vand.u32 %v32, 4294901760
    %v2450 = vsub.f32 %v32, %v2449
    %2451 = vmatpush1.msra.mxu0 %v2450
    %2452 = vmatprep.subr.mxu0 0.0
    %v2453 = vand.u32 %v33, 4294901760
    %v2454 = vsub.f32 %v33, %v2453
    %2455 = vmatpush1.msra.mxu0 %v2454
    %2456 = vmatprep.subr.mxu0 0.0
    %v2457 = vand.u32 %v34, 4294901760
    %v2458 = vsub.f32 %v34, %v2457
    %2459 = vmatpush1.msra.mxu0 %v2458
    %2460 = vmatprep.subr.mxu0 0.0
    %2461 = vmatpush1.msra.mxu0 0.0
    %2462 = vmatprep.subr.mxu0 0.0
    %2463 = vmatpush1.msra.mxu0 0.0
    %2464 = vmatprep.subr.mxu0 0.0
    %2465 = vmatpush1.msra.mxu0 0.0
    %2466 = vmatprep.subr.mxu0 0.0
    %2467 = vmatpush1.msra.mxu0 0.0
    %2468 = vmatprep.subr.mxu0 0.0
    %2469 = vmatpush1.msra.mxu0 0.0
    %2470 = vmatprep.subr.mxu0 0.0
    %2471 = vmatpush1.msra.mxu0 0.0
    %2472 = vmatprep.subr.mxu0 0.0
    %2473 = vmatpush1.msra.mxu0 0.0
    %2474 = vmatprep.subr.mxu0 0.0
    %2475 = vmatpush1.msra.mxu0 0.0
    %2476 = vmatprep.subr.mxu0 0.0
    %2477 = vmatpush1.msra.mxu0 0.0
    %2478 = vmatprep.subr.mxu0 0.0
    %2479 = vmatpush1.msra.mxu0 0.0
    %2480 = vmatprep.subr.mxu0 0.0
    %2481 = vmatpush1.msra.mxu0 0.0
    %2482 = vmatprep.subr.mxu0 0.0
    %2483 = vmatpush1.msra.mxu0 0.0
    %2484 = vmatprep.subr.mxu0 0.0
    %2485 = vmatpush1.msra.mxu0 0.0
    %2486 = vmatprep.subr.mxu0 0.0
    %2487 = vmatpush1.msra.mxu0 0.0
    %2488 = vmatprep.subr.mxu0 0.0
    %2489 = vmatpush1.msra.mxu0 0.0
    %2490 = vmatprep.subr.mxu0 0.0
    %2491 = vmatpush1.msra.mxu0 0.0
    %2492 = vmatprep.subr.mxu0 0.0
    %2493 = vmatpush1.msra.mxu0 0.0
    %2494 = vmatprep.subr.mxu0 0.0
    %2495 = vmatpush1.msra.mxu0 0.0
    %2496 = vmatprep.subr.mxu0 0.0
    %2497 = vmatpush1.msra.mxu0 0.0
    %2498 = vmatprep.subr.mxu0 0.0
    %2499 = vmatpush1.msra.mxu0 0.0
    %2500 = vmatprep.subr.mxu0 0.0
    %2501 = vmatpush1.msra.mxu0 0.0
    %2502 = vmatprep.subr.mxu0 0.0
    %2503 = vmatpush1.msra.mxu0 0.0
    %2504 = vmatprep.subr.mxu0 0.0
    %2505 = vmatpush1.msra.mxu0 0.0
    %2506 = vmatprep.subr.mxu0 0.0
    %2507 = vmatpush1.msra.mxu0 0.0
    %2508 = vmatprep.mubr.f32.mxu0 0.0
    %v2509 = vand.u32 %v2232, 4294901760
    %v2510 = vsub.f32 %v2232, %v2509
    %2511 = vmatmul.mubr.f32.gmra.mrb[0].mxu0 %v2510
    %v2512 = vpop.f32.mrb[0].mxu0
    %v2513 = vadd.f32 %v2425, %v2512
    %v2514 = vpop.f32.mrb[0].mxu0
    %2515 = vdwg.mxu0
    %2516 = vmatprep.subr.mxu0 0.0
    %v2517 = vand.u32 %v27, 4294901760
    %2518 = vmatpush1.msra.mxu0 %v2517
    %2519 = vmatprep.subr.mxu0 0.0
    %v2520 = vand.u32 %v28, 4294901760
    %2521 = vmatpush1.msra.mxu0 %v2520
    %2522 = vmatprep.subr.mxu0 0.0
    %v2523 = vand.u32 %v29, 4294901760
    %2524 = vmatpush1.msra.mxu0 %v2523
    %2525 = vmatprep.subr.mxu0 0.0
    %v2526 = vand.u32 %v30, 4294901760
    %2527 = vmatpush1.msra.mxu0 %v2526
    %2528 = vmatprep.subr.mxu0 0.0
    %v2529 = vand.u32 %v31, 4294901760
    %2530 = vmatpush1.msra.mxu0 %v2529
    %2531 = vmatprep.subr.mxu0 0.0
    %v2532 = vand.u32 %v32, 4294901760
    %2533 = vmatpush1.msra.mxu0 %v2532
    %2534 = vmatprep.subr.mxu0 0.0
    %v2535 = vand.u32 %v33, 4294901760
    %2536 = vmatpush1.msra.mxu0 %v2535
    %2537 = vmatprep.subr.mxu0 0.0
    %v2538 = vand.u32 %v34, 4294901760
    %2539 = vmatpush1.msra.mxu0 %v2538
    %2540 = vmatprep.subr.mxu0 0.0
    %2541 = vmatpush1.msra.mxu0 0.0
    %2542 = vmatprep.subr.mxu0 0.0
    %2543 = vmatpush1.msra.mxu0 0.0
    %2544 = vmatprep.subr.mxu0 0.0
    %2545 = vmatpush1.msra.mxu0 0.0
    %2546 = vmatprep.subr.mxu0 0.0
    %2547 = vmatpush1.msra.mxu0 0.0
    %2548 = vmatprep.subr.mxu0 0.0
    %2549 = vmatpush1.msra.mxu0 0.0
    %2550 = vmatprep.subr.mxu0 0.0
    %2551 = vmatpush1.msra.mxu0 0.0
    %2552 = vmatprep.subr.mxu0 0.0
    %2553 = vmatpush1.msra.mxu0 0.0
    %2554 = vmatprep.subr.mxu0 0.0
    %2555 = vmatpush1.msra.mxu0 0.0
    %2556 = vmatprep.subr.mxu0 0.0
    %2557 = vmatpush1.msra.mxu0 0.0
    %2558 = vmatprep.subr.mxu0 0.0
    %2559 = vmatpush1.msra.mxu0 0.0
    %2560 = vmatprep.subr.mxu0 0.0
    %2561 = vmatpush1.msra.mxu0 0.0
    %2562 = vmatprep.subr.mxu0 0.0
    %2563 = vmatpush1.msra.mxu0 0.0
    %2564 = vmatprep.subr.mxu0 0.0
    %2565 = vmatpush1.msra.mxu0 0.0
    %2566 = vmatprep.subr.mxu0 0.0
    %2567 = vmatpush1.msra.mxu0 0.0
    %2568 = vmatprep.subr.mxu0 0.0
    %2569 = vmatpush1.msra.mxu0 0.0
    %2570 = vmatprep.subr.mxu0 0.0
    %2571 = vmatpush1.msra.mxu0 0.0
    %2572 = vmatprep.subr.mxu0 0.0
    %2573 = vmatpush1.msra.mxu0 0.0
    %2574 = vmatprep.subr.mxu0 0.0
    %2575 = vmatpush1.msra.mxu0 0.0
    %2576 = vmatprep.subr.mxu0 0.0
    %2577 = vmatpush1.msra.mxu0 0.0
    %2578 = vmatprep.subr.mxu0 0.0
    %2579 = vmatpush1.msra.mxu0 0.0
    %2580 = vmatprep.subr.mxu0 0.0
    %2581 = vmatpush1.msra.mxu0 0.0
    %2582 = vmatprep.subr.mxu0 0.0
    %2583 = vmatpush1.msra.mxu0 0.0
    %2584 = vmatprep.subr.mxu0 0.0
    %2585 = vmatpush1.msra.mxu0 0.0
    %2586 = vmatprep.subr.mxu0 0.0
    %2587 = vmatpush1.msra.mxu0 0.0
    %2588 = vmatprep.mubr.f32.mxu0 0.0
    %v2589 = vand.u32 %v2232, 4294901760
    %v2590 = vsub.f32 %v2232, %v2589
    %v2591 = vand.u32 %v2590, 4294901760
    %2592 = vmatmul.mubr.f32.gmra.mrb[0].mxu0 %v2591
    %v2593 = vpop.f32.mrb[0].mxu0
    %v2594 = vadd.f32 %v2513, %v2593
    %v2595 = vpop.f32.mrb[0].mxu0
    %2596 = vdwg.mxu0
    %2597 = vmatprep.subr.mxu0 0.0
    %v2598 = vand.u32 %v27, 4294901760
    %v2599 = vsub.f32 %v27, %v2598
    %v2600 = vand.u32 %v2599, 4294901760
    %2601 = vmatpush1.msra.mxu0 %v2600
    %2602 = vmatprep.subr.mxu0 0.0
    %v2603 = vand.u32 %v28, 4294901760
    %v2604 = vsub.f32 %v28, %v2603
    %v2605 = vand.u32 %v2604, 4294901760
    %2606 = vmatpush1.msra.mxu0 %v2605
    %2607 = vmatprep.subr.mxu0 0.0
    %v2608 = vand.u32 %v29, 4294901760
    %v2609 = vsub.f32 %v29, %v2608
    %v2610 = vand.u32 %v2609, 4294901760
    %2611 = vmatpush1.msra.mxu0 %v2610
    %2612 = vmatprep.subr.mxu0 0.0
    %v2613 = vand.u32 %v30, 4294901760
    %v2614 = vsub.f32 %v30, %v2613
    %v2615 = vand.u32 %v2614, 4294901760
    %2616 = vmatpush1.msra.mxu0 %v2615
    %2617 = vmatprep.subr.mxu0 0.0
    %v2618 = vand.u32 %v31, 4294901760
    %v2619 = vsub.f32 %v31, %v2618
    %v2620 = vand.u32 %v2619, 4294901760
    %2621 = vmatpush1.msra.mxu0 %v2620
    %2622 = vmatprep.subr.mxu0 0.0
    %v2623 = vand.u32 %v32, 4294901760
    %v2624 = vsub.f32 %v32, %v2623
    %v2625 = vand.u32 %v2624, 4294901760
    %2626 = vmatpush1.msra.mxu0 %v2625
    %2627 = vmatprep.subr.mxu0 0.0
    %v2628 = vand.u32 %v33, 4294901760
    %v2629 = vsub.f32 %v33, %v2628
    %v2630 = vand.u32 %v2629, 4294901760
    %2631 = vmatpush1.msra.mxu0 %v2630
    %2632 = vmatprep.subr.mxu0 0.0
    %v2633 = vand.u32 %v34, 4294901760
    %v2634 = vsub.f32 %v34, %v2633
    %v2635 = vand.u32 %v2634, 4294901760
    %2636 = vmatpush1.msra.mxu0 %v2635
    %2637 = vmatprep.subr.mxu0 0.0
    %2638 = vmatpush1.msra.mxu0 0.0
    %2639 = vmatprep.subr.mxu0 0.0
    %2640 = vmatpush1.msra.mxu0 0.0
    %2641 = vmatprep.subr.mxu0 0.0
    %2642 = vmatpush1.msra.mxu0 0.0
    %2643 = vmatprep.subr.mxu0 0.0
    %2644 = vmatpush1.msra.mxu0 0.0
    %2645 = vmatprep.subr.mxu0 0.0
    %2646 = vmatpush1.msra.mxu0 0.0
    %2647 = vmatprep.subr.mxu0 0.0
    %2648 = vmatpush1.msra.mxu0 0.0
    %2649 = vmatprep.subr.mxu0 0.0
    %2650 = vmatpush1.msra.mxu0 0.0
    %2651 = vmatprep.subr.mxu0 0.0
    %2652 = vmatpush1.msra.mxu0 0.0
    %2653 = vmatprep.subr.mxu0 0.0
    %2654 = vmatpush1.msra.mxu0 0.0
    %2655 = vmatprep.subr.mxu0 0.0
    %2656 = vmatpush1.msra.mxu0 0.0
    %2657 = vmatprep.subr.mxu0 0.0
    %2658 = vmatpush1.msra.mxu0 0.0
    %2659 = vmatprep.subr.mxu0 0.0
    %2660 = vmatpush1.msra.mxu0 0.0
    %2661 = vmatprep.subr.mxu0 0.0
    %2662 = vmatpush1.msra.mxu0 0.0
    %2663 = vmatprep.subr.mxu0 0.0
    %2664 = vmatpush1.msra.mxu0 0.0
    %2665 = vmatprep.subr.mxu0 0.0
    %2666 = vmatpush1.msra.mxu0 0.0
    %2667 = vmatprep.subr.mxu0 0.0
    %2668 = vmatpush1.msra.mxu0 0.0
    %2669 = vmatprep.subr.mxu0 0.0
    %2670 = vmatpush1.msra.mxu0 0.0
    %2671 = vmatprep.subr.mxu0 0.0
    %2672 = vmatpush1.msra.mxu0 0.0
    %2673 = vmatprep.subr.mxu0 0.0
    %2674 = vmatpush1.msra.mxu0 0.0
    %2675 = vmatprep.subr.mxu0 0.0
    %2676 = vmatpush1.msra.mxu0 0.0
    %2677 = vmatprep.subr.mxu0 0.0
    %2678 = vmatpush1.msra.mxu0 0.0
    %2679 = vmatprep.subr.mxu0 0.0
    %2680 = vmatpush1.msra.mxu0 0.0
    %2681 = vmatprep.subr.mxu0 0.0
    %2682 = vmatpush1.msra.mxu0 0.0
    %2683 = vmatprep.subr.mxu0 0.0
    %2684 = vmatpush1.msra.mxu0 0.0
    %2685 = vmatprep.mubr.f32.mxu0 0.0
    %v2686 = vand.u32 %v2232, 4294901760
    %2687 = vmatmul.mubr.f32.gmra.mrb[0].mxu0 %v2686
    %v2688 = vpop.f32.mrb[0].mxu0
    %v2689 = vadd.f32 %v2594, %v2688
    %v2690 = vpop.f32.mrb[0].mxu0
    %2691 = vdwg.mxu0
    %2692 = vmatprep.subr.mxu0 0.0
    %v2693 = vand.u32 %v27, 4294901760
    %2694 = vmatpush1.msra.mxu0 %v2693
    %2695 = vmatprep.subr.mxu0 0.0
    %v2696 = vand.u32 %v28, 4294901760
    %2697 = vmatpush1.msra.mxu0 %v2696
    %2698 = vmatprep.subr.mxu0 0.0
    %v2699 = vand.u32 %v29, 4294901760
    %2700 = vmatpush1.msra.mxu0 %v2699
    %2701 = vmatprep.subr.mxu0 0.0
    %v2702 = vand.u32 %v30, 4294901760
    %2703 = vmatpush1.msra.mxu0 %v2702
    %2704 = vmatprep.subr.mxu0 0.0
    %v2705 = vand.u32 %v31, 4294901760
    %2706 = vmatpush1.msra.mxu0 %v2705
    %2707 = vmatprep.subr.mxu0 0.0
    %v2708 = vand.u32 %v32, 4294901760
    %2709 = vmatpush1.msra.mxu0 %v2708
    %2710 = vmatprep.subr.mxu0 0.0
    %v2711 = vand.u32 %v33, 4294901760
    %2712 = vmatpush1.msra.mxu0 %v2711
    %2713 = vmatprep.subr.mxu0 0.0
    %v2714 = vand.u32 %v34, 4294901760
    %2715 = vmatpush1.msra.mxu0 %v2714
    %2716 = vmatprep.subr.mxu0 0.0
    %2717 = vmatpush1.msra.mxu0 0.0
    %2718 = vmatprep.subr.mxu0 0.0
    %2719 = vmatpush1.msra.mxu0 0.0
    %2720 = vmatprep.subr.mxu0 0.0
    %2721 = vmatpush1.msra.mxu0 0.0
    %2722 = vmatprep.subr.mxu0 0.0
    %2723 = vmatpush1.msra.mxu0 0.0
    %2724 = vmatprep.subr.mxu0 0.0
    %2725 = vmatpush1.msra.mxu0 0.0
    %2726 = vmatprep.subr.mxu0 0.0
    %2727 = vmatpush1.msra.mxu0 0.0
    %2728 = vmatprep.subr.mxu0 0.0
    %2729 = vmatpush1.msra.mxu0 0.0
    %2730 = vmatprep.subr.mxu0 0.0
    %2731 = vmatpush1.msra.mxu0 0.0
    %2732 = vmatprep.subr.mxu0 0.0
    %2733 = vmatpush1.msra.mxu0 0.0
    %2734 = vmatprep.subr.mxu0 0.0
    %2735 = vmatpush1.msra.mxu0 0.0
    %2736 = vmatprep.subr.mxu0 0.0
    %2737 = vmatpush1.msra.mxu0 0.0
    %2738 = vmatprep.subr.mxu0 0.0
    %2739 = vmatpush1.msra.mxu0 0.0
    %2740 = vmatprep.subr.mxu0 0.0
    %2741 = vmatpush1.msra.mxu0 0.0
    %2742 = vmatprep.subr.mxu0 0.0
    %2743 = vmatpush1.msra.mxu0 0.0
    %2744 = vmatprep.subr.mxu0 0.0
    %2745 = vmatpush1.msra.mxu0 0.0
    %2746 = vmatprep.subr.mxu0 0.0
    %2747 = vmatpush1.msra.mxu0 0.0
    %2748 = vmatprep.subr.mxu0 0.0
    %2749 = vmatpush1.msra.mxu0 0.0
    %2750 = vmatprep.subr.mxu0 0.0
    %2751 = vmatpush1.msra.mxu0 0.0
    %2752 = vmatprep.subr.mxu0 0.0
    %2753 = vmatpush1.msra.mxu0 0.0
    %2754 = vmatprep.subr.mxu0 0.0
    %2755 = vmatpush1.msra.mxu0 0.0
    %2756 = vmatprep.subr.mxu0 0.0
    %2757 = vmatpush1.msra.mxu0 0.0
    %2758 = vmatprep.subr.mxu0 0.0
    %2759 = vmatpush1.msra.mxu0 0.0
    %2760 = vmatprep.subr.mxu0 0.0
    %2761 = vmatpush1.msra.mxu0 0.0
    %2762 = vmatprep.subr.mxu0 0.0
    %2763 = vmatpush1.msra.mxu0 0.0
    %2764 = vmatprep.mubr.f32.mxu0 0.0
    %v2765 = vand.u32 %v2232, 4294901760
    %2766 = vmatmul.mubr.f32.gmra.mrb[0].mxu0 %v2765
    %v2767 = vpop.f32.mrb[0].mxu0
    %v2768 = vadd.f32 %v2689, %v2767
    %v2769 = vpop.f32.mrb[0].mxu0
    %2770 = vdwg.mxu0
    %v2771 = vadd.f32 %v2230, %v2768
    %v2772 = vtanh.pop %v2771
    %v2773 = vsel %vm584, %v2772, %v2771
    %s2774 = scalar_lea.vmem %s4, 32
    %2775 = vst.msk [vmem:[%s2774] sm:$0xff] %vm586, %v2773
    %s2776 = scalar_lea.vmem %s0, 40
    %v2777 = vld [vmem:[%s2776] sm:$0xff]
    %v2779 = vsel %vm40, %v2773, 0
    %2781 = vmatprep.subr.mxu0 0.0
    %v2782 = vand.u32 %v27, 4294901760
    %2783 = vmatpush1.msra.mxu0 %v2782
    %2784 = vmatprep.subr.mxu0 0.0
    %v2785 = vand.u32 %v28, 4294901760
    %2786 = vmatpush1.msra.mxu0 %v2785
    %2787 = vmatprep.subr.mxu0 0.0
    %v2788 = vand.u32 %v29, 4294901760
    %2789 = vmatpush1.msra.mxu0 %v2788
    %2790 = vmatprep.subr.mxu0 0.0
    %v2791 = vand.u32 %v30, 4294901760
    %2792 = vmatpush1.msra.mxu0 %v2791
    %2793 = vmatprep.subr.mxu0 0.0
    %v2794 = vand.u32 %v31, 4294901760
    %2795 = vmatpush1.msra.mxu0 %v2794
    %2796 = vmatprep.subr.mxu0 0.0
    %v2797 = vand.u32 %v32, 4294901760
    %2798 = vmatpush1.msra.mxu0 %v2797
    %2799 = vmatprep.subr.mxu0 0.0
    %v2800 = vand.u32 %v33, 4294901760
    %2801 = vmatpush1.msra.mxu0 %v2800
    %2802 = vmatprep.subr.mxu0 0.0
    %v2803 = vand.u32 %v34, 4294901760
    %2804 = vmatpush1.msra.mxu0 %v2803
    %2805 = vmatprep.subr.mxu0 0.0
    %2806 = vmatpush1.msra.mxu0 0.0
    %2807 = vmatprep.subr.mxu0 0.0
    %2808 = vmatpush1.msra.mxu0 0.0
    %2809 = vmatprep.subr.mxu0 0.0
    %2810 = vmatpush1.msra.mxu0 0.0
    %2811 = vmatprep.subr.mxu0 0.0
    %2812 = vmatpush1.msra.mxu0 0.0
    %2813 = vmatprep.subr.mxu0 0.0
    %2814 = vmatpush1.msra.mxu0 0.0
    %2815 = vmatprep.subr.mxu0 0.0
    %2816 = vmatpush1.msra.mxu0 0.0
    %2817 = vmatprep.subr.mxu0 0.0
    %2818 = vmatpush1.msra.mxu0 0.0
    %2819 = vmatprep.subr.mxu0 0.0
    %2820 = vmatpush1.msra.mxu0 0.0
    %2821 = vmatprep.subr.mxu0 0.0
    %2822 = vmatpush1.msra.mxu0 0.0
    %2823 = vmatprep.subr.mxu0 0.0
    %2824 = vmatpush1.msra.mxu0 0.0
    %2825 = vmatprep.subr.mxu0 0.0
    %2826 = vmatpush1.msra.mxu0 0.0
    %2827 = vmatprep.subr.mxu0 0.0
    %2828 = vmatpush1.msra.mxu0 0.0
    %2829 = vmatprep.subr.mxu0 0.0
    %2830 = vmatpush1.msra.mxu0 0.0
    %2831 = vmatprep.subr.mxu0 0.0
    %2832 = vmatpush1.msra.mxu0 0.0
    %2833 = vmatprep.subr.mxu0 0.0
    %2834 = vmatpush1.msra.mxu0 0.0
    %2835 = vmatprep.subr.mxu0 0.0
    %2836 = vmatpush1.msra.mxu0 0.0
    %2837 = vmatprep.subr.mxu0 0.0
    %2838 = vmatpush1.msra.mxu0 0.0
    %2839 = vmatprep.subr.mxu0 0.0
    %2840 = vmatpush1.msra.mxu0 0.0
    %2841 = vmatprep.subr.mxu0 0.0
    %2842 = vmatpush1.msra.mxu0 0.0
    %2843 = vmatprep.subr.mxu0 0.0
    %2844 = vmatpush1.msra.mxu0 0.0
    %2845 = vmatprep.subr.mxu0 0.0
    %2846 = vmatpush1.msra.mxu0 0.0
    %2847 = vmatprep.subr.mxu0 0.0
    %2848 = vmatpush1.msra.mxu0 0.0
    %2849 = vmatprep.subr.mxu0 0.0
    %2850 = vmatpush1.msra.mxu0 0.0
    %2851 = vmatprep.subr.mxu0 0.0
    %2852 = vmatpush1.msra.mxu0 0.0
    %2853 = vmatprep.mubr.f32.mxu0 0.0
    %v2854 = vand.u32 %v2779, 4294901760
    %v2855 = vsub.f32 %v2779, %v2854
    %v2856 = vand.u32 %v2855, 4294901760
    %v2857 = vsub.f32 %v2855, %v2856
    %v2858 = vand.u32 %v2857, 4294901760
    %2859 = vmatmul.mubr.f32.gmra.mrb[0].mxu0 %v2858
    %v2860 = vpop.f32.mrb[0].mxu0
    %v2861 = vadd.f32 0.0, %v2860
    %v2862 = vpop.f32.mrb[0].mxu0
    %2863 = vdwg.mxu0
    %2864 = vmatprep.subr.mxu0 0.0
    %v2865 = vand.u32 %v27, 4294901760
    %v2866 = vsub.f32 %v27, %v2865
    %v2867 = vand.u32 %v2866, 4294901760
    %v2868 = vsub.f32 %v2866, %v2867
    %v2869 = vand.u32 %v2868, 4294901760
    %2870 = vmatpush1.msra.mxu0 %v2869
    %2871 = vmatprep.subr.mxu0 0.0
    %v2872 = vand.u32 %v28, 4294901760
    %v2873 = vsub.f32 %v28, %v2872
    %v2874 = vand.u32 %v2873, 4294901760
    %v2875 = vsub.f32 %v2873, %v2874
    %v2876 = vand.u32 %v2875, 4294901760
    %2877 = vmatpush1.msra.mxu0 %v2876
    %2878 = vmatprep.subr.mxu0 0.0
    %v2879 = vand.u32 %v29, 4294901760
    %v2880 = vsub.f32 %v29, %v2879
    %v2881 = vand.u32 %v2880, 4294901760
    %v2882 = vsub.f32 %v2880, %v2881
    %v2883 = vand.u32 %v2882, 4294901760
    %2884 = vmatpush1.msra.mxu0 %v2883
    %2885 = vmatprep.subr.mxu0 0.0
    %v2886 = vand.u32 %v30, 4294901760
    %v2887 = vsub.f32 %v30, %v2886
    %v2888 = vand.u32 %v2887, 4294901760
    %v2889 = vsub.f32 %v2887, %v2888
    %v2890 = vand.u32 %v2889, 4294901760
    %2891 = vmatpush1.msra.mxu0 %v2890
    %2892 = vmatprep.subr.mxu0 0.0
    %v2893 = vand.u32 %v31, 4294901760
    %v2894 = vsub.f32 %v31, %v2893
    %v2895 = vand.u32 %v2894, 4294901760
    %v2896 = vsub.f32 %v2894, %v2895
    %v2897 = vand.u32 %v2896, 4294901760
    %2898 = vmatpush1.msra.mxu0 %v2897
    %2899 = vmatprep.subr.mxu0 0.0
    %v2900 = vand.u32 %v32, 4294901760
    %v2901 = vsub.f32 %v32, %v2900
    %v2902 = vand.u32 %v2901, 4294901760
    %v2903 = vsub.f32 %v2901, %v2902
    %v2904 = vand.u32 %v2903, 4294901760
    %2905 = vmatpush1.msra.mxu0 %v2904
    %2906 = vmatprep.subr.mxu0 0.0
    %v2907 = vand.u32 %v33, 4294901760
    %v2908 = vsub.f32 %v33, %v2907
    %v2909 = vand.u32 %v2908, 4294901760
    %v2910 = vsub.f32 %v2908, %v2909
    %v2911 = vand.u32 %v2910, 4294901760
    %2912 = vmatpush1.msra.mxu0 %v2911
    %2913 = vmatprep.subr.mxu0 0.0
    %v2914 = vand.u32 %v34, 4294901760
    %v2915 = vsub.f32 %v34, %v2914
    %v2916 = vand.u32 %v2915, 4294901760
    %v2917 = vsub.f32 %v2915, %v2916
    %v2918 = vand.u32 %v2917, 4294901760
    %2919 = vmatpush1.msra.mxu0 %v2918
    %2920 = vmatprep.subr.mxu0 0.0
    %2921 = vmatpush1.msra.mxu0 0.0
    %2922 = vmatprep.subr.mxu0 0.0
    %2923 = vmatpush1.msra.mxu0 0.0
    %2924 = vmatprep.subr.mxu0 0.0
    %2925 = vmatpush1.msra.mxu0 0.0
    %2926 = vmatprep.subr.mxu0 0.0
    %2927 = vmatpush1.msra.mxu0 0.0
    %2928 = vmatprep.subr.mxu0 0.0
    %2929 = vmatpush1.msra.mxu0 0.0
    %2930 = vmatprep.subr.mxu0 0.0
    %2931 = vmatpush1.msra.mxu0 0.0
    %2932 = vmatprep.subr.mxu0 0.0
    %2933 = vmatpush1.msra.mxu0 0.0
    %2934 = vmatprep.subr.mxu0 0.0
    %2935 = vmatpush1.msra.mxu0 0.0
    %2936 = vmatprep.subr.mxu0 0.0
    %2937 = vmatpush1.msra.mxu0 0.0
    %2938 = vmatprep.subr.mxu0 0.0
    %2939 = vmatpush1.msra.mxu0 0.0
    %2940 = vmatprep.subr.mxu0 0.0
    %2941 = vmatpush1.msra.mxu0 0.0
    %2942 = vmatprep.subr.mxu0 0.0
    %2943 = vmatpush1.msra.mxu0 0.0
    %2944 = vmatprep.subr.mxu0 0.0
    %2945 = vmatpush1.msra.mxu0 0.0
    %2946 = vmatprep.subr.mxu0 0.0
    %2947 = vmatpush1.msra.mxu0 0.0
    %2948 = vmatprep.subr.mxu0 0.0
    %2949 = vmatpush1.msra.mxu0 0.0
    %2950 = vmatprep.subr.mxu0 0.0
    %2951 = vmatpush1.msra.mxu0 0.0
    %2952 = vmatprep.subr.mxu0 0.0
    %2953 = vmatpush1.msra.mxu0 0.0
    %2954 = vmatprep.subr.mxu0 0.0
    %2955 = vmatpush1.msra.mxu0 0.0
    %2956 = vmatprep.subr.mxu0 0.0
    %2957 = vmatpush1.msra.mxu0 0.0
    %2958 = vmatprep.subr.mxu0 0.0
    %2959 = vmatpush1.msra.mxu0 0.0
    %2960 = vmatprep.subr.mxu0 0.0
    %2961 = vmatpush1.msra.mxu0 0.0
    %2962 = vmatprep.subr.mxu0 0.0
    %2963 = vmatpush1.msra.mxu0 0.0
    %2964 = vmatprep.subr.mxu0 0.0
    %2965 = vmatpush1.msra.mxu0 0.0
    %2966 = vmatprep.subr.mxu0 0.0
    %2967 = vmatpush1.msra.mxu0 0.0
    %2968 = vmatprep.mubr.f32.mxu0 0.0
    %v2969 = vand.u32 %v2779, 4294901760
    %2970 = vmatmul.mubr.f32.gmra.mrb[0].mxu0 %v2969
    %v2971 = vpop.f32.mrb[0].mxu0
    %v2972 = vadd.f32 %v2861, %v2971
    %v2973 = vpop.f32.mrb[0].mxu0
    %2974 = vdwg.mxu0
    %2975 = vmatprep.subr.mxu0 0.0
    %v2976 = vand.u32 %v27, 4294901760
    %v2977 = vsub.f32 %v27, %v2976
    %2978 = vmatpush1.msra.mxu0 %v2977
    %2979 = vmatprep.subr.mxu0 0.0
    %v2980 = vand.u32 %v28, 4294901760
    %v2981 = vsub.f32 %v28, %v2980
    %2982 = vmatpush1.msra.mxu0 %v2981
    %2983 = vmatprep.subr.mxu0 0.0
    %v2984 = vand.u32 %v29, 4294901760
    %v2985 = vsub.f32 %v29, %v2984
    %2986 = vmatpush1.msra.mxu0 %v2985
    %2987 = vmatprep.subr.mxu0 0.0
    %v2988 = vand.u32 %v30, 4294901760
    %v2989 = vsub.f32 %v30, %v2988
    %2990 = vmatpush1.msra.mxu0 %v2989
    %2991 = vmatprep.subr.mxu0 0.0
    %v2992 = vand.u32 %v31, 4294901760
    %v2993 = vsub.f32 %v31, %v2992
    %2994 = vmatpush1.msra.mxu0 %v2993
    %2995 = vmatprep.subr.mxu0 0.0
    %v2996 = vand.u32 %v32, 4294901760
    %v2997 = vsub.f32 %v32, %v2996
    %2998 = vmatpush1.msra.mxu0 %v2997
    %2999 = vmatprep.subr.mxu0 0.0
    %v3000 = vand.u32 %v33, 4294901760
    %v3001 = vsub.f32 %v33, %v3000
    %3002 = vmatpush1.msra.mxu0 %v3001
    %3003 = vmatprep.subr.mxu0 0.0
    %v3004 = vand.u32 %v34, 4294901760
    %v3005 = vsub.f32 %v34, %v3004
    %3006 = vmatpush1.msra.mxu0 %v3005
    %3007 = vmatprep.subr.mxu0 0.0
    %3008 = vmatpush1.msra.mxu0 0.0
    %3009 = vmatprep.subr.mxu0 0.0
    %3010 = vmatpush1.msra.mxu0 0.0
    %3011 = vmatprep.subr.mxu0 0.0
    %3012 = vmatpush1.msra.mxu0 0.0
    %3013 = vmatprep.subr.mxu0 0.0
    %3014 = vmatpush1.msra.mxu0 0.0
    %3015 = vmatprep.subr.mxu0 0.0
    %3016 = vmatpush1.msra.mxu0 0.0
    %3017 = vmatprep.subr.mxu0 0.0
    %3018 = vmatpush1.msra.mxu0 0.0
    %3019 = vmatprep.subr.mxu0 0.0
    %3020 = vmatpush1.msra.mxu0 0.0
    %3021 = vmatprep.subr.mxu0 0.0
    %3022 = vmatpush1.msra.mxu0 0.0
    %3023 = vmatprep.subr.mxu0 0.0
    %3024 = vmatpush1.msra.mxu0 0.0
    %3025 = vmatprep.subr.mxu0 0.0
    %3026 = vmatpush1.msra.mxu0 0.0
    %3027 = vmatprep.subr.mxu0 0.0
    %3028 = vmatpush1.msra.mxu0 0.0
    %3029 = vmatprep.subr.mxu0 0.0
    %3030 = vmatpush1.msra.mxu0 0.0
    %3031 = vmatprep.subr.mxu0 0.0
    %3032 = vmatpush1.msra.mxu0 0.0
    %3033 = vmatprep.subr.mxu0 0.0
    %3034 = vmatpush1.msra.mxu0 0.0
    %3035 = vmatprep.subr.mxu0 0.0
    %3036 = vmatpush1.msra.mxu0 0.0
    %3037 = vmatprep.subr.mxu0 0.0
    %3038 = vmatpush1.msra.mxu0 0.0
    %3039 = vmatprep.subr.mxu0 0.0
    %3040 = vmatpush1.msra.mxu0 0.0
    %3041 = vmatprep.subr.mxu0 0.0
    %3042 = vmatpush1.msra.mxu0 0.0
    %3043 = vmatprep.subr.mxu0 0.0
    %3044 = vmatpush1.msra.mxu0 0.0
    %3045 = vmatprep.subr.mxu0 0.0
    %3046 = vmatpush1.msra.mxu0 0.0
    %3047 = vmatprep.subr.mxu0 0.0
    %3048 = vmatpush1.msra.mxu0 0.0
    %3049 = vmatprep.subr.mxu0 0.0
    %3050 = vmatpush1.msra.mxu0 0.0
    %3051 = vmatprep.subr.mxu0 0.0
    %3052 = vmatpush1.msra.mxu0 0.0
    %3053 = vmatprep.subr.mxu0 0.0
    %3054 = vmatpush1.msra.mxu0 0.0
    %3055 = vmatprep.mubr.f32.mxu0 0.0
    %v3056 = vand.u32 %v2779, 4294901760
    %v3057 = vsub.f32 %v2779, %v3056
    %3058 = vmatmul.mubr.f32.gmra.mrb[0].mxu0 %v3057
    %v3059 = vpop.f32.mrb[0].mxu0
    %v3060 = vadd.f32 %v2972, %v3059
    %v3061 = vpop.f32.mrb[0].mxu0
    %3062 = vdwg.mxu0
    %3063 = vmatprep.subr.mxu0 0.0
    %v3064 = vand.u32 %v27, 4294901760
    %3065 = vmatpush1.msra.mxu0 %v3064
    %3066 = vmatprep.subr.mxu0 0.0
    %v3067 = vand.u32 %v28, 4294901760
    %3068 = vmatpush1.msra.mxu0 %v3067
    %3069 = vmatprep.subr.mxu0 0.0
    %v3070 = vand.u32 %v29, 4294901760
    %3071 = vmatpush1.msra.mxu0 %v3070
    %3072 = vmatprep.subr.mxu0 0.0
    %v3073 = vand.u32 %v30, 4294901760
    %3074 = vmatpush1.msra.mxu0 %v3073
    %3075 = vmatprep.subr.mxu0 0.0
    %v3076 = vand.u32 %v31, 4294901760
    %3077 = vmatpush1.msra.mxu0 %v3076
    %3078 = vmatprep.subr.mxu0 0.0
    %v3079 = vand.u32 %v32, 4294901760
    %3080 = vmatpush1.msra.mxu0 %v3079
    %3081 = vmatprep.subr.mxu0 0.0
    %v3082 = vand.u32 %v33, 4294901760
    %3083 = vmatpush1.msra.mxu0 %v3082
    %3084 = vmatprep.subr.mxu0 0.0
    %v3085 = vand.u32 %v34, 4294901760
    %3086 = vmatpush1.msra.mxu0 %v3085
    %3087 = vmatprep.subr.mxu0 0.0
    %3088 = vmatpush1.msra.mxu0 0.0
    %3089 = vmatprep.subr.mxu0 0.0
    %3090 = vmatpush1.msra.mxu0 0.0
    %3091 = vmatprep.subr.mxu0 0.0
    %3092 = vmatpush1.msra.mxu0 0.0
    %3093 = vmatprep.subr.mxu0 0.0
    %3094 = vmatpush1.msra.mxu0 0.0
    %3095 = vmatprep.subr.mxu0 0.0
    %3096 = vmatpush1.msra.mxu0 0.0
    %3097 = vmatprep.subr.mxu0 0.0
    %3098 = vmatpush1.msra.mxu0 0.0
    %3099 = vmatprep.subr.mxu0 0.0
    %3100 = vmatpush1.msra.mxu0 0.0
    %3101 = vmatprep.subr.mxu0 0.0
    %3102 = vmatpush1.msra.mxu0 0.0
    %3103 = vmatprep.subr.mxu0 0.0
    %3104 = vmatpush1.msra.mxu0 0.0
    %3105 = vmatprep.subr.mxu0 0.0
    %3106 = vmatpush1.msra.mxu0 0.0
    %3107 = vmatprep.subr.mxu0 0.0
    %3108 = vmatpush1.msra.mxu0 0.0
    %3109 = vmatprep.subr.mxu0 0.0
    %3110 = vmatpush1.msra.mxu0 0.0
    %3111 = vmatprep.subr.mxu0 0.0
    %3112 = vmatpush1.msra.mxu0 0.0
    %3113 = vmatprep.subr.mxu0 0.0
    %3114 = vmatpush1.msra.mxu0 0.0
    %3115 = vmatprep.subr.mxu0 0.0
    %3116 = vmatpush1.msra.mxu0 0.0
    %3117 = vmatprep.subr.mxu0 0.0
    %3118 = vmatpush1.msra.mxu0 0.0
    %3119 = vmatprep.subr.mxu0 0.0
    %3120 = vmatpush1.msra.mxu0 0.0
    %3121 = vmatprep.subr.mxu0 0.0
    %3122 = vmatpush1.msra.mxu0 0.0
    %3123 = vmatprep.subr.mxu0 0.0
    %3124 = vmatpush1.msra.mxu0 0.0
    %3125 = vmatprep.subr.mxu0 0.0
    %3126 = vmatpush1.msra.mxu0 0.0
    %3127 = vmatprep.subr.mxu0 0.0
    %3128 = vmatpush1.msra.mxu0 0.0
    %3129 = vmatprep.subr.mxu0 0.0
    %3130 = vmatpush1.msra.mxu0 0.0
    %3131 = vmatprep.subr.mxu0 0.0
    %3132 = vmatpush1.msra.mxu0 0.0
    %3133 = vmatprep.subr.mxu0 0.0
    %3134 = vmatpush1.msra.mxu0 0.0
    %3135 = vmatprep.mubr.f32.mxu0 0.0
    %v3136 = vand.u32 %v2779, 4294901760
    %v3137 = vsub.f32 %v2779, %v3136
    %v3138 = vand.u32 %v3137, 4294901760
    %3139 = vmatmul.mubr.f32.gmra.mrb[0].mxu0 %v3138
    %v3140 = vpop.f32.mrb[0].mxu0
    %v3141 = vadd.f32 %v3060, %v3140
    %v3142 = vpop.f32.mrb[0].mxu0
    %3143 = vdwg.mxu0
    %3144 = vmatprep.subr.mxu0 0.0
    %v3145 = vand.u32 %v27, 4294901760
    %v3146 = vsub.f32 %v27, %v3145
    %v3147 = vand.u32 %v3146, 4294901760
    %3148 = vmatpush1.msra.mxu0 %v3147
    %3149 = vmatprep.subr.mxu0 0.0
    %v3150 = vand.u32 %v28, 4294901760
    %v3151 = vsub.f32 %v28, %v3150
    %v3152 = vand.u32 %v3151, 4294901760
    %3153 = vmatpush1.msra.mxu0 %v3152
    %3154 = vmatprep.subr.mxu0 0.0
    %v3155 = vand.u32 %v29, 4294901760
    %v3156 = vsub.f32 %v29, %v3155
    %v3157 = vand.u32 %v3156, 4294901760
    %3158 = vmatpush1.msra.mxu0 %v3157
    %3159 = vmatprep.subr.mxu0 0.0
    %v3160 = vand.u32 %v30, 4294901760
    %v3161 = vsub.f32 %v30, %v3160
    %v3162 = vand.u32 %v3161, 4294901760
    %3163 = vmatpush1.msra.mxu0 %v3162
    %3164 = vmatprep.subr.mxu0 0.0
    %v3165 = vand.u32 %v31, 4294901760
    %v3166 = vsub.f32 %v31, %v3165
    %v3167 = vand.u32 %v3166, 4294901760
    %3168 = vmatpush1.msra.mxu0 %v3167
    %3169 = vmatprep.subr.mxu0 0.0
    %v3170 = vand.u32 %v32, 4294901760
    %v3171 = vsub.f32 %v32, %v3170
    %v3172 = vand.u32 %v3171, 4294901760
    %3173 = vmatpush1.msra.mxu0 %v3172
    %3174 = vmatprep.subr.mxu0 0.0
    %v3175 = vand.u32 %v33, 4294901760
    %v3176 = vsub.f32 %v33, %v3175
    %v3177 = vand.u32 %v3176, 4294901760
    %3178 = vmatpush1.msra.mxu0 %v3177
    %3179 = vmatprep.subr.mxu0 0.0
    %v3180 = vand.u32 %v34, 4294901760
    %v3181 = vsub.f32 %v34, %v3180
    %v3182 = vand.u32 %v3181, 4294901760
    %3183 = vmatpush1.msra.mxu0 %v3182
    %3184 = vmatprep.subr.mxu0 0.0
    %3185 = vmatpush1.msra.mxu0 0.0
    %3186 = vmatprep.subr.mxu0 0.0
    %3187 = vmatpush1.msra.mxu0 0.0
    %3188 = vmatprep.subr.mxu0 0.0
    %3189 = vmatpush1.msra.mxu0 0.0
    %3190 = vmatprep.subr.mxu0 0.0
    %3191 = vmatpush1.msra.mxu0 0.0
    %3192 = vmatprep.subr.mxu0 0.0
    %3193 = vmatpush1.msra.mxu0 0.0
    %3194 = vmatprep.subr.mxu0 0.0
    %3195 = vmatpush1.msra.mxu0 0.0
    %3196 = vmatprep.subr.mxu0 0.0
    %3197 = vmatpush1.msra.mxu0 0.0
    %3198 = vmatprep.subr.mxu0 0.0
    %3199 = vmatpush1.msra.mxu0 0.0
    %3200 = vmatprep.subr.mxu0 0.0
    %3201 = vmatpush1.msra.mxu0 0.0
    %3202 = vmatprep.subr.mxu0 0.0
    %3203 = vmatpush1.msra.mxu0 0.0
    %3204 = vmatprep.subr.mxu0 0.0
    %3205 = vmatpush1.msra.mxu0 0.0
    %3206 = vmatprep.subr.mxu0 0.0
    %3207 = vmatpush1.msra.mxu0 0.0
    %3208 = vmatprep.subr.mxu0 0.0
    %3209 = vmatpush1.msra.mxu0 0.0
    %3210 = vmatprep.subr.mxu0 0.0
    %3211 = vmatpush1.msra.mxu0 0.0
    %3212 = vmatprep.subr.mxu0 0.0
    %3213 = vmatpush1.msra.mxu0 0.0
    %3214 = vmatprep.subr.mxu0 0.0
    %3215 = vmatpush1.msra.mxu0 0.0
    %3216 = vmatprep.subr.mxu0 0.0
    %3217 = vmatpush1.msra.mxu0 0.0
    %3218 = vmatprep.subr.mxu0 0.0
    %3219 = vmatpush1.msra.mxu0 0.0
    %3220 = vmatprep.subr.mxu0 0.0
    %3221 = vmatpush1.msra.mxu0 0.0
    %3222 = vmatprep.subr.mxu0 0.0
    %3223 = vmatpush1.msra.mxu0 0.0
    %3224 = vmatprep.subr.mxu0 0.0
    %3225 = vmatpush1.msra.mxu0 0.0
    %3226 = vmatprep.subr.mxu0 0.0
    %3227 = vmatpush1.msra.mxu0 0.0
    %3228 = vmatprep.subr.mxu0 0.0
    %3229 = vmatpush1.msra.mxu0 0.0
    %3230 = vmatprep.subr.mxu0 0.0
    %3231 = vmatpush1.msra.mxu0 0.0
    %3232 = vmatprep.mubr.f32.mxu0 0.0
    %v3233 = vand.u32 %v2779, 4294901760
    %3234 = vmatmul.mubr.f32.gmra.mrb[0].mxu0 %v3233
    %v3235 = vpop.f32.mrb[0].mxu0
    %v3236 = vadd.f32 %v3141, %v3235
    %v3237 = vpop.f32.mrb[0].mxu0
    %3238 = vdwg.mxu0
    %3239 = vmatprep.subr.mxu0 0.0
    %v3240 = vand.u32 %v27, 4294901760
    %3241 = vmatpush1.msra.mxu0 %v3240
    %3242 = vmatprep.subr.mxu0 0.0
    %v3243 = vand.u32 %v28, 4294901760
    %3244 = vmatpush1.msra.mxu0 %v3243
    %3245 = vmatprep.subr.mxu0 0.0
    %v3246 = vand.u32 %v29, 4294901760
    %3247 = vmatpush1.msra.mxu0 %v3246
    %3248 = vmatprep.subr.mxu0 0.0
    %v3249 = vand.u32 %v30, 4294901760
    %3250 = vmatpush1.msra.mxu0 %v3249
    %3251 = vmatprep.subr.mxu0 0.0
    %v3252 = vand.u32 %v31, 4294901760
    %3253 = vmatpush1.msra.mxu0 %v3252
    %3254 = vmatprep.subr.mxu0 0.0
    %v3255 = vand.u32 %v32, 4294901760
    %3256 = vmatpush1.msra.mxu0 %v3255
    %3257 = vmatprep.subr.mxu0 0.0
    %v3258 = vand.u32 %v33, 4294901760
    %3259 = vmatpush1.msra.mxu0 %v3258
    %3260 = vmatprep.subr.mxu0 0.0
    %v3261 = vand.u32 %v34, 4294901760
    %3262 = vmatpush1.msra.mxu0 %v3261
    %3263 = vmatprep.subr.mxu0 0.0
    %3264 = vmatpush1.msra.mxu0 0.0
    %3265 = vmatprep.subr.mxu0 0.0
    %3266 = vmatpush1.msra.mxu0 0.0
    %3267 = vmatprep.subr.mxu0 0.0
    %3268 = vmatpush1.msra.mxu0 0.0
    %3269 = vmatprep.subr.mxu0 0.0
    %3270 = vmatpush1.msra.mxu0 0.0
    %3271 = vmatprep.subr.mxu0 0.0
    %3272 = vmatpush1.msra.mxu0 0.0
    %3273 = vmatprep.subr.mxu0 0.0
    %3274 = vmatpush1.msra.mxu0 0.0
    %3275 = vmatprep.subr.mxu0 0.0
    %3276 = vmatpush1.msra.mxu0 0.0
    %3277 = vmatprep.subr.mxu0 0.0
    %3278 = vmatpush1.msra.mxu0 0.0
    %3279 = vmatprep.subr.mxu0 0.0
    %3280 = vmatpush1.msra.mxu0 0.0
    %3281 = vmatprep.subr.mxu0 0.0
    %3282 = vmatpush1.msra.mxu0 0.0
    %3283 = vmatprep.subr.mxu0 0.0
    %3284 = vmatpush1.msra.mxu0 0.0
    %3285 = vmatprep.subr.mxu0 0.0
    %3286 = vmatpush1.msra.mxu0 0.0
    %3287 = vmatprep.subr.mxu0 0.0
    %3288 = vmatpush1.msra.mxu0 0.0
    %3289 = vmatprep.subr.mxu0 0.0
    %3290 = vmatpush1.msra.mxu0 0.0
    %3291 = vmatprep.subr.mxu0 0.0
    %3292 = vmatpush1.msra.mxu0 0.0
    %3293 = vmatprep.subr.mxu0 0.0
    %3294 = vmatpush1.msra.mxu0 0.0
    %3295 = vmatprep.subr.mxu0 0.0
    %3296 = vmatpush1.msra.mxu0 0.0
    %3297 = vmatprep.subr.mxu0 0.0
    %3298 = vmatpush1.msra.mxu0 0.0
    %3299 = vmatprep.subr.mxu0 0.0
    %3300 = vmatpush1.msra.mxu0 0.0
    %3301 = vmatprep.subr.mxu0 0.0
    %3302 = vmatpush1.msra.mxu0 0.0
    %3303 = vmatprep.subr.mxu0 0.0
    %3304 = vmatpush1.msra.mxu0 0.0
    %3305 = vmatprep.subr.mxu0 0.0
    %3306 = vmatpush1.msra.mxu0 0.0
    %3307 = vmatprep.subr.mxu0 0.0
    %3308 = vmatpush1.msra.mxu0 0.0
    %3309 = vmatprep.subr.mxu0 0.0
    %3310 = vmatpush1.msra.mxu0 0.0
    %3311 = vmatprep.mubr.f32.mxu0 0.0
    %v3312 = vand.u32 %v2779, 4294901760
    %3313 = vmatmul.mubr.f32.gmra.mrb[0].mxu0 %v3312
    %v3314 = vpop.f32.mrb[0].mxu0
    %v3315 = vadd.f32 %v3236, %v3314
    %v3316 = vpop.f32.mrb[0].mxu0
    %3317 = vdwg.mxu0
    %v3318 = vadd.f32 %v2777, %v3315
    %v3319 = vtanh.pop %v3318
    %v3320 = vsel %vm584, %v3319, %v3318
    %s3321 = scalar_lea.vmem %s4, 40
    %3322 = vst.msk [vmem:[%s3321] sm:$0xff] %vm586, %v3320
    %s3323 = scalar_lea.vmem %s0, 48
    %v3324 = vld [vmem:[%s3323] sm:$0xff]
    %v3326 = vsel %vm40, %v3320, 0
    %3328 = vmatprep.subr.mxu0 0.0
    %v3329 = vand.u32 %v27, 4294901760
    %3330 = vmatpush1.msra.mxu0 %v3329
    %3331 = vmatprep.subr.mxu0 0.0
    %v3332 = vand.u32 %v28, 4294901760
    %3333 = vmatpush1.msra.mxu0 %v3332
    %3334 = vmatprep.subr.mxu0 0.0
    %v3335 = vand.u32 %v29, 4294901760
    %3336 = vmatpush1.msra.mxu0 %v3335
    %3337 = vmatprep.subr.mxu0 0.0
    %v3338 = vand.u32 %v30, 4294901760
    %3339 = vmatpush1.msra.mxu0 %v3338
    %3340 = vmatprep.subr.mxu0 0.0
    %v3341 = vand.u32 %v31, 4294901760
    %3342 = vmatpush1.msra.mxu0 %v3341
    %3343 = vmatprep.subr.mxu0 0.0
    %v3344 = vand.u32 %v32, 4294901760
    %3345 = vmatpush1.msra.mxu0 %v3344
    %3346 = vmatprep.subr.mxu0 0.0
    %v3347 = vand.u32 %v33, 4294901760
    %3348 = vmatpush1.msra.mxu0 %v3347
    %3349 = vmatprep.subr.mxu0 0.0
    %v3350 = vand.u32 %v34, 4294901760
    %3351 = vmatpush1.msra.mxu0 %v3350
    %3352 = vmatprep.subr.mxu0 0.0
    %3353 = vmatpush1.msra.mxu0 0.0
    %3354 = vmatprep.subr.mxu0 0.0
    %3355 = vmatpush1.msra.mxu0 0.0
    %3356 = vmatprep.subr.mxu0 0.0
    %3357 = vmatpush1.msra.mxu0 0.0
    %3358 = vmatprep.subr.mxu0 0.0
    %3359 = vmatpush1.msra.mxu0 0.0
    %3360 = vmatprep.subr.mxu0 0.0
    %3361 = vmatpush1.msra.mxu0 0.0
    %3362 = vmatprep.subr.mxu0 0.0
    %3363 = vmatpush1.msra.mxu0 0.0
    %3364 = vmatprep.subr.mxu0 0.0
    %3365 = vmatpush1.msra.mxu0 0.0
    %3366 = vmatprep.subr.mxu0 0.0
    %3367 = vmatpush1.msra.mxu0 0.0
    %3368 = vmatprep.subr.mxu0 0.0
    %3369 = vmatpush1.msra.mxu0 0.0
    %3370 = vmatprep.subr.mxu0 0.0
    %3371 = vmatpush1.msra.mxu0 0.0
    %3372 = vmatprep.subr.mxu0 0.0
    %3373 = vmatpush1.msra.mxu0 0.0
    %3374 = vmatprep.subr.mxu0 0.0
    %3375 = vmatpush1.msra.mxu0 0.0
    %3376 = vmatprep.subr.mxu0 0.0
    %3377 = vmatpush1.msra.mxu0 0.0
    %3378 = vmatprep.subr.mxu0 0.0
    %3379 = vmatpush1.msra.mxu0 0.0
    %3380 = vmatprep.subr.mxu0 0.0
    %3381 = vmatpush1.msra.mxu0 0.0
    %3382 = vmatprep.subr.mxu0 0.0
    %3383 = vmatpush1.msra.mxu0 0.0
    %3384 = vmatprep.subr.mxu0 0.0
    %3385 = vmatpush1.msra.mxu0 0.0
    %3386 = vmatprep.subr.mxu0 0.0
    %3387 = vmatpush1.msra.mxu0 0.0
    %3388 = vmatprep.subr.mxu0 0.0
    %3389 = vmatpush1.msra.mxu0 0.0
    %3390 = vmatprep.subr.mxu0 0.0
    %3391 = vmatpush1.msra.mxu0 0.0
    %3392 = vmatprep.subr.mxu0 0.0
    %3393 = vmatpush1.msra.mxu0 0.0
    %3394 = vmatprep.subr.mxu0 0.0
    %3395 = vmatpush1.msra.mxu0 0.0
    %3396 = vmatprep.subr.mxu0 0.0
    %3397 = vmatpush1.msra.mxu0 0.0
    %3398 = vmatprep.subr.mxu0 0.0
    %3399 = vmatpush1.msra.mxu0 0.0
    %3400 = vmatprep.mubr.f32.mxu0 0.0
    %v3401 = vand.u32 %v3326, 4294901760
    %v3402 = vsub.f32 %v3326, %v3401
    %v3403 = vand.u32 %v3402, 4294901760
    %v3404 = vsub.f32 %v3402, %v3403
    %v3405 = vand.u32 %v3404, 4294901760
    %3406 = vmatmul.mubr.f32.gmra.mrb[0].mxu0 %v3405
    %v3407 = vpop.f32.mrb[0].mxu0
    %v3408 = vadd.f32 0.0, %v3407
    %v3409 = vpop.f32.mrb[0].mxu0
    %3410 = vdwg.mxu0
    %3411 = vmatprep.subr.mxu0 0.0
    %v3412 = vand.u32 %v27, 4294901760
    %v3413 = vsub.f32 %v27, %v3412
    %v3414 = vand.u32 %v3413, 4294901760
    %v3415 = vsub.f32 %v3413, %v3414
    %v3416 = vand.u32 %v3415, 4294901760
    %3417 = vmatpush1.msra.mxu0 %v3416
    %3418 = vmatprep.subr.mxu0 0.0
    %v3419 = vand.u32 %v28, 4294901760
    %v3420 = vsub.f32 %v28, %v3419
    %v3421 = vand.u32 %v3420, 4294901760
    %v3422 = vsub.f32 %v3420, %v3421
    %v3423 = vand.u32 %v3422, 4294901760
    %3424 = vmatpush1.msra.mxu0 %v3423
    %3425 = vmatprep.subr.mxu0 0.0
    %v3426 = vand.u32 %v29, 4294901760
    %v3427 = vsub.f32 %v29, %v3426
    %v3428 = vand.u32 %v3427, 4294901760
    %v3429 = vsub.f32 %v3427, %v3428
    %v3430 = vand.u32 %v3429, 4294901760
    %3431 = vmatpush1.msra.mxu0 %v3430
    %3432 = vmatprep.subr.mxu0 0.0
    %v3433 = vand.u32 %v30, 4294901760
    %v3434 = vsub.f32 %v30, %v3433
    %v3435 = vand.u32 %v3434, 4294901760
    %v3436 = vsub.f32 %v3434, %v3435
    %v3437 = vand.u32 %v3436, 4294901760
    %3438 = vmatpush1.msra.mxu0 %v3437
    %3439 = vmatprep.subr.mxu0 0.0
    %v3440 = vand.u32 %v31, 4294901760
    %v3441 = vsub.f32 %v31, %v3440
    %v3442 = vand.u32 %v3441, 4294901760
    %v3443 = vsub.f32 %v3441, %v3442
    %v3444 = vand.u32 %v3443, 4294901760
    %3445 = vmatpush1.msra.mxu0 %v3444
    %3446 = vmatprep.subr.mxu0 0.0
    %v3447 = vand.u32 %v32, 4294901760
    %v3448 = vsub.f32 %v32, %v3447
    %v3449 = vand.u32 %v3448, 4294901760
    %v3450 = vsub.f32 %v3448, %v3449
    %v3451 = vand.u32 %v3450, 4294901760
    %3452 = vmatpush1.msra.mxu0 %v3451
    %3453 = vmatprep.subr.mxu0 0.0
    %v3454 = vand.u32 %v33, 4294901760
    %v3455 = vsub.f32 %v33, %v3454
    %v3456 = vand.u32 %v3455, 4294901760
    %v3457 = vsub.f32 %v3455, %v3456
    %v3458 = vand.u32 %v3457, 4294901760
    %3459 = vmatpush1.msra.mxu0 %v3458
    %3460 = vmatprep.subr.mxu0 0.0
    %v3461 = vand.u32 %v34, 4294901760
    %v3462 = vsub.f32 %v34, %v3461
    %v3463 = vand.u32 %v3462, 4294901760
    %v3464 = vsub.f32 %v3462, %v3463
    %v3465 = vand.u32 %v3464, 4294901760
    %3466 = vmatpush1.msra.mxu0 %v3465
    %3467 = vmatprep.subr.mxu0 0.0
    %3468 = vmatpush1.msra.mxu0 0.0
    %3469 = vmatprep.subr.mxu0 0.0
    %3470 = vmatpush1.msra.mxu0 0.0
    %3471 = vmatprep.subr.mxu0 0.0
    %3472 = vmatpush1.msra.mxu0 0.0
    %3473 = vmatprep.subr.mxu0 0.0
    %3474 = vmatpush1.msra.mxu0 0.0
    %3475 = vmatprep.subr.mxu0 0.0
    %3476 = vmatpush1.msra.mxu0 0.0
    %3477 = vmatprep.subr.mxu0 0.0
    %3478 = vmatpush1.msra.mxu0 0.0
    %3479 = vmatprep.subr.mxu0 0.0
    %3480 = vmatpush1.msra.mxu0 0.0
    %3481 = vmatprep.subr.mxu0 0.0
    %3482 = vmatpush1.msra.mxu0 0.0
    %3483 = vmatprep.subr.mxu0 0.0
    %3484 = vmatpush1.msra.mxu0 0.0
    %3485 = vmatprep.subr.mxu0 0.0
    %3486 = vmatpush1.msra.mxu0 0.0
    %3487 = vmatprep.subr.mxu0 0.0
    %3488 = vmatpush1.msra.mxu0 0.0
    %3489 = vmatprep.subr.mxu0 0.0
    %3490 = vmatpush1.msra.mxu0 0.0
    %3491 = vmatprep.subr.mxu0 0.0
    %3492 = vmatpush1.msra.mxu0 0.0
    %3493 = vmatprep.subr.mxu0 0.0
    %3494 = vmatpush1.msra.mxu0 0.0
    %3495 = vmatprep.subr.mxu0 0.0
    %3496 = vmatpush1.msra.mxu0 0.0
    %3497 = vmatprep.subr.mxu0 0.0
    %3498 = vmatpush1.msra.mxu0 0.0
    %3499 = vmatprep.subr.mxu0 0.0
    %3500 = vmatpush1.msra.mxu0 0.0
    %3501 = vmatprep.subr.mxu0 0.0
    %3502 = vmatpush1.msra.mxu0 0.0
    %3503 = vmatprep.subr.mxu0 0.0
    %3504 = vmatpush1.msra.mxu0 0.0
    %3505 = vmatprep.subr.mxu0 0.0
    %3506 = vmatpush1.msra.mxu0 0.0
    %3507 = vmatprep.subr.mxu0 0.0
    %3508 = vmatpush1.msra.mxu0 0.0
    %3509 = vmatprep.subr.mxu0 0.0
    %3510 = vmatpush1.msra.mxu0 0.0
    %3511 = vmatprep.subr.mxu0 0.0
    %3512 = vmatpush1.msra.mxu0 0.0
    %3513 = vmatprep.subr.mxu0 0.0
    %3514 = vmatpush1.msra.mxu0 0.0
    %3515 = vmatprep.mubr.f32.mxu0 0.0
    %v3516 = vand.u32 %v3326, 4294901760
    %3517 = vmatmul.mubr.f32.gmra.mrb[0].mxu0 %v3516
    %v3518 = vpop.f32.mrb[0].mxu0
    %v3519 = vadd.f32 %v3408, %v3518
    %v3520 = vpop.f32.mrb[0].mxu0
    %3521 = vdwg.mxu0
    %3522 = vmatprep.subr.mxu0 0.0
    %v3523 = vand.u32 %v27, 4294901760
    %v3524 = vsub.f32 %v27, %v3523
    %3525 = vmatpush1.msra.mxu0 %v3524
    %3526 = vmatprep.subr.mxu0 0.0
    %v3527 = vand.u32 %v28, 4294901760
    %v3528 = vsub.f32 %v28, %v3527
    %3529 = vmatpush1.msra.mxu0 %v3528
    %3530 = vmatprep.subr.mxu0 0.0
    %v3531 = vand.u32 %v29, 4294901760
    %v3532 = vsub.f32 %v29, %v3531
    %3533 = vmatpush1.msra.mxu0 %v3532
    %3534 = vmatprep.subr.mxu0 0.0
    %v3535 = vand.u32 %v30, 4294901760
    %v3536 = vsub.f32 %v30, %v3535
    %3537 = vmatpush1.msra.mxu0 %v3536
    %3538 = vmatprep.subr.mxu0 0.0
    %v3539 = vand.u32 %v31, 4294901760
    %v3540 = vsub.f32 %v31, %v3539
    %3541 = vmatpush1.msra.mxu0 %v3540
    %3542 = vmatprep.subr.mxu0 0.0
    %v3543 = vand.u32 %v32, 4294901760
    %v3544 = vsub.f32 %v32, %v3543
    %3545 = vmatpush1.msra.mxu0 %v3544
    %3546 = vmatprep.subr.mxu0 0.0
    %v3547 = vand.u32 %v33, 4294901760
    %v3548 = vsub.f32 %v33, %v3547
    %3549 = vmatpush1.msra.mxu0 %v3548
    %3550 = vmatprep.subr.mxu0 0.0
    %v3551 = vand.u32 %v34, 4294901760
    %v3552 = vsub.f32 %v34, %v3551
    %3553 = vmatpush1.msra.mxu0 %v3552
    %3554 = vmatprep.subr.mxu0 0.0
    %3555 = vmatpush1.msra.mxu0 0.0
    %3556 = vmatprep.subr.mxu0 0.0
    %3557 = vmatpush1.msra.mxu0 0.0
    %3558 = vmatprep.subr.mxu0 0.0
    %3559 = vmatpush1.msra.mxu0 0.0
    %3560 = vmatprep.subr.mxu0 0.0
    %3561 = vmatpush1.msra.mxu0 0.0
    %3562 = vmatprep.subr.mxu0 0.0
    %3563 = vmatpush1.msra.mxu0 0.0
    %3564 = vmatprep.subr.mxu0 0.0
    %3565 = vmatpush1.msra.mxu0 0.0
    %3566 = vmatprep.subr.mxu0 0.0
    %3567 = vmatpush1.msra.mxu0 0.0
    %3568 = vmatprep.subr.mxu0 0.0
    %3569 = vmatpush1.msra.mxu0 0.0
    %3570 = vmatprep.subr.mxu0 0.0
    %3571 = vmatpush1.msra.mxu0 0.0
    %3572 = vmatprep.subr.mxu0 0.0
    %3573 = vmatpush1.msra.mxu0 0.0
    %3574 = vmatprep.subr.mxu0 0.0
    %3575 = vmatpush1.msra.mxu0 0.0
    %3576 = vmatprep.subr.mxu0 0.0
    %3577 = vmatpush1.msra.mxu0 0.0
    %3578 = vmatprep.subr.mxu0 0.0
    %3579 = vmatpush1.msra.mxu0 0.0
    %3580 = vmatprep.subr.mxu0 0.0
    %3581 = vmatpush1.msra.mxu0 0.0
    %3582 = vmatprep.subr.mxu0 0.0
    %3583 = vmatpush1.msra.mxu0 0.0
    %3584 = vmatprep.subr.mxu0 0.0
    %3585 = vmatpush1.msra.mxu0 0.0
    %3586 = vmatprep.subr.mxu0 0.0
    %3587 = vmatpush1.msra.mxu0 0.0
    %3588 = vmatprep.subr.mxu0 0.0
    %3589 = vmatpush1.msra.mxu0 0.0
    %3590 = vmatprep.subr.mxu0 0.0
    %3591 = vmatpush1.msra.mxu0 0.0
    %3592 = vmatprep.subr.mxu0 0.0
    %3593 = vmatpush1.msra.mxu0 0.0
    %3594 = vmatprep.subr.mxu0 0.0
    %3595 = vmatpush1.msra.mxu0 0.0
    %3596 = vmatprep.subr.mxu0 0.0
    %3597 = vmatpush1.msra.mxu0 0.0
    %3598 = vmatprep.subr.mxu0 0.0
    %3599 = vmatpush1.msra.mxu0 0.0
    %3600 = vmatprep.subr.mxu0 0.0
    %3601 = vmatpush1.msra.mxu0 0.0
    %3602 = vmatprep.mubr.f32.mxu0 0.0
    %v3603 = vand.u32 %v3326, 4294901760
    %v3604 = vsub.f32 %v3326, %v3603
    %3605 = vmatmul.mubr.f32.gmra.mrb[0].mxu0 %v3604
    %v3606 = vpop.f32.mrb[0].mxu0
    %v3607 = vadd.f32 %v3519, %v3606
    %v3608 = vpop.f32.mrb[0].mxu0
    %3609 = vdwg.mxu0
    %3610 = vmatprep.subr.mxu0 0.0
    %v3611 = vand.u32 %v27, 4294901760
    %3612 = vmatpush1.msra.mxu0 %v3611
    %3613 = vmatprep.subr.mxu0 0.0
    %v3614 = vand.u32 %v28, 4294901760
    %3615 = vmatpush1.msra.mxu0 %v3614
    %3616 = vmatprep.subr.mxu0 0.0
    %v3617 = vand.u32 %v29, 4294901760
    %3618 = vmatpush1.msra.mxu0 %v3617
    %3619 = vmatprep.subr.mxu0 0.0
    %v3620 = vand.u32 %v30, 4294901760
    %3621 = vmatpush1.msra.mxu0 %v3620
    %3622 = vmatprep.subr.mxu0 0.0
    %v3623 = vand.u32 %v31, 4294901760
    %3624 = vmatpush1.msra.mxu0 %v3623
    %3625 = vmatprep.subr.mxu0 0.0
    %v3626 = vand.u32 %v32, 4294901760
    %3627 = vmatpush1.msra.mxu0 %v3626
    %3628 = vmatprep.subr.mxu0 0.0
    %v3629 = vand.u32 %v33, 4294901760
    %3630 = vmatpush1.msra.mxu0 %v3629
    %3631 = vmatprep.subr.mxu0 0.0
    %v3632 = vand.u32 %v34, 4294901760
    %3633 = vmatpush1.msra.mxu0 %v3632
    %3634 = vmatprep.subr.mxu0 0.0
    %3635 = vmatpush1.msra.mxu0 0.0
    %3636 = vmatprep.subr.mxu0 0.0
    %3637 = vmatpush1.msra.mxu0 0.0
    %3638 = vmatprep.subr.mxu0 0.0
    %3639 = vmatpush1.msra.mxu0 0.0
    %3640 = vmatprep.subr.mxu0 0.0
    %3641 = vmatpush1.msra.mxu0 0.0
    %3642 = vmatprep.subr.mxu0 0.0
    %3643 = vmatpush1.msra.mxu0 0.0
    %3644 = vmatprep.subr.mxu0 0.0
    %3645 = vmatpush1.msra.mxu0 0.0
    %3646 = vmatprep.subr.mxu0 0.0
    %3647 = vmatpush1.msra.mxu0 0.0
    %3648 = vmatprep.subr.mxu0 0.0
    %3649 = vmatpush1.msra.mxu0 0.0
    %3650 = vmatprep.subr.mxu0 0.0
    %3651 = vmatpush1.msra.mxu0 0.0
    %3652 = vmatprep.subr.mxu0 0.0
    %3653 = vmatpush1.msra.mxu0 0.0
    %3654 = vmatprep.subr.mxu0 0.0
    %3655 = vmatpush1.msra.mxu0 0.0
    %3656 = vmatprep.subr.mxu0 0.0
    %3657 = vmatpush1.msra.mxu0 0.0
    %3658 = vmatprep.subr.mxu0 0.0
    %3659 = vmatpush1.msra.mxu0 0.0
    %3660 = vmatprep.subr.mxu0 0.0
    %3661 = vmatpush1.msra.mxu0 0.0
    %3662 = vmatprep.subr.mxu0 0.0
    %3663 = vmatpush1.msra.mxu0 0.0
    %3664 = vmatprep.subr.mxu0 0.0
    %3665 = vmatpush1.msra.mxu0 0.0
    %3666 = vmatprep.subr.mxu0 0.0
    %3667 = vmatpush1.msra.mxu0 0.0
    %3668 = vmatprep.subr.mxu0 0.0
    %3669 = vmatpush1.msra.mxu0 0.0
    %3670 = vmatprep.subr.mxu0 0.0
    %3671 = vmatpush1.msra.mxu0 0.0
    %3672 = vmatprep.subr.mxu0 0.0
    %3673 = vmatpush1.msra.mxu0 0.0
    %3674 = vmatprep.subr.mxu0 0.0
    %3675 = vmatpush1.msra.mxu0 0.0
    %3676 = vmatprep.subr.mxu0 0.0
    %3677 = vmatpush1.msra.mxu0 0.0
    %3678 = vmatprep.subr.mxu0 0.0
    %3679 = vmatpush1.msra.mxu0 0.0
    %3680 = vmatprep.subr.mxu0 0.0
    %3681 = vmatpush1.msra.mxu0 0.0
    %3682 = vmatprep.mubr.f32.mxu0 0.0
    %v3683 = vand.u32 %v3326, 4294901760
    %v3684 = vsub.f32 %v3326, %v3683
    %v3685 = vand.u32 %v3684, 4294901760
    %3686 = vmatmul.mubr.f32.gmra.mrb[0].mxu0 %v3685
    %v3687 = vpop.f32.mrb[0].mxu0
    %v3688 = vadd.f32 %v3607, %v3687
    %v3689 = vpop.f32.mrb[0].mxu0
    %3690 = vdwg.mxu0
    %3691 = vmatprep.subr.mxu0 0.0
    %v3692 = vand.u32 %v27, 4294901760
    %v3693 = vsub.f32 %v27, %v3692
    %v3694 = vand.u32 %v3693, 4294901760
    %3695 = vmatpush1.msra.mxu0 %v3694
    %3696 = vmatprep.subr.mxu0 0.0
    %v3697 = vand.u32 %v28, 4294901760
    %v3698 = vsub.f32 %v28, %v3697
    %v3699 = vand.u32 %v3698, 4294901760
    %3700 = vmatpush1.msra.mxu0 %v3699
    %3701 = vmatprep.subr.mxu0 0.0
    %v3702 = vand.u32 %v29, 4294901760
    %v3703 = vsub.f32 %v29, %v3702
    %v3704 = vand.u32 %v3703, 4294901760
    %3705 = vmatpush1.msra.mxu0 %v3704
    %3706 = vmatprep.subr.mxu0 0.0
    %v3707 = vand.u32 %v30, 4294901760
    %v3708 = vsub.f32 %v30, %v3707
    %v3709 = vand.u32 %v3708, 4294901760
    %3710 = vmatpush1.msra.mxu0 %v3709
    %3711 = vmatprep.subr.mxu0 0.0
    %v3712 = vand.u32 %v31, 4294901760
    %v3713 = vsub.f32 %v31, %v3712
    %v3714 = vand.u32 %v3713, 4294901760
    %3715 = vmatpush1.msra.mxu0 %v3714
    %3716 = vmatprep.subr.mxu0 0.0
    %v3717 = vand.u32 %v32, 4294901760
    %v3718 = vsub.f32 %v32, %v3717
    %v3719 = vand.u32 %v3718, 4294901760
    %3720 = vmatpush1.msra.mxu0 %v3719
    %3721 = vmatprep.subr.mxu0 0.0
    %v3722 = vand.u32 %v33, 4294901760
    %v3723 = vsub.f32 %v33, %v3722
    %v3724 = vand.u32 %v3723, 4294901760
    %3725 = vmatpush1.msra.mxu0 %v3724
    %3726 = vmatprep.subr.mxu0 0.0
    %v3727 = vand.u32 %v34, 4294901760
    %v3728 = vsub.f32 %v34, %v3727
    %v3729 = vand.u32 %v3728, 4294901760
    %3730 = vmatpush1.msra.mxu0 %v3729
    %3731 = vmatprep.subr.mxu0 0.0
    %3732 = vmatpush1.msra.mxu0 0.0
    %3733 = vmatprep.subr.mxu0 0.0
    %3734 = vmatpush1.msra.mxu0 0.0
    %3735 = vmatprep.subr.mxu0 0.0
    %3736 = vmatpush1.msra.mxu0 0.0
    %3737 = vmatprep.subr.mxu0 0.0
    %3738 = vmatpush1.msra.mxu0 0.0
    %3739 = vmatprep.subr.mxu0 0.0
    %3740 = vmatpush1.msra.mxu0 0.0
    %3741 = vmatprep.subr.mxu0 0.0
    %3742 = vmatpush1.msra.mxu0 0.0
    %3743 = vmatprep.subr.mxu0 0.0
    %3744 = vmatpush1.msra.mxu0 0.0
    %3745 = vmatprep.subr.mxu0 0.0
    %3746 = vmatpush1.msra.mxu0 0.0
    %3747 = vmatprep.subr.mxu0 0.0
    %3748 = vmatpush1.msra.mxu0 0.0
    %3749 = vmatprep.subr.mxu0 0.0
    %3750 = vmatpush1.msra.mxu0 0.0
    %3751 = vmatprep.subr.mxu0 0.0
    %3752 = vmatpush1.msra.mxu0 0.0
    %3753 = vmatprep.subr.mxu0 0.0
    %3754 = vmatpush1.msra.mxu0 0.0
    %3755 = vmatprep.subr.mxu0 0.0
    %3756 = vmatpush1.msra.mxu0 0.0
    %3757 = vmatprep.subr.mxu0 0.0
    %3758 = vmatpush1.msra.mxu0 0.0
    %3759 = vmatprep.subr.mxu0 0.0
    %3760 = vmatpush1.msra.mxu0 0.0
    %3761 = vmatprep.subr.mxu0 0.0
    %3762 = vmatpush1.msra.mxu0 0.0
    %3763 = vmatprep.subr.mxu0 0.0
    %3764 = vmatpush1.msra.mxu0 0.0
    %3765 = vmatprep.subr.mxu0 0.0
    %3766 = vmatpush1.msra.mxu0 0.0
    %3767 = vmatprep.subr.mxu0 0.0
    %3768 = vmatpush1.msra.mxu0 0.0
    %3769 = vmatprep.subr.mxu0 0.0
    %3770 = vmatpush1.msra.mxu0 0.0
    %3771 = vmatprep.subr.mxu0 0.0
    %3772 = vmatpush1.msra.mxu0 0.0
    %3773 = vmatprep.subr.mxu0 0.0
    %3774 = vmatpush1.msra.mxu0 0.0
    %3775 = vmatprep.subr.mxu0 0.0
    %3776 = vmatpush1.msra.mxu0 0.0
    %3777 = vmatprep.subr.mxu0 0.0
    %3778 = vmatpush1.msra.mxu0 0.0
    %3779 = vmatprep.mubr.f32.mxu0 0.0
    %v3780 = vand.u32 %v3326, 4294901760
    %3781 = vmatmul.mubr.f32.gmra.mrb[0].mxu0 %v3780
    %v3782 = vpop.f32.mrb[0].mxu0
    %v3783 = vadd.f32 %v3688, %v3782
    %v3784 = vpop.f32.mrb[0].mxu0
    %3785 = vdwg.mxu0
    %3786 = vmatprep.subr.mxu0 0.0
    %v3787 = vand.u32 %v27, 4294901760
    %3788 = vmatpush1.msra.mxu0 %v3787
    %3789 = vmatprep.subr.mxu0 0.0
    %v3790 = vand.u32 %v28, 4294901760
    %3791 = vmatpush1.msra.mxu0 %v3790
    %3792 = vmatprep.subr.mxu0 0.0
    %v3793 = vand.u32 %v29, 4294901760
    %3794 = vmatpush1.msra.mxu0 %v3793
    %3795 = vmatprep.subr.mxu0 0.0
    %v3796 = vand.u32 %v30, 4294901760
    %3797 = vmatpush1.msra.mxu0 %v3796
    %3798 = vmatprep.subr.mxu0 0.0
    %v3799 = vand.u32 %v31, 4294901760
    %3800 = vmatpush1.msra.mxu0 %v3799
    %3801 = vmatprep.subr.mxu0 0.0
    %v3802 = vand.u32 %v32, 4294901760
    %3803 = vmatpush1.msra.mxu0 %v3802
    %3804 = vmatprep.subr.mxu0 0.0
    %v3805 = vand.u32 %v33, 4294901760
    %3806 = vmatpush1.msra.mxu0 %v3805
    %3807 = vmatprep.subr.mxu0 0.0
    %v3808 = vand.u32 %v34, 4294901760
    %3809 = vmatpush1.msra.mxu0 %v3808
    %3810 = vmatprep.subr.mxu0 0.0
    %3811 = vmatpush1.msra.mxu0 0.0
    %3812 = vmatprep.subr.mxu0 0.0
    %3813 = vmatpush1.msra.mxu0 0.0
    %3814 = vmatprep.subr.mxu0 0.0
    %3815 = vmatpush1.msra.mxu0 0.0
    %3816 = vmatprep.subr.mxu0 0.0
    %3817 = vmatpush1.msra.mxu0 0.0
    %3818 = vmatprep.subr.mxu0 0.0
    %3819 = vmatpush1.msra.mxu0 0.0
    %3820 = vmatprep.subr.mxu0 0.0
    %3821 = vmatpush1.msra.mxu0 0.0
    %3822 = vmatprep.subr.mxu0 0.0
    %3823 = vmatpush1.msra.mxu0 0.0
    %3824 = vmatprep.subr.mxu0 0.0
    %3825 = vmatpush1.msra.mxu0 0.0
    %3826 = vmatprep.subr.mxu0 0.0
    %3827 = vmatpush1.msra.mxu0 0.0
    %3828 = vmatprep.subr.mxu0 0.0
    %3829 = vmatpush1.msra.mxu0 0.0
    %3830 = vmatprep.subr.mxu0 0.0
    %3831 = vmatpush1.msra.mxu0 0.0
    %3832 = vmatprep.subr.mxu0 0.0
    %3833 = vmatpush1.msra.mxu0 0.0
    %3834 = vmatprep.subr.mxu0 0.0
    %3835 = vmatpush1.msra.mxu0 0.0
    %3836 = vmatprep.subr.mxu0 0.0
    %3837 = vmatpush1.msra.mxu0 0.0
    %3838 = vmatprep.subr.mxu0 0.0
    %3839 = vmatpush1.msra.mxu0 0.0
    %3840 = vmatprep.subr.mxu0 0.0
    %3841 = vmatpush1.msra.mxu0 0.0
    %3842 = vmatprep.subr.mxu0 0.0
    %3843 = vmatpush1.msra.mxu0 0.0
    %3844 = vmatprep.subr.mxu0 0.0
    %3845 = vmatpush1.msra.mxu0 0.0
    %3846 = vmatprep.subr.mxu0 0.0
    %3847 = vmatpush1.msra.mxu0 0.0
    %3848 = vmatprep.subr.mxu0 0.0
    %3849 = vmatpush1.msra.mxu0 0.0
    %3850 = vmatprep.subr.mxu0 0.0
    %3851 = vmatpush1.msra.mxu0 0.0
    %3852 = vmatprep.subr.mxu0 0.0
    %3853 = vmatpush1.msra.mxu0 0.0
    %3854 = vmatprep.subr.mxu0 0.0
    %3855 = vmatpush1.msra.mxu0 0.0
    %3856 = vmatprep.subr.mxu0 0.0
    %3857 = vmatpush1.msra.mxu0 0.0
    %3858 = vmatprep.mubr.f32.mxu0 0.0
    %v3859 = vand.u32 %v3326, 4294901760
    %3860 = vmatmul.mubr.f32.gmra.mrb[0].mxu0 %v3859
    %v3861 = vpop.f32.mrb[0].mxu0
    %v3862 = vadd.f32 %v3783, %v3861
    %v3863 = vpop.f32.mrb[0].mxu0
    %3864 = vdwg.mxu0
    %v3865 = vadd.f32 %v3324, %v3862
    %v3866 = vtanh.pop %v3865
    %v3867 = vsel %vm584, %v3866, %v3865
    %s3868 = scalar_lea.vmem %s4, 48
    %3869 = vst.msk [vmem:[%s3868] sm:$0xff] %vm586, %v3867
    %s3870 = scalar_lea.vmem %s0, 56
    %v3871 = vld [vmem:[%s3870] sm:$0xff]
    %v3873 = vsel %vm40, %v3867, 0
    %3875 = vmatprep.subr.mxu0 0.0
    %v3876 = vand.u32 %v27, 4294901760
    %3877 = vmatpush1.msra.mxu0 %v3876
    %3878 = vmatprep.subr.mxu0 0.0
    %v3879 = vand.u32 %v28, 4294901760
    %3880 = vmatpush1.msra.mxu0 %v3879
    %3881 = vmatprep.subr.mxu0 0.0
    %v3882 = vand.u32 %v29, 4294901760
    %3883 = vmatpush1.msra.mxu0 %v3882
    %3884 = vmatprep.subr.mxu0 0.0
    %v3885 = vand.u32 %v30, 4294901760
    %3886 = vmatpush1.msra.mxu0 %v3885
    %3887 = vmatprep.subr.mxu0 0.0
    %v3888 = vand.u32 %v31, 4294901760
    %3889 = vmatpush1.msra.mxu0 %v3888
    %3890 = vmatprep.subr.mxu0 0.0
    %v3891 = vand.u32 %v32, 4294901760
    %3892 = vmatpush1.msra.mxu0 %v3891
    %3893 = vmatprep.subr.mxu0 0.0
    %v3894 = vand.u32 %v33, 4294901760
    %3895 = vmatpush1.msra.mxu0 %v3894
    %3896 = vmatprep.subr.mxu0 0.0
    %v3897 = vand.u32 %v34, 4294901760
    %3898 = vmatpush1.msra.mxu0 %v3897
    %3899 = vmatprep.subr.mxu0 0.0
    %3900 = vmatpush1.msra.mxu0 0.0
    %3901 = vmatprep.subr.mxu0 0.0
    %3902 = vmatpush1.msra.mxu0 0.0
    %3903 = vmatprep.subr.mxu0 0.0
    %3904 = vmatpush1.msra.mxu0 0.0
    %3905 = vmatprep.subr.mxu0 0.0
    %3906 = vmatpush1.msra.mxu0 0.0
    %3907 = vmatprep.subr.mxu0 0.0
    %3908 = vmatpush1.msra.mxu0 0.0
    %3909 = vmatprep.subr.mxu0 0.0
    %3910 = vmatpush1.msra.mxu0 0.0
    %3911 = vmatprep.subr.mxu0 0.0
    %3912 = vmatpush1.msra.mxu0 0.0
    %3913 = vmatprep.subr.mxu0 0.0
    %3914 = vmatpush1.msra.mxu0 0.0
    %3915 = vmatprep.subr.mxu0 0.0
    %3916 = vmatpush1.msra.mxu0 0.0
    %3917 = vmatprep.subr.mxu0 0.0
    %3918 = vmatpush1.msra.mxu0 0.0
    %3919 = vmatprep.subr.mxu0 0.0
    %3920 = vmatpush1.msra.mxu0 0.0
    %3921 = vmatprep.subr.mxu0 0.0
    %3922 = vmatpush1.msra.mxu0 0.0
    %3923 = vmatprep.subr.mxu0 0.0
    %3924 = vmatpush1.msra.mxu0 0.0
    %3925 = vmatprep.subr.mxu0 0.0
    %3926 = vmatpush1.msra.mxu0 0.0
    %3927 = vmatprep.subr.mxu0 0.0
    %3928 = vmatpush1.msra.mxu0 0.0
    %3929 = vmatprep.subr.mxu0 0.0
    %3930 = vmatpush1.msra.mxu0 0.0
    %3931 = vmatprep.subr.mxu0 0.0
    %3932 = vmatpush1.msra.mxu0 0.0
    %3933 = vmatprep.subr.mxu0 0.0
    %3934 = vmatpush1.msra.mxu0 0.0
    %3935 = vmatprep.subr.mxu0 0.0
    %3936 = vmatpush1.msra.mxu0 0.0
    %3937 = vmatprep.subr.mxu0 0.0
    %3938 = vmatpush1.msra.mxu0 0.0
    %3939 = vmatprep.subr.mxu0 0.0
    %3940 = vmatpush1.msra.mxu0 0.0
    %3941 = vmatprep.subr.mxu0 0.0
    %3942 = vmatpush1.msra.mxu0 0.0
    %3943 = vmatprep.subr.mxu0 0.0
    %3944 = vmatpush1.msra.mxu0 0.0
    %3945 = vmatprep.subr.mxu0 0.0
    %3946 = vmatpush1.msra.mxu0 0.0
    %3947 = vmatprep.mubr.f32.mxu0 0.0
    %v3948 = vand.u32 %v3873, 4294901760
    %v3949 = vsub.f32 %v3873, %v3948
    %v3950 = vand.u32 %v3949, 4294901760
    %v3951 = vsub.f32 %v3949, %v3950
    %v3952 = vand.u32 %v3951, 4294901760
    %3953 = vmatmul.mubr.f32.gmra.mrb[0].mxu0 %v3952
    %v3954 = vpop.f32.mrb[0].mxu0
    %v3955 = vadd.f32 0.0, %v3954
    %v3956 = vpop.f32.mrb[0].mxu0
    %3957 = vdwg.mxu0
    %3958 = vmatprep.subr.mxu0 0.0
    %v3959 = vand.u32 %v27, 4294901760
    %v3960 = vsub.f32 %v27, %v3959
    %v3961 = vand.u32 %v3960, 4294901760
    %v3962 = vsub.f32 %v3960, %v3961
    %v3963 = vand.u32 %v3962, 4294901760
    %3964 = vmatpush1.msra.mxu0 %v3963
    %3965 = vmatprep.subr.mxu0 0.0
    %v3966 = vand.u32 %v28, 4294901760
    %v3967 = vsub.f32 %v28, %v3966
    %v3968 = vand.u32 %v3967, 4294901760
    %v3969 = vsub.f32 %v3967, %v3968
    %v3970 = vand.u32 %v3969, 4294901760
    %3971 = vmatpush1.msra.mxu0 %v3970
    %3972 = vmatprep.subr.mxu0 0.0
    %v3973 = vand.u32 %v29, 4294901760
    %v3974 = vsub.f32 %v29, %v3973
    %v3975 = vand.u32 %v3974, 4294901760
    %v3976 = vsub.f32 %v3974, %v3975
    %v3977 = vand.u32 %v3976, 4294901760
    %3978 = vmatpush1.msra.mxu0 %v3977
    %3979 = vmatprep.subr.mxu0 0.0
    %v3980 = vand.u32 %v30, 4294901760
    %v3981 = vsub.f32 %v30, %v3980
    %v3982 = vand.u32 %v3981, 4294901760
    %v3983 = vsub.f32 %v3981, %v3982
    %v3984 = vand.u32 %v3983, 4294901760
    %3985 = vmatpush1.msra.mxu0 %v3984
    %3986 = vmatprep.subr.mxu0 0.0
    %v3987 = vand.u32 %v31, 4294901760
    %v3988 = vsub.f32 %v31, %v3987
    %v3989 = vand.u32 %v3988, 4294901760
    %v3990 = vsub.f32 %v3988, %v3989
    %v3991 = vand.u32 %v3990, 4294901760
    %3992 = vmatpush1.msra.mxu0 %v3991
    %3993 = vmatprep.subr.mxu0 0.0
    %v3994 = vand.u32 %v32, 4294901760
    %v3995 = vsub.f32 %v32, %v3994
    %v3996 = vand.u32 %v3995, 4294901760
    %v3997 = vsub.f32 %v3995, %v3996
    %v3998 = vand.u32 %v3997, 4294901760
    %3999 = vmatpush1.msra.mxu0 %v3998
    %4000 = vmatprep.subr.mxu0 0.0
    %v4001 = vand.u32 %v33, 4294901760
    %v4002 = vsub.f32 %v33, %v4001
    %v4003 = vand.u32 %v4002, 4294901760
    %v4004 = vsub.f32 %v4002, %v4003
    %v4005 = vand.u32 %v4004, 4294901760
    %4006 = vmatpush1.msra.mxu0 %v4005
    %4007 = vmatprep.subr.mxu0 0.0
    %v4008 = vand.u32 %v34, 4294901760
    %v4009 = vsub.f32 %v34, %v4008
    %v4010 = vand.u32 %v4009, 4294901760
    %v4011 = vsub.f32 %v4009, %v4010
    %v4012 = vand.u32 %v4011, 4294901760
    %4013 = vmatpush1.msra.mxu0 %v4012
    %4014 = vmatprep.subr.mxu0 0.0
    %4015 = vmatpush1.msra.mxu0 0.0
    %4016 = vmatprep.subr.mxu0 0.0
    %4017 = vmatpush1.msra.mxu0 0.0
    %4018 = vmatprep.subr.mxu0 0.0
    %4019 = vmatpush1.msra.mxu0 0.0
    %4020 = vmatprep.subr.mxu0 0.0
    %4021 = vmatpush1.msra.mxu0 0.0
    %4022 = vmatprep.subr.mxu0 0.0
    %4023 = vmatpush1.msra.mxu0 0.0
    %4024 = vmatprep.subr.mxu0 0.0
    %4025 = vmatpush1.msra.mxu0 0.0
    %4026 = vmatprep.subr.mxu0 0.0
    %4027 = vmatpush1.msra.mxu0 0.0
    %4028 = vmatprep.subr.mxu0 0.0
    %4029 = vmatpush1.msra.mxu0 0.0
    %4030 = vmatprep.subr.mxu0 0.0
    %4031 = vmatpush1.msra.mxu0 0.0
    %4032 = vmatprep.subr.mxu0 0.0
    %4033 = vmatpush1.msra.mxu0 0.0
    %4034 = vmatprep.subr.mxu0 0.0
    %4035 = vmatpush1.msra.mxu0 0.0
    %4036 = vmatprep.subr.mxu0 0.0
    %4037 = vmatpush1.msra.mxu0 0.0
    %4038 = vmatprep.subr.mxu0 0.0
    %4039 = vmatpush1.msra.mxu0 0.0
    %4040 = vmatprep.subr.mxu0 0.0
    %4041 = vmatpush1.msra.mxu0 0.0
    %4042 = vmatprep.subr.mxu0 0.0
    %4043 = vmatpush1.msra.mxu0 0.0
    %4044 = vmatprep.subr.mxu0 0.0
    %4045 = vmatpush1.msra.mxu0 0.0
    %4046 = vmatprep.subr.mxu0 0.0
    %4047 = vmatpush1.msra.mxu0 0.0
    %4048 = vmatprep.subr.mxu0 0.0
    %4049 = vmatpush1.msra.mxu0 0.0
    %4050 = vmatprep.subr.mxu0 0.0
    %4051 = vmatpush1.msra.mxu0 0.0
    %4052 = vmatprep.subr.mxu0 0.0
    %4053 = vmatpush1.msra.mxu0 0.0
    %4054 = vmatprep.subr.mxu0 0.0
    %4055 = vmatpush1.msra.mxu0 0.0
    %4056 = vmatprep.subr.mxu0 0.0
    %4057 = vmatpush1.msra.mxu0 0.0
    %4058 = vmatprep.subr.mxu0 0.0
    %4059 = vmatpush1.msra.mxu0 0.0
    %4060 = vmatprep.subr.mxu0 0.0
    %4061 = vmatpush1.msra.mxu0 0.0
    %4062 = vmatprep.mubr.f32.mxu0 0.0
    %v4063 = vand.u32 %v3873, 4294901760
    %4064 = vmatmul.mubr.f32.gmra.mrb[0].mxu0 %v4063
    %v4065 = vpop.f32.mrb[0].mxu0
    %v4066 = vadd.f32 %v3955, %v4065
    %v4067 = vpop.f32.mrb[0].mxu0
    %4068 = vdwg.mxu0
    %4069 = vmatprep.subr.mxu0 0.0
    %v4070 = vand.u32 %v27, 4294901760
    %v4071 = vsub.f32 %v27, %v4070
    %4072 = vmatpush1.msra.mxu0 %v4071
    %4073 = vmatprep.subr.mxu0 0.0
    %v4074 = vand.u32 %v28, 4294901760
    %v4075 = vsub.f32 %v28, %v4074
    %4076 = vmatpush1.msra.mxu0 %v4075
    %4077 = vmatprep.subr.mxu0 0.0
    %v4078 = vand.u32 %v29, 4294901760
    %v4079 = vsub.f32 %v29, %v4078
    %4080 = vmatpush1.msra.mxu0 %v4079
    %4081 = vmatprep.subr.mxu0 0.0
    %v4082 = vand.u32 %v30, 4294901760
    %v4083 = vsub.f32 %v30, %v4082
    %4084 = vmatpush1.msra.mxu0 %v4083
    %4085 = vmatprep.subr.mxu0 0.0
    %v4086 = vand.u32 %v31, 4294901760
    %v4087 = vsub.f32 %v31, %v4086
    %4088 = vmatpush1.msra.mxu0 %v4087
    %4089 = vmatprep.subr.mxu0 0.0
    %v4090 = vand.u32 %v32, 4294901760
    %v4091 = vsub.f32 %v32, %v4090
    %4092 = vmatpush1.msra.mxu0 %v4091
    %4093 = vmatprep.subr.mxu0 0.0
    %v4094 = vand.u32 %v33, 4294901760
    %v4095 = vsub.f32 %v33, %v4094
    %4096 = vmatpush1.msra.mxu0 %v4095
    %4097 = vmatprep.subr.mxu0 0.0
    %v4098 = vand.u32 %v34, 4294901760
    %v4099 = vsub.f32 %v34, %v4098
    %4100 = vmatpush1.msra.mxu0 %v4099
    %4101 = vmatprep.subr.mxu0 0.0
    %4102 = vmatpush1.msra.mxu0 0.0
    %4103 = vmatprep.subr.mxu0 0.0
    %4104 = vmatpush1.msra.mxu0 0.0
    %4105 = vmatprep.subr.mxu0 0.0
    %4106 = vmatpush1.msra.mxu0 0.0
    %4107 = vmatprep.subr.mxu0 0.0
    %4108 = vmatpush1.msra.mxu0 0.0
    %4109 = vmatprep.subr.mxu0 0.0
    %4110 = vmatpush1.msra.mxu0 0.0
    %4111 = vmatprep.subr.mxu0 0.0
    %4112 = vmatpush1.msra.mxu0 0.0
    %4113 = vmatprep.subr.mxu0 0.0
    %4114 = vmatpush1.msra.mxu0 0.0
    %4115 = vmatprep.subr.mxu0 0.0
    %4116 = vmatpush1.msra.mxu0 0.0
    %4117 = vmatprep.subr.mxu0 0.0
    %4118 = vmatpush1.msra.mxu0 0.0
    %4119 = vmatprep.subr.mxu0 0.0
    %4120 = vmatpush1.msra.mxu0 0.0
    %4121 = vmatprep.subr.mxu0 0.0
    %4122 = vmatpush1.msra.mxu0 0.0
    %4123 = vmatprep.subr.mxu0 0.0
    %4124 = vmatpush1.msra.mxu0 0.0
    %4125 = vmatprep.subr.mxu0 0.0
    %4126 = vmatpush1.msra.mxu0 0.0
    %4127 = vmatprep.subr.mxu0 0.0
    %4128 = vmatpush1.msra.mxu0 0.0
    %4129 = vmatprep.subr.mxu0 0.0
    %4130 = vmatpush1.msra.mxu0 0.0
    %4131 = vmatprep.subr.mxu0 0.0
    %4132 = vmatpush1.msra.mxu0 0.0
    %4133 = vmatprep.subr.mxu0 0.0
    %4134 = vmatpush1.msra.mxu0 0.0
    %4135 = vmatprep.subr.mxu0 0.0
    %4136 = vmatpush1.msra.mxu0 0.0
    %4137 = vmatprep.subr.mxu0 0.0
    %4138 = vmatpush1.msra.mxu0 0.0
    %4139 = vmatprep.subr.mxu0 0.0
    %4140 = vmatpush1.msra.mxu0 0.0
    %4141 = vmatprep.subr.mxu0 0.0
    %4142 = vmatpush1.msra.mxu0 0.0
    %4143 = vmatprep.subr.mxu0 0.0
    %4144 = vmatpush1.msra.mxu0 0.0
    %4145 = vmatprep.subr.mxu0 0.0
    %4146 = vmatpush1.msra.mxu0 0.0
    %4147 = vmatprep.subr.mxu0 0.0
    %4148 = vmatpush1.msra.mxu0 0.0
    %4149 = vmatprep.mubr.f32.mxu0 0.0
    %v4150 = vand.u32 %v3873, 4294901760
    %v4151 = vsub.f32 %v3873, %v4150
    %4152 = vmatmul.mubr.f32.gmra.mrb[0].mxu0 %v4151
    %v4153 = vpop.f32.mrb[0].mxu0
    %v4154 = vadd.f32 %v4066, %v4153
    %v4155 = vpop.f32.mrb[0].mxu0
    %4156 = vdwg.mxu0
    %4157 = vmatprep.subr.mxu0 0.0
    %v4158 = vand.u32 %v27, 4294901760
    %4159 = vmatpush1.msra.mxu0 %v4158
    %4160 = vmatprep.subr.mxu0 0.0
    %v4161 = vand.u32 %v28, 4294901760
    %4162 = vmatpush1.msra.mxu0 %v4161
    %4163 = vmatprep.subr.mxu0 0.0
    %v4164 = vand.u32 %v29, 4294901760
    %4165 = vmatpush1.msra.mxu0 %v4164
    %4166 = vmatprep.subr.mxu0 0.0
    %v4167 = vand.u32 %v30, 4294901760
    %4168 = vmatpush1.msra.mxu0 %v4167
    %4169 = vmatprep.subr.mxu0 0.0
    %v4170 = vand.u32 %v31, 4294901760
    %4171 = vmatpush1.msra.mxu0 %v4170
    %4172 = vmatprep.subr.mxu0 0.0
    %v4173 = vand.u32 %v32, 4294901760
    %4174 = vmatpush1.msra.mxu0 %v4173
    %4175 = vmatprep.subr.mxu0 0.0
    %v4176 = vand.u32 %v33, 4294901760
    %4177 = vmatpush1.msra.mxu0 %v4176
    %4178 = vmatprep.subr.mxu0 0.0
    %v4179 = vand.u32 %v34, 4294901760
    %4180 = vmatpush1.msra.mxu0 %v4179
    %4181 = vmatprep.subr.mxu0 0.0
    %4182 = vmatpush1.msra.mxu0 0.0
    %4183 = vmatprep.subr.mxu0 0.0
    %4184 = vmatpush1.msra.mxu0 0.0
    %4185 = vmatprep.subr.mxu0 0.0
    %4186 = vmatpush1.msra.mxu0 0.0
    %4187 = vmatprep.subr.mxu0 0.0
    %4188 = vmatpush1.msra.mxu0 0.0
    %4189 = vmatprep.subr.mxu0 0.0
    %4190 = vmatpush1.msra.mxu0 0.0
    %4191 = vmatprep.subr.mxu0 0.0
    %4192 = vmatpush1.msra.mxu0 0.0
    %4193 = vmatprep.subr.mxu0 0.0
    %4194 = vmatpush1.msra.mxu0 0.0
    %4195 = vmatprep.subr.mxu0 0.0
    %4196 = vmatpush1.msra.mxu0 0.0
    %4197 = vmatprep.subr.mxu0 0.0
    %4198 = vmatpush1.msra.mxu0 0.0
    %4199 = vmatprep.subr.mxu0 0.0
    %4200 = vmatpush1.msra.mxu0 0.0
    %4201 = vmatprep.subr.mxu0 0.0
    %4202 = vmatpush1.msra.mxu0 0.0
    %4203 = vmatprep.subr.mxu0 0.0
    %4204 = vmatpush1.msra.mxu0 0.0
    %4205 = vmatprep.subr.mxu0 0.0
    %4206 = vmatpush1.msra.mxu0 0.0
    %4207 = vmatprep.subr.mxu0 0.0
    %4208 = vmatpush1.msra.mxu0 0.0
    %4209 = vmatprep.subr.mxu0 0.0
    %4210 = vmatpush1.msra.mxu0 0.0
    %4211 = vmatprep.subr.mxu0 0.0
    %4212 = vmatpush1.msra.mxu0 0.0
    %4213 = vmatprep.subr.mxu0 0.0
    %4214 = vmatpush1.msra.mxu0 0.0
    %4215 = vmatprep.subr.mxu0 0.0
    %4216 = vmatpush1.msra.mxu0 0.0
    %4217 = vmatprep.subr.mxu0 0.0
    %4218 = vmatpush1.msra.mxu0 0.0
    %4219 = vmatprep.subr.mxu0 0.0
    %4220 = vmatpush1.msra.mxu0 0.0
    %4221 = vmatprep.subr.mxu0 0.0
    %4222 = vmatpush1.msra.mxu0 0.0
    %4223 = vmatprep.subr.mxu0 0.0
    %4224 = vmatpush1.msra.mxu0 0.0
    %4225 = vmatprep.subr.mxu0 0.0
    %4226 = vmatpush1.msra.mxu0 0.0
    %4227 = vmatprep.subr.mxu0 0.0
    %4228 = vmatpush1.msra.mxu0 0.0
    %4229 = vmatprep.mubr.f32.mxu0 0.0
    %v4230 = vand.u32 %v3873, 4294901760
    %v4231 = vsub.f32 %v3873, %v4230
    %v4232 = vand.u32 %v4231, 4294901760
    %4233 = vmatmul.mubr.f32.gmra.mrb[0].mxu0 %v4232
    %v4234 = vpop.f32.mrb[0].mxu0
    %v4235 = vadd.f32 %v4154, %v4234
    %v4236 = vpop.f32.mrb[0].mxu0
    %4237 = vdwg.mxu0
    %4238 = vmatprep.subr.mxu0 0.0
    %v4239 = vand.u32 %v27, 4294901760
    %v4240 = vsub.f32 %v27, %v4239
    %v4241 = vand.u32 %v4240, 4294901760
    %4242 = vmatpush1.msra.mxu0 %v4241
    %4243 = vmatprep.subr.mxu0 0.0
    %v4244 = vand.u32 %v28, 4294901760
    %v4245 = vsub.f32 %v28, %v4244
    %v4246 = vand.u32 %v4245, 4294901760
    %4247 = vmatpush1.msra.mxu0 %v4246
    %4248 = vmatprep.subr.mxu0 0.0
    %v4249 = vand.u32 %v29, 4294901760
    %v4250 = vsub.f32 %v29, %v4249
    %v4251 = vand.u32 %v4250, 4294901760
    %4252 = vmatpush1.msra.mxu0 %v4251
    %4253 = vmatprep.subr.mxu0 0.0
    %v4254 = vand.u32 %v30, 4294901760
    %v4255 = vsub.f32 %v30, %v4254
    %v4256 = vand.u32 %v4255, 4294901760
    %4257 = vmatpush1.msra.mxu0 %v4256
    %4258 = vmatprep.subr.mxu0 0.0
    %v4259 = vand.u32 %v31, 4294901760
    %v4260 = vsub.f32 %v31, %v4259
    %v4261 = vand.u32 %v4260, 4294901760
    %4262 = vmatpush1.msra.mxu0 %v4261
    %4263 = vmatprep.subr.mxu0 0.0
    %v4264 = vand.u32 %v32, 4294901760
    %v4265 = vsub.f32 %v32, %v4264
    %v4266 = vand.u32 %v4265, 4294901760
    %4267 = vmatpush1.msra.mxu0 %v4266
    %4268 = vmatprep.subr.mxu0 0.0
    %v4269 = vand.u32 %v33, 4294901760
    %v4270 = vsub.f32 %v33, %v4269
    %v4271 = vand.u32 %v4270, 4294901760
    %4272 = vmatpush1.msra.mxu0 %v4271
    %4273 = vmatprep.subr.mxu0 0.0
    %v4274 = vand.u32 %v34, 4294901760
    %v4275 = vsub.f32 %v34, %v4274
    %v4276 = vand.u32 %v4275, 4294901760
    %4277 = vmatpush1.msra.mxu0 %v4276
    %4278 = vmatprep.subr.mxu0 0.0
    %4279 = vmatpush1.msra.mxu0 0.0
    %4280 = vmatprep.subr.mxu0 0.0
    %4281 = vmatpush1.msra.mxu0 0.0
    %4282 = vmatprep.subr.mxu0 0.0
    %4283 = vmatpush1.msra.mxu0 0.0
    %4284 = vmatprep.subr.mxu0 0.0
    %4285 = vmatpush1.msra.mxu0 0.0
    %4286 = vmatprep.subr.mxu0 0.0
    %4287 = vmatpush1.msra.mxu0 0.0
    %4288 = vmatprep.subr.mxu0 0.0
    %4289 = vmatpush1.msra.mxu0 0.0
    %4290 = vmatprep.subr.mxu0 0.0
    %4291 = vmatpush1.msra.mxu0 0.0
    %4292 = vmatprep.subr.mxu0 0.0
    %4293 = vmatpush1.msra.mxu0 0.0
    %4294 = vmatprep.subr.mxu0 0.0
    %4295 = vmatpush1.msra.mxu0 0.0
    %4296 = vmatprep.subr.mxu0 0.0
    %4297 = vmatpush1.msra.mxu0 0.0
    %4298 = vmatprep.subr.mxu0 0.0
    %4299 = vmatpush1.msra.mxu0 0.0
    %4300 = vmatprep.subr.mxu0 0.0
    %4301 = vmatpush1.msra.mxu0 0.0
    %4302 = vmatprep.subr.mxu0 0.0
    %4303 = vmatpush1.msra.mxu0 0.0
    %4304 = vmatprep.subr.mxu0 0.0
    %4305 = vmatpush1.msra.mxu0 0.0
    %4306 = vmatprep.subr.mxu0 0.0
    %4307 = vmatpush1.msra.mxu0 0.0
    %4308 = vmatprep.subr.mxu0 0.0
    %4309 = vmatpush1.msra.mxu0 0.0
    %4310 = vmatprep.subr.mxu0 0.0
    %4311 = vmatpush1.msra.mxu0 0.0
    %4312 = vmatprep.subr.mxu0 0.0
    %4313 = vmatpush1.msra.mxu0 0.0
    %4314 = vmatprep.subr.mxu0 0.0
    %4315 = vmatpush1.msra.mxu0 0.0
    %4316 = vmatprep.subr.mxu0 0.0
    %4317 = vmatpush1.msra.mxu0 0.0
    %4318 = vmatprep.subr.mxu0 0.0
    %4319 = vmatpush1.msra.mxu0 0.0
    %4320 = vmatprep.subr.mxu0 0.0
    %4321 = vmatpush1.msra.mxu0 0.0
    %4322 = vmatprep.subr.mxu0 0.0
    %4323 = vmatpush1.msra.mxu0 0.0
    %4324 = vmatprep.subr.mxu0 0.0
    %4325 = vmatpush1.msra.mxu0 0.0
    %4326 = vmatprep.mubr.f32.mxu0 0.0
    %v4327 = vand.u32 %v3873, 4294901760
    %4328 = vmatmul.mubr.f32.gmra.mrb[0].mxu0 %v4327
    %v4329 = vpop.f32.mrb[0].mxu0
    %v4330 = vadd.f32 %v4235, %v4329
    %v4331 = vpop.f32.mrb[0].mxu0
    %4332 = vdwg.mxu0
    %4333 = vmatprep.subr.mxu0 0.0
    %v4334 = vand.u32 %v27, 4294901760
    %4335 = vmatpush1.msra.mxu0 %v4334
    %4336 = vmatprep.subr.mxu0 0.0
    %v4337 = vand.u32 %v28, 4294901760
    %4338 = vmatpush1.msra.mxu0 %v4337
    %4339 = vmatprep.subr.mxu0 0.0
    %v4340 = vand.u32 %v29, 4294901760
    %4341 = vmatpush1.msra.mxu0 %v4340
    %4342 = vmatprep.subr.mxu0 0.0
    %v4343 = vand.u32 %v30, 4294901760
    %4344 = vmatpush1.msra.mxu0 %v4343
    %4345 = vmatprep.subr.mxu0 0.0
    %v4346 = vand.u32 %v31, 4294901760
    %4347 = vmatpush1.msra.mxu0 %v4346
    %4348 = vmatprep.subr.mxu0 0.0
    %v4349 = vand.u32 %v32, 4294901760
    %4350 = vmatpush1.msra.mxu0 %v4349
    %4351 = vmatprep.subr.mxu0 0.0
    %v4352 = vand.u32 %v33, 4294901760
    %4353 = vmatpush1.msra.mxu0 %v4352
    %4354 = vmatprep.subr.mxu0 0.0
    %v4355 = vand.u32 %v34, 4294901760
    %4356 = vmatpush1.msra.mxu0 %v4355
    %4357 = vmatprep.subr.mxu0 0.0
    %4358 = vmatpush1.msra.mxu0 0.0
    %4359 = vmatprep.subr.mxu0 0.0
    %4360 = vmatpush1.msra.mxu0 0.0
    %4361 = vmatprep.subr.mxu0 0.0
    %4362 = vmatpush1.msra.mxu0 0.0
    %4363 = vmatprep.subr.mxu0 0.0
    %4364 = vmatpush1.msra.mxu0 0.0
    %4365 = vmatprep.subr.mxu0 0.0
    %4366 = vmatpush1.msra.mxu0 0.0
    %4367 = vmatprep.subr.mxu0 0.0
    %4368 = vmatpush1.msra.mxu0 0.0
    %4369 = vmatprep.subr.mxu0 0.0
    %4370 = vmatpush1.msra.mxu0 0.0
    %4371 = vmatprep.subr.mxu0 0.0
    %4372 = vmatpush1.msra.mxu0 0.0
    %4373 = vmatprep.subr.mxu0 0.0
    %4374 = vmatpush1.msra.mxu0 0.0
    %4375 = vmatprep.subr.mxu0 0.0
    %4376 = vmatpush1.msra.mxu0 0.0
    %4377 = vmatprep.subr.mxu0 0.0
    %4378 = vmatpush1.msra.mxu0 0.0
    %4379 = vmatprep.subr.mxu0 0.0
    %4380 = vmatpush1.msra.mxu0 0.0
    %4381 = vmatprep.subr.mxu0 0.0
    %4382 = vmatpush1.msra.mxu0 0.0
    %4383 = vmatprep.subr.mxu0 0.0
    %4384 = vmatpush1.msra.mxu0 0.0
    %4385 = vmatprep.subr.mxu0 0.0
    %4386 = vmatpush1.msra.mxu0 0.0
    %4387 = vmatprep.subr.mxu0 0.0
    %4388 = vmatpush1.msra.mxu0 0.0
    %4389 = vmatprep.subr.mxu0 0.0
    %4390 = vmatpush1.msra.mxu0 0.0
    %4391 = vmatprep.subr.mxu0 0.0
    %4392 = vmatpush1.msra.mxu0 0.0
    %4393 = vmatprep.subr.mxu0 0.0
    %4394 = vmatpush1.msra.mxu0 0.0
    %4395 = vmatprep.subr.mxu0 0.0
    %4396 = vmatpush1.msra.mxu0 0.0
    %4397 = vmatprep.subr.mxu0 0.0
    %4398 = vmatpush1.msra.mxu0 0.0
    %4399 = vmatprep.subr.mxu0 0.0
    %4400 = vmatpush1.msra.mxu0 0.0
    %4401 = vmatprep.subr.mxu0 0.0
    %4402 = vmatpush1.msra.mxu0 0.0
    %4403 = vmatprep.subr.mxu0 0.0
    %4404 = vmatpush1.msra.mxu0 0.0
    %4405 = vmatprep.mubr.f32.mxu0 0.0
    %v4406 = vand.u32 %v3873, 4294901760
    %4407 = vmatmul.mubr.f32.gmra.mrb[0].mxu0 %v4406
    %v4408 = vpop.f32.mrb[0].mxu0
    %v4409 = vadd.f32 %v4330, %v4408
    %v4410 = vpop.f32.mrb[0].mxu0
    %4411 = vdwg.mxu0
    %v4412 = vadd.f32 %v3871, %v4409
    %v4413 = vtanh.pop %v4412
    %v4414 = vsel %vm584, %v4413, %v4412
    %s4415 = scalar_lea.vmem %s4, 56
    %4416 = vst.msk [vmem:[%s4415] sm:$0xff] %vm586, %v4414
    %4417 = vst.msk [vmem:[#allocation2] sm:$0xff] %vm40, %v4414
    // Predicated region
    $region22: #{lmu_forward.1} parent=1 // pred_check
      %p4418 = pneg %p21
    $region23: #{lmu_forward.1} parent=1 // pred_check_branch
      %4420 = sbr.rel (%p4418) target = $region25
    $region24: #{lmu_forward.1} parent=1 // pred_region
      %4421 = vst.msk [vmem:[%s6] sm:$0xff] %vm40, %v4414
      %v4422 = vld [vmem:[%s2] sm:$0xff]
      %v4423 = vld [vmem:[%s2 + $0x8] sm:$0xff]
      %v4424 = vld [vmem:[%s2 + $0x10] sm:$0xff]
      %v4425 = vld [vmem:[%s2 + $0x18] sm:$0xff]
      %v4426 = vld [vmem:[%s2 + $0x20] sm:$0xff]
      %v4427 = vld [vmem:[%s2 + $0x28] sm:$0xff]
      %v4428 = vld [vmem:[%s2 + $0x30] sm:$0xff]
      %v4429 = vld [vmem:[%s2 + $0x38] sm:$0xff]
      %v4430 = vld [vmem:[%s3] sm:$0x1]
      %v4432 = vlaneseq
      %v4433 = vshrl.u32 %v4432, 7
      %v4434 = vsub.s32 0, %v4433
      %v4435 = vrot.slane %v4430, %v4434
      %v4438 = vsel %vm40, %v4414, 0
      %4440 = vmatprep.subr.mxu0 0.0
      %v4441 = vand.u32 %v4422, 4294901760
      %4442 = vmatpush1.msra.mxu0 %v4441
      %4443 = vmatprep.subr.mxu0 0.0
      %v4444 = vand.u32 %v4423, 4294901760
      %4445 = vmatpush1.msra.mxu0 %v4444
      %4446 = vmatprep.subr.mxu0 0.0
      %v4447 = vand.u32 %v4424, 4294901760
      %4448 = vmatpush1.msra.mxu0 %v4447
      %4449 = vmatprep.subr.mxu0 0.0
      %v4450 = vand.u32 %v4425, 4294901760
      %4451 = vmatpush1.msra.mxu0 %v4450
      %4452 = vmatprep.subr.mxu0 0.0
      %v4453 = vand.u32 %v4426, 4294901760
      %4454 = vmatpush1.msra.mxu0 %v4453
      %4455 = vmatprep.subr.mxu0 0.0
      %v4456 = vand.u32 %v4427, 4294901760
      %4457 = vmatpush1.msra.mxu0 %v4456
      %4458 = vmatprep.subr.mxu0 0.0
      %v4459 = vand.u32 %v4428, 4294901760
      %4460 = vmatpush1.msra.mxu0 %v4459
      %4461 = vmatprep.subr.mxu0 0.0
      %v4462 = vand.u32 %v4429, 4294901760
      %4463 = vmatpush1.msra.mxu0 %v4462
      %4464 = vmatprep.subr.mxu0 0.0
      %4465 = vmatpush1.msra.mxu0 0.0
      %4466 = vmatprep.subr.mxu0 0.0
      %4467 = vmatpush1.msra.mxu0 0.0
      %4468 = vmatprep.subr.mxu0 0.0
      %4469 = vmatpush1.msra.mxu0 0.0
      %4470 = vmatprep.subr.mxu0 0.0
      %4471 = vmatpush1.msra.mxu0 0.0
      %4472 = vmatprep.subr.mxu0 0.0
      %4473 = vmatpush1.msra.mxu0 0.0
      %4474 = vmatprep.subr.mxu0 0.0
      %4475 = vmatpush1.msra.mxu0 0.0
      %4476 = vmatprep.subr.mxu0 0.0
      %4477 = vmatpush1.msra.mxu0 0.0
      %4478 = vmatprep.subr.mxu0 0.0
      %4479 = vmatpush1.msra.mxu0 0.0
      %4480 = vmatprep.subr.mxu0 0.0
      %4481 = vmatpush1.msra.mxu0 0.0
      %4482 = vmatprep.subr.mxu0 0.0
      %4483 = vmatpush1.msra.mxu0 0.0
      %4484 = vmatprep.subr.mxu0 0.0
      %4485 = vmatpush1.msra.mxu0 0.0
      %4486 = vmatprep.subr.mxu0 0.0
      %4487 = vmatpush1.msra.mxu0 0.0
      %4488 = vmatprep.subr.mxu0 0.0
      %4489 = vmatpush1.msra.mxu0 0.0
      %4490 = vmatprep.subr.mxu0 0.0
      %4491 = vmatpush1.msra.mxu0 0.0
      %4492 = vmatprep.subr.mxu0 0.0
      %4493 = vmatpush1.msra.mxu0 0.0
      %4494 = vmatprep.subr.mxu0 0.0
      %4495 = vmatpush1.msra.mxu0 0.0
      %4496 = vmatprep.subr.mxu0 0.0
      %4497 = vmatpush1.msra.mxu0 0.0
      %4498 = vmatprep.subr.mxu0 0.0
      %4499 = vmatpush1.msra.mxu0 0.0
      %4500 = vmatprep.subr.mxu0 0.0
      %4501 = vmatpush1.msra.mxu0 0.0
      %4502 = vmatprep.subr.mxu0 0.0
      %4503 = vmatpush1.msra.mxu0 0.0
      %4504 = vmatprep.subr.mxu0 0.0
      %4505 = vmatpush1.msra.mxu0 0.0
      %4506 = vmatprep.subr.mxu0 0.0
      %4507 = vmatpush1.msra.mxu0 0.0
      %4508 = vmatprep.subr.mxu0 0.0
      %4509 = vmatpush1.msra.mxu0 0.0
      %4510 = vmatprep.subr.mxu0 0.0
      %4511 = vmatpush1.msra.mxu0 0.0
      %4512 = vmatprep.mubr.f32.mxu0 0.0
      %v4513 = vand.u32 %v4438, 4294901760
      %v4514 = vsub.f32 %v4438, %v4513
      %v4515 = vand.u32 %v4514, 4294901760
      %v4516 = vsub.f32 %v4514, %v4515
      %v4517 = vand.u32 %v4516, 4294901760
      %4518 = vmatmul.mubr.f32.gmra.mrb[0].mxu0 %v4517
      %v4519 = vpop.f32.mrb[0].mxu0
      %v4520 = vadd.f32 %v4435, %v4519
      %v4521 = vpop.f32.mrb[0].mxu0
      %4522 = vdwg.mxu0
      %4523 = vmatprep.subr.mxu0 0.0
      %v4524 = vand.u32 %v4422, 4294901760
      %v4525 = vsub.f32 %v4422, %v4524
      %v4526 = vand.u32 %v4525, 4294901760
      %v4527 = vsub.f32 %v4525, %v4526
      %v4528 = vand.u32 %v4527, 4294901760
      %4529 = vmatpush1.msra.mxu0 %v4528
      %4530 = vmatprep.subr.mxu0 0.0
      %v4531 = vand.u32 %v4423, 4294901760
      %v4532 = vsub.f32 %v4423, %v4531
      %v4533 = vand.u32 %v4532, 4294901760
      %v4534 = vsub.f32 %v4532, %v4533
      %v4535 = vand.u32 %v4534, 4294901760
      %4536 = vmatpush1.msra.mxu0 %v4535
      %4537 = vmatprep.subr.mxu0 0.0
      %v4538 = vand.u32 %v4424, 4294901760
      %v4539 = vsub.f32 %v4424, %v4538
      %v4540 = vand.u32 %v4539, 4294901760
      %v4541 = vsub.f32 %v4539, %v4540
      %v4542 = vand.u32 %v4541, 4294901760
      %4543 = vmatpush1.msra.mxu0 %v4542
      %4544 = vmatprep.subr.mxu0 0.0
      %v4545 = vand.u32 %v4425, 4294901760
      %v4546 = vsub.f32 %v4425, %v4545
      %v4547 = vand.u32 %v4546, 4294901760
      %v4548 = vsub.f32 %v4546, %v4547
      %v4549 = vand.u32 %v4548, 4294901760
      %4550 = vmatpush1.msra.mxu0 %v4549
      %4551 = vmatprep.subr.mxu0 0.0
      %v4552 = vand.u32 %v4426, 4294901760
      %v4553 = vsub.f32 %v4426, %v4552
      %v4554 = vand.u32 %v4553, 4294901760
      %v4555 = vsub.f32 %v4553, %v4554
      %v4556 = vand.u32 %v4555, 4294901760
      %4557 = vmatpush1.msra.mxu0 %v4556
      %4558 = vmatprep.subr.mxu0 0.0
      %v4559 = vand.u32 %v4427, 4294901760
      %v4560 = vsub.f32 %v4427, %v4559
      %v4561 = vand.u32 %v4560, 4294901760
      %v4562 = vsub.f32 %v4560, %v4561
      %v4563 = vand.u32 %v4562, 4294901760
      %4564 = vmatpush1.msra.mxu0 %v4563
      %4565 = vmatprep.subr.mxu0 0.0
      %v4566 = vand.u32 %v4428, 4294901760
      %v4567 = vsub.f32 %v4428, %v4566
      %v4568 = vand.u32 %v4567, 4294901760
      %v4569 = vsub.f32 %v4567, %v4568
      %v4570 = vand.u32 %v4569, 4294901760
      %4571 = vmatpush1.msra.mxu0 %v4570
      %4572 = vmatprep.subr.mxu0 0.0
      %v4573 = vand.u32 %v4429, 4294901760
      %v4574 = vsub.f32 %v4429, %v4573
      %v4575 = vand.u32 %v4574, 4294901760
      %v4576 = vsub.f32 %v4574, %v4575
      %v4577 = vand.u32 %v4576, 4294901760
      %4578 = vmatpush1.msra.mxu0 %v4577
      %4579 = vmatprep.subr.mxu0 0.0
      %4580 = vmatpush1.msra.mxu0 0.0
      %4581 = vmatprep.subr.mxu0 0.0
      %4582 = vmatpush1.msra.mxu0 0.0
      %4583 = vmatprep.subr.mxu0 0.0
      %4584 = vmatpush1.msra.mxu0 0.0
      %4585 = vmatprep.subr.mxu0 0.0
      %4586 = vmatpush1.msra.mxu0 0.0
      %4587 = vmatprep.subr.mxu0 0.0
      %4588 = vmatpush1.msra.mxu0 0.0
      %4589 = vmatprep.subr.mxu0 0.0
      %4590 = vmatpush1.msra.mxu0 0.0
      %4591 = vmatprep.subr.mxu0 0.0
      %4592 = vmatpush1.msra.mxu0 0.0
      %4593 = vmatprep.subr.mxu0 0.0
      %4594 = vmatpush1.msra.mxu0 0.0
      %4595 = vmatprep.subr.mxu0 0.0
      %4596 = vmatpush1.msra.mxu0 0.0
      %4597 = vmatprep.subr.mxu0 0.0
      %4598 = vmatpush1.msra.mxu0 0.0
      %4599 = vmatprep.subr.mxu0 0.0
      %4600 = vmatpush1.msra.mxu0 0.0
      %4601 = vmatprep.subr.mxu0 0.0
      %4602 = vmatpush1.msra.mxu0 0.0
      %4603 = vmatprep.subr.mxu0 0.0
      %4604 = vmatpush1.msra.mxu0 0.0
      %4605 = vmatprep.subr.mxu0 0.0
      %4606 = vmatpush1.msra.mxu0 0.0
      %4607 = vmatprep.subr.mxu0 0.0
      %4608 = vmatpush1.msra.mxu0 0.0
      %4609 = vmatprep.subr.mxu0 0.0
      %4610 = vmatpush1.msra.mxu0 0.0
      %4611 = vmatprep.subr.mxu0 0.0
      %4612 = vmatpush1.msra.mxu0 0.0
      %4613 = vmatprep.subr.mxu0 0.0
      %4614 = vmatpush1.msra.mxu0 0.0
      %4615 = vmatprep.subr.mxu0 0.0
      %4616 = vmatpush1.msra.mxu0 0.0
      %4617 = vmatprep.subr.mxu0 0.0
      %4618 = vmatpush1.msra.mxu0 0.0
      %4619 = vmatprep.subr.mxu0 0.0
      %4620 = vmatpush1.msra.mxu0 0.0
      %4621 = vmatprep.subr.mxu0 0.0
      %4622 = vmatpush1.msra.mxu0 0.0
      %4623 = vmatprep.subr.mxu0 0.0
      %4624 = vmatpush1.msra.mxu0 0.0
      %4625 = vmatprep.subr.mxu0 0.0
      %4626 = vmatpush1.msra.mxu0 0.0
      %4627 = vmatprep.mubr.f32.mxu0 0.0
      %v4628 = vand.u32 %v4438, 4294901760
      %4629 = vmatmul.mubr.f32.gmra.mrb[0].mxu0 %v4628
      %v4630 = vpop.f32.mrb[0].mxu0
      %v4631 = vadd.f32 %v4520, %v4630
      %v4632 = vpop.f32.mrb[0].mxu0
      %4633 = vdwg.mxu0
      %4634 = vmatprep.subr.mxu0 0.0
      %v4635 = vand.u32 %v4422, 4294901760
      %v4636 = vsub.f32 %v4422, %v4635
      %4637 = vmatpush1.msra.mxu0 %v4636
      %4638 = vmatprep.subr.mxu0 0.0
      %v4639 = vand.u32 %v4423, 4294901760
      %v4640 = vsub.f32 %v4423, %v4639
      %4641 = vmatpush1.msra.mxu0 %v4640
      %4642 = vmatprep.subr.mxu0 0.0
      %v4643 = vand.u32 %v4424, 4294901760
      %v4644 = vsub.f32 %v4424, %v4643
      %4645 = vmatpush1.msra.mxu0 %v4644
      %4646 = vmatprep.subr.mxu0 0.0
      %v4647 = vand.u32 %v4425, 4294901760
      %v4648 = vsub.f32 %v4425, %v4647
      %4649 = vmatpush1.msra.mxu0 %v4648
      %4650 = vmatprep.subr.mxu0 0.0
      %v4651 = vand.u32 %v4426, 4294901760
      %v4652 = vsub.f32 %v4426, %v4651
      %4653 = vmatpush1.msra.mxu0 %v4652
      %4654 = vmatprep.subr.mxu0 0.0
      %v4655 = vand.u32 %v4427, 4294901760
      %v4656 = vsub.f32 %v4427, %v4655
      %4657 = vmatpush1.msra.mxu0 %v4656
      %4658 = vmatprep.subr.mxu0 0.0
      %v4659 = vand.u32 %v4428, 4294901760
      %v4660 = vsub.f32 %v4428, %v4659
      %4661 = vmatpush1.msra.mxu0 %v4660
      %4662 = vmatprep.subr.mxu0 0.0
      %v4663 = vand.u32 %v4429, 4294901760
      %v4664 = vsub.f32 %v4429, %v4663
      %4665 = vmatpush1.msra.mxu0 %v4664
      %4666 = vmatprep.subr.mxu0 0.0
      %4667 = vmatpush1.msra.mxu0 0.0
      %4668 = vmatprep.subr.mxu0 0.0
      %4669 = vmatpush1.msra.mxu0 0.0
      %4670 = vmatprep.subr.mxu0 0.0
      %4671 = vmatpush1.msra.mxu0 0.0
      %4672 = vmatprep.subr.mxu0 0.0
      %4673 = vmatpush1.msra.mxu0 0.0
      %4674 = vmatprep.subr.mxu0 0.0
      %4675 = vmatpush1.msra.mxu0 0.0
      %4676 = vmatprep.subr.mxu0 0.0
      %4677 = vmatpush1.msra.mxu0 0.0
      %4678 = vmatprep.subr.mxu0 0.0
      %4679 = vmatpush1.msra.mxu0 0.0
      %4680 = vmatprep.subr.mxu0 0.0
      %4681 = vmatpush1.msra.mxu0 0.0
      %4682 = vmatprep.subr.mxu0 0.0
      %4683 = vmatpush1.msra.mxu0 0.0
      %4684 = vmatprep.subr.mxu0 0.0
      %4685 = vmatpush1.msra.mxu0 0.0
      %4686 = vmatprep.subr.mxu0 0.0
      %4687 = vmatpush1.msra.mxu0 0.0
      %4688 = vmatprep.subr.mxu0 0.0
      %4689 = vmatpush1.msra.mxu0 0.0
      %4690 = vmatprep.subr.mxu0 0.0
      %4691 = vmatpush1.msra.mxu0 0.0
      %4692 = vmatprep.subr.mxu0 0.0
      %4693 = vmatpush1.msra.mxu0 0.0
      %4694 = vmatprep.subr.mxu0 0.0
      %4695 = vmatpush1.msra.mxu0 0.0
      %4696 = vmatprep.subr.mxu0 0.0
      %4697 = vmatpush1.msra.mxu0 0.0
      %4698 = vmatprep.subr.mxu0 0.0
      %4699 = vmatpush1.msra.mxu0 0.0
      %4700 = vmatprep.subr.mxu0 0.0
      %4701 = vmatpush1.msra.mxu0 0.0
      %4702 = vmatprep.subr.mxu0 0.0
      %4703 = vmatpush1.msra.mxu0 0.0
      %4704 = vmatprep.subr.mxu0 0.0
      %4705 = vmatpush1.msra.mxu0 0.0
      %4706 = vmatprep.subr.mxu0 0.0
      %4707 = vmatpush1.msra.mxu0 0.0
      %4708 = vmatprep.subr.mxu0 0.0
      %4709 = vmatpush1.msra.mxu0 0.0
      %4710 = vmatprep.subr.mxu0 0.0
      %4711 = vmatpush1.msra.mxu0 0.0
      %4712 = vmatprep.subr.mxu0 0.0
      %4713 = vmatpush1.msra.mxu0 0.0
      %4714 = vmatprep.mubr.f32.mxu0 0.0
      %v4715 = vand.u32 %v4438, 4294901760
      %v4716 = vsub.f32 %v4438, %v4715
      %4717 = vmatmul.mubr.f32.gmra.mrb[0].mxu0 %v4716
      %v4718 = vpop.f32.mrb[0].mxu0
      %v4719 = vadd.f32 %v4631, %v4718
      %v4720 = vpop.f32.mrb[0].mxu0
      %4721 = vdwg.mxu0
      %4722 = vmatprep.subr.mxu0 0.0
      %v4723 = vand.u32 %v4422, 4294901760
      %4724 = vmatpush1.msra.mxu0 %v4723
      %4725 = vmatprep.subr.mxu0 0.0
      %v4726 = vand.u32 %v4423, 4294901760
      %4727 = vmatpush1.msra.mxu0 %v4726
      %4728 = vmatprep.subr.mxu0 0.0
      %v4729 = vand.u32 %v4424, 4294901760
      %4730 = vmatpush1.msra.mxu0 %v4729
      %4731 = vmatprep.subr.mxu0 0.0
      %v4732 = vand.u32 %v4425, 4294901760
      %4733 = vmatpush1.msra.mxu0 %v4732
      %4734 = vmatprep.subr.mxu0 0.0
      %v4735 = vand.u32 %v4426, 4294901760
      %4736 = vmatpush1.msra.mxu0 %v4735
      %4737 = vmatprep.subr.mxu0 0.0
      %v4738 = vand.u32 %v4427, 4294901760
      %4739 = vmatpush1.msra.mxu0 %v4738
      %4740 = vmatprep.subr.mxu0 0.0
      %v4741 = vand.u32 %v4428, 4294901760
      %4742 = vmatpush1.msra.mxu0 %v4741
      %4743 = vmatprep.subr.mxu0 0.0
      %v4744 = vand.u32 %v4429, 4294901760
      %4745 = vmatpush1.msra.mxu0 %v4744
      %4746 = vmatprep.subr.mxu0 0.0
      %4747 = vmatpush1.msra.mxu0 0.0
      %4748 = vmatprep.subr.mxu0 0.0
      %4749 = vmatpush1.msra.mxu0 0.0
      %4750 = vmatprep.subr.mxu0 0.0
      %4751 = vmatpush1.msra.mxu0 0.0
      %4752 = vmatprep.subr.mxu0 0.0
      %4753 = vmatpush1.msra.mxu0 0.0
      %4754 = vmatprep.subr.mxu0 0.0
      %4755 = vmatpush1.msra.mxu0 0.0
      %4756 = vmatprep.subr.mxu0 0.0
      %4757 = vmatpush1.msra.mxu0 0.0
      %4758 = vmatprep.subr.mxu0 0.0
      %4759 = vmatpush1.msra.mxu0 0.0
      %4760 = vmatprep.subr.mxu0 0.0
      %4761 = vmatpush1.msra.mxu0 0.0
      %4762 = vmatprep.subr.mxu0 0.0
      %4763 = vmatpush1.msra.mxu0 0.0
      %4764 = vmatprep.subr.mxu0 0.0
      %4765 = vmatpush1.msra.mxu0 0.0
      %4766 = vmatprep.subr.mxu0 0.0
      %4767 = vmatpush1.msra.mxu0 0.0
      %4768 = vmatprep.subr.mxu0 0.0
      %4769 = vmatpush1.msra.mxu0 0.0
      %4770 = vmatprep.subr.mxu0 0.0
      %4771 = vmatpush1.msra.mxu0 0.0
      %4772 = vmatprep.subr.mxu0 0.0
      %4773 = vmatpush1.msra.mxu0 0.0
      %4774 = vmatprep.subr.mxu0 0.0
      %4775 = vmatpush1.msra.mxu0 0.0
      %4776 = vmatprep.subr.mxu0 0.0
      %4777 = vmatpush1.msra.mxu0 0.0
      %4778 = vmatprep.subr.mxu0 0.0
      %4779 = vmatpush1.msra.mxu0 0.0
      %4780 = vmatprep.subr.mxu0 0.0
      %4781 = vmatpush1.msra.mxu0 0.0
      %4782 = vmatprep.subr.mxu0 0.0
      %4783 = vmatpush1.msra.mxu0 0.0
      %4784 = vmatprep.subr.mxu0 0.0
      %4785 = vmatpush1.msra.mxu0 0.0
      %4786 = vmatprep.subr.mxu0 0.0
      %4787 = vmatpush1.msra.mxu0 0.0
      %4788 = vmatprep.subr.mxu0 0.0
      %4789 = vmatpush1.msra.mxu0 0.0
      %4790 = vmatprep.subr.mxu0 0.0
      %4791 = vmatpush1.msra.mxu0 0.0
      %4792 = vmatprep.subr.mxu0 0.0
      %4793 = vmatpush1.msra.mxu0 0.0
      %4794 = vmatprep.mubr.f32.mxu0 0.0
      %v4795 = vand.u32 %v4438, 4294901760
      %v4796 = vsub.f32 %v4438, %v4795
      %v4797 = vand.u32 %v4796, 4294901760
      %4798 = vmatmul.mubr.f32.gmra.mrb[0].mxu0 %v4797
      %v4799 = vpop.f32.mrb[0].mxu0
      %v4800 = vadd.f32 %v4719, %v4799
      %v4801 = vpop.f32.mrb[0].mxu0
      %4802 = vdwg.mxu0
      %4803 = vmatprep.subr.mxu0 0.0
      %v4804 = vand.u32 %v4422, 4294901760
      %v4805 = vsub.f32 %v4422, %v4804
      %v4806 = vand.u32 %v4805, 4294901760
      %4807 = vmatpush1.msra.mxu0 %v4806
      %4808 = vmatprep.subr.mxu0 0.0
      %v4809 = vand.u32 %v4423, 4294901760
      %v4810 = vsub.f32 %v4423, %v4809
      %v4811 = vand.u32 %v4810, 4294901760
      %4812 = vmatpush1.msra.mxu0 %v4811
      %4813 = vmatprep.subr.mxu0 0.0
      %v4814 = vand.u32 %v4424, 4294901760
      %v4815 = vsub.f32 %v4424, %v4814
      %v4816 = vand.u32 %v4815, 4294901760
      %4817 = vmatpush1.msra.mxu0 %v4816
      %4818 = vmatprep.subr.mxu0 0.0
      %v4819 = vand.u32 %v4425, 4294901760
      %v4820 = vsub.f32 %v4425, %v4819
      %v4821 = vand.u32 %v4820, 4294901760
      %4822 = vmatpush1.msra.mxu0 %v4821
      %4823 = vmatprep.subr.mxu0 0.0
      %v4824 = vand.u32 %v4426, 4294901760
      %v4825 = vsub.f32 %v4426, %v4824
      %v4826 = vand.u32 %v4825, 4294901760
      %4827 = vmatpush1.msra.mxu0 %v4826
      %4828 = vmatprep.subr.mxu0 0.0
      %v4829 = vand.u32 %v4427, 4294901760
      %v4830 = vsub.f32 %v4427, %v4829
      %v4831 = vand.u32 %v4830, 4294901760
      %4832 = vmatpush1.msra.mxu0 %v4831
      %4833 = vmatprep.subr.mxu0 0.0
      %v4834 = vand.u32 %v4428, 4294901760
      %v4835 = vsub.f32 %v4428, %v4834
      %v4836 = vand.u32 %v4835, 4294901760
      %4837 = vmatpush1.msra.mxu0 %v4836
      %4838 = vmatprep.subr.mxu0 0.0
      %v4839 = vand.u32 %v4429, 4294901760
      %v4840 = vsub.f32 %v4429, %v4839
      %v4841 = vand.u32 %v4840, 4294901760
      %4842 = vmatpush1.msra.mxu0 %v4841
      %4843 = vmatprep.subr.mxu0 0.0
      %4844 = vmatpush1.msra.mxu0 0.0
      %4845 = vmatprep.subr.mxu0 0.0
      %4846 = vmatpush1.msra.mxu0 0.0
      %4847 = vmatprep.subr.mxu0 0.0
      %4848 = vmatpush1.msra.mxu0 0.0
      %4849 = vmatprep.subr.mxu0 0.0
      %4850 = vmatpush1.msra.mxu0 0.0
      %4851 = vmatprep.subr.mxu0 0.0
      %4852 = vmatpush1.msra.mxu0 0.0
      %4853 = vmatprep.subr.mxu0 0.0
      %4854 = vmatpush1.msra.mxu0 0.0
      %4855 = vmatprep.subr.mxu0 0.0
      %4856 = vmatpush1.msra.mxu0 0.0
      %4857 = vmatprep.subr.mxu0 0.0
      %4858 = vmatpush1.msra.mxu0 0.0
      %4859 = vmatprep.subr.mxu0 0.0
      %4860 = vmatpush1.msra.mxu0 0.0
      %4861 = vmatprep.subr.mxu0 0.0
      %4862 = vmatpush1.msra.mxu0 0.0
      %4863 = vmatprep.subr.mxu0 0.0
      %4864 = vmatpush1.msra.mxu0 0.0
      %4865 = vmatprep.subr.mxu0 0.0
      %4866 = vmatpush1.msra.mxu0 0.0
      %4867 = vmatprep.subr.mxu0 0.0
      %4868 = vmatpush1.msra.mxu0 0.0
      %4869 = vmatprep.subr.mxu0 0.0
      %4870 = vmatpush1.msra.mxu0 0.0
      %4871 = vmatprep.subr.mxu0 0.0
      %4872 = vmatpush1.msra.mxu0 0.0
      %4873 = vmatprep.subr.mxu0 0.0
      %4874 = vmatpush1.msra.mxu0 0.0
      %4875 = vmatprep.subr.mxu0 0.0
      %4876 = vmatpush1.msra.mxu0 0.0
      %4877 = vmatprep.subr.mxu0 0.0
      %4878 = vmatpush1.msra.mxu0 0.0
      %4879 = vmatprep.subr.mxu0 0.0
      %4880 = vmatpush1.msra.mxu0 0.0
      %4881 = vmatprep.subr.mxu0 0.0
      %4882 = vmatpush1.msra.mxu0 0.0
      %4883 = vmatprep.subr.mxu0 0.0
      %4884 = vmatpush1.msra.mxu0 0.0
      %4885 = vmatprep.subr.mxu0 0.0
      %4886 = vmatpush1.msra.mxu0 0.0
      %4887 = vmatprep.subr.mxu0 0.0
      %4888 = vmatpush1.msra.mxu0 0.0
      %4889 = vmatprep.subr.mxu0 0.0
      %4890 = vmatpush1.msra.mxu0 0.0
      %4891 = vmatprep.mubr.f32.mxu0 0.0
      %v4892 = vand.u32 %v4438, 4294901760
      %4893 = vmatmul.mubr.f32.gmra.mrb[0].mxu0 %v4892
      %v4894 = vpop.f32.mrb[0].mxu0
      %v4895 = vadd.f32 %v4800, %v4894
      %v4896 = vpop.f32.mrb[0].mxu0
      %4897 = vdwg.mxu0
      %4898 = vmatprep.subr.mxu0 0.0
      %v4899 = vand.u32 %v4422, 4294901760
      %4900 = vmatpush1.msra.mxu0 %v4899
      %4901 = vmatprep.subr.mxu0 0.0
      %v4902 = vand.u32 %v4423, 4294901760
      %4903 = vmatpush1.msra.mxu0 %v4902
      %4904 = vmatprep.subr.mxu0 0.0
      %v4905 = vand.u32 %v4424, 4294901760
      %4906 = vmatpush1.msra.mxu0 %v4905
      %4907 = vmatprep.subr.mxu0 0.0
      %v4908 = vand.u32 %v4425, 4294901760
      %4909 = vmatpush1.msra.mxu0 %v4908
      %4910 = vmatprep.subr.mxu0 0.0
      %v4911 = vand.u32 %v4426, 4294901760
      %4912 = vmatpush1.msra.mxu0 %v4911
      %4913 = vmatprep.subr.mxu0 0.0
      %v4914 = vand.u32 %v4427, 4294901760
      %4915 = vmatpush1.msra.mxu0 %v4914
      %4916 = vmatprep.subr.mxu0 0.0
      %v4917 = vand.u32 %v4428, 4294901760
      %4918 = vmatpush1.msra.mxu0 %v4917
      %4919 = vmatprep.subr.mxu0 0.0
      %v4920 = vand.u32 %v4429, 4294901760
      %4921 = vmatpush1.msra.mxu0 %v4920
      %4922 = vmatprep.subr.mxu0 0.0
      %4923 = vmatpush1.msra.mxu0 0.0
      %4924 = vmatprep.subr.mxu0 0.0
      %4925 = vmatpush1.msra.mxu0 0.0
      %4926 = vmatprep.subr.mxu0 0.0
      %4927 = vmatpush1.msra.mxu0 0.0
      %4928 = vmatprep.subr.mxu0 0.0
      %4929 = vmatpush1.msra.mxu0 0.0
      %4930 = vmatprep.subr.mxu0 0.0
      %4931 = vmatpush1.msra.mxu0 0.0
      %4932 = vmatprep.subr.mxu0 0.0
      %4933 = vmatpush1.msra.mxu0 0.0
      %4934 = vmatprep.subr.mxu0 0.0
      %4935 = vmatpush1.msra.mxu0 0.0
      %4936 = vmatprep.subr.mxu0 0.0
      %4937 = vmatpush1.msra.mxu0 0.0
      %4938 = vmatprep.subr.mxu0 0.0
      %4939 = vmatpush1.msra.mxu0 0.0
      %4940 = vmatprep.subr.mxu0 0.0
      %4941 = vmatpush1.msra.mxu0 0.0
      %4942 = vmatprep.subr.mxu0 0.0
      %4943 = vmatpush1.msra.mxu0 0.0
      %4944 = vmatprep.subr.mxu0 0.0
      %4945 = vmatpush1.msra.mxu0 0.0
      %4946 = vmatprep.subr.mxu0 0.0
      %4947 = vmatpush1.msra.mxu0 0.0
      %4948 = vmatprep.subr.mxu0 0.0
      %4949 = vmatpush1.msra.mxu0 0.0
      %4950 = vmatprep.subr.mxu0 0.0
      %4951 = vmatpush1.msra.mxu0 0.0
      %4952 = vmatprep.subr.mxu0 0.0
      %4953 = vmatpush1.msra.mxu0 0.0
      %4954 = vmatprep.subr.mxu0 0.0
      %4955 = vmatpush1.msra.mxu0 0.0
      %4956 = vmatprep.subr.mxu0 0.0
      %4957 = vmatpush1.msra.mxu0 0.0
      %4958 = vmatprep.subr.mxu0 0.0
      %4959 = vmatpush1.msra.mxu0 0.0
      %4960 = vmatprep.subr.mxu0 0.0
      %4961 = vmatpush1.msra.mxu0 0.0
      %4962 = vmatprep.subr.mxu0 0.0
      %4963 = vmatpush1.msra.mxu0 0.0
      %4964 = vmatprep.subr.mxu0 0.0
      %4965 = vmatpush1.msra.mxu0 0.0
      %4966 = vmatprep.subr.mxu0 0.0
      %4967 = vmatpush1.msra.mxu0 0.0
      %4968 = vmatprep.subr.mxu0 0.0
      %4969 = vmatpush1.msra.mxu0 0.0
      %4970 = vmatprep.mubr.f32.mxu0 0.0
      %v4971 = vand.u32 %v4438, 4294901760
      %4972 = vmatmul.mubr.f32.gmra.mrb[0].mxu0 %v4971
      %v4973 = vpop.f32.mrb[0].mxu0
      %v4974 = vadd.f32 %v4895, %v4973
      %v4975 = vpop.f32.mrb[0].mxu0
      %4976 = vdwg.mxu0
      %v4977 = vxor.u32 %v4974, 2147483648
      %v4978 = vmul.f32 %v4977, 1.442695
      %v4979 = vpow.pop %v4978
      %v4980 = vadd.f32 %v4979, 1.0
      %v4981 = vrcp.pop %v4980
      %v4982 = vmul.f32 1.0, %v4981
      %v4983 = vtanh.pop %v4974
      %v4984 = vmul.f32 %v4983, %v4983
      %4986 = vrot.lane.b32.xlu0 %v4984, 125
      %v4987 = vpop.permute.xlu0 %4986
      %vm4989 = vcmask 31744
      %v4990 = vsel %vm4989, %v4987, 0.0
      %4991 = vadd.xlane.f32.xlu0 %v4990
      %v4992 = vpop.xlane.xlu0 %4991
      %v4993 = vrsqrt.pop %v4992
      %v4994 = vmul.f32 %v4992, %v4993
      %vm4995 = vcmp.eq.f32.partialorder %v4992, inf
      %v4996 = vsel %vm4995, %v4992, %v4994
      %vm4997 = vcmp.eq.f32.partialorder %v4992, 0.0
      %v4998 = vand.u32 %v4992, 2147483648
      %v4999 = vsel %vm4997, %v4998, %v4996
      %v5000 = vmax.f32 %v4999, 1e-12
      %v5001 = vrcp.pop %v5000
      %v5002 = vmul.f32 %v4983, %v5001
      %vm5003 = vcmask 23552
      %v5004 = vsel %vm5003, %v4982, %v5002
      %vm5005 = vcmask 56320
      %5006 = vst.msk [vmem:[#allocation3] sm:$0xff] %vm5005, %v5004
    $region25: #{lmu_forward.1} parent=1 // pred_fallthru
      _
    // Predicated region
    $region26: #{lmu_forward.1} parent=1 // pred_check
      _
    $region27: #{lmu_forward.1} parent=1 // pred_check_branch
      %5008 = sbr.rel (0) target = $region29
    $region28: #{lmu_forward.1} parent=1 // pred_region
      _
    $region29: #{lmu_forward.1} parent=1 // pred_fallthru
      _
    // Predicated region
    $region30: #{lmu_forward.1} parent=1 // pred_check
      _
    $region31: #{lmu_forward.1} parent=1 // pred_check_branch
      %5010 = sbr.rel (0) target = $region33
    $region32: #{lmu_forward.1} parent=1 // pred_region
      %s5012 = ssub.s32 128, 128
      %5013 = vsyncadd [#allocation4], %s5012
      %s5015 = sshll.u32 [#allocation3], 4
      %s5016 = int_to_ptr.vmem [resolvable:$true] %s5015
      %5018 = dma.vmem_to_hbm [thread:$0]  %s5016, 128, %s5, [#allocation4]
    $region33: #{lmu_forward.1} parent=1 // pred_fallthru
      _
    // Predicated region
    $region34: #{lmu_forward.1} parent=1 // pred_check
      _
    $region35: #{lmu_forward.1} parent=1 // pred_check_branch
      %5020 = sbr.rel (0) target = $region37
    $region36: #{lmu_forward.1} parent=1 // pred_region
      _
    $region37: #{lmu_forward.1} parent=1 // pred_fallthru
      _
    // Predicated region
    $region38: #{lmu_forward.1} parent=1 // pred_check
      _
    $region39: #{lmu_forward.1} parent=1 // pred_check_branch
      %5022 = sbr.rel (0) target = $region41
    $region40: #{lmu_forward.1} parent=1 // pred_region
      _
    $region41: #{lmu_forward.1} parent=1 // pred_fallthru
      _
    // Predicated region
    $region42: #{lmu_forward.1} parent=1 // pred_check
      _
    $region43: #{lmu_forward.1} parent=1 // pred_check_branch
      %5024 = sbr.rel (0) target = $region45
    $region44: #{lmu_forward.1} parent=1 // pred_region
      %5025 = dma.done [#allocation4], 128
    $region45: #{lmu_forward.1} parent=1 // pred_fallthru
      _
    // Predicated region
    $region46: #{lmu_forward.1} parent=1 // pred_check
      _
    $region47: #{lmu_forward.1} parent=1 // pred_check_branch
      %5027 = sbr.rel (0) target = $region49
    $region48: #{lmu_forward.1} parent=1 // pred_region
      _
    $region49: #{lmu_forward.1} parent=1 // pred_fallthru
      _
    %5028 = vsyncpa [#allocation4], 1

</llo_original>
